<compile_context>
chip_gen: v6e
topology: v6e:2x2x1
jax: 0.10.0
libtpu: 0.0.40
codegen_flags: <defaults>
</compile_context>

<pallas_src>
import functools
import math

import jax
import jax.numpy as jnp
from jax.experimental import pallas as pl
from jax.experimental.pallas import tpu as pltpu

# ----------------------------------------------------------------------------
# Pallas kernel: fused matmul (bf16 x bf16 -> f32 acc) + bias + optional ReLU
# ----------------------------------------------------------------------------

_TM_MAX = 128   # max rows per grid step; M >= 256 -> >= 2 "parallel" steps (v7x megacore)
_LANE = 128     # lane bucket for K and N
_SUB = 16       # sublane bucket for M (bf16 sublane packing)


def _round_up(x, m):
    return ((x + m - 1) // m) * m


def _mm_kernel(a_ref, w_ref, b_ref, o_ref, *, relu):
    acc = jnp.dot(a_ref[...], w_ref[...], preferred_element_type=jnp.float32)
    acc = acc + b_ref[...]
    if relu:
        acc = jnp.maximum(acc, 0.0)
    o_ref[...] = acc


@functools.lru_cache(maxsize=None)
def _get_mm(mp, tm, kp, np_, relu):
    kernel = functools.partial(_mm_kernel, relu=relu)
    return pl.pallas_call(
        kernel,
        out_shape=jax.ShapeDtypeStruct((mp, np_), jnp.float32),
        grid=(mp // tm,),
        in_specs=[
            pl.BlockSpec((tm, kp), lambda i: (i, 0)),
            pl.BlockSpec((kp, np_), lambda i: (0, 0)),
            pl.BlockSpec((1, np_), lambda i: (0, 0)),
        ],
        out_specs=pl.BlockSpec((tm, np_), lambda i: (i, 0)),
        compiler_params=pltpu.CompilerParams(
            dimension_semantics=("parallel",)),
    )


def pallas_matmul(a, w_p, bias_p, relu):
    """a: [M, K] f32; w_p: [Kp, Np] bf16 (pre-padded); bias_p: [1, Np] f32."""
    m, k = a.shape
    kp, np_ = w_p.shape
    tm = min(_TM_MAX, _round_up(m, _SUB))
    mp = _round_up(m, tm)
    a_p = jnp.pad(a.astype(jnp.bfloat16), ((0, mp - m), (0, kp - k)))
    out = _get_mm(mp, tm, kp, np_, bool(relu))(a_p, w_p, bias_p)
    return out[:m]


# ----------------------------------------------------------------------------
# Conv2d via im2col + Pallas matmul (weights pre-laid-out at init time)
# ----------------------------------------------------------------------------

def conv2d(x, cv, relu):
    """x: [B, Cin, H, W] f32; cv holds pre-padded bf16 weight matrix + meta."""
    b, cin, h, w = x.shape
    kh, kw = cv["kh"], cv["kw"]
    pad, dil = cv["pad"], cv["dil"]
    cout = cv["cout"]
    hout = h + 2 * pad - dil * (kh - 1)
    wout = w + 2 * pad - dil * (kw - 1)

    xn = jnp.transpose(x, (0, 2, 3, 1))                       # NHWC
    if kh == 1 and kw == 1 and pad == 0:
        a = xn.reshape(b * h * w, cin)
    else:
        xp = jnp.pad(xn, ((0, 0), (pad, pad), (pad, pad), (0, 0)))
        cols = []
        for ih in range(kh):
            for iw in range(kw):
                hs, ws = ih * dil, iw * dil
                cols.append(xp[:, hs:hs + hout, ws:ws + wout, :])
        # tap-major, cin-minor column order -> matches weight layout below
        a = jnp.concatenate(cols, axis=-1).reshape(b * hout * wout, kh * kw * cin)

    out = pallas_matmul(a, cv["wm"], cv["bias"], relu)
    out = out[:, :cout].reshape(b, hout, wout, cout)
    return jnp.transpose(out, (0, 3, 1, 2))


def conv1d_eca(v, w9):
    """9-tap Conv1d(1,1,9,pad=4,bias=False) over the channel vector, on the VPU."""
    c = v.shape[1]
    vp = jnp.pad(v, ((0, 0), (4, 4)))
    out = jnp.zeros_like(v)
    for j in range(9):
        out = out + w9[j] * vp[:, j:j + c]
    return out


# ----------------------------------------------------------------------------
# JAX glue ops (gather/reshape heavy, fused under the top-level jit)
# ----------------------------------------------------------------------------
# TODO(synk): bilinear interpolate / pixel_shuffle / global-avg-pool stay as
# plain-JAX glue (no clean Pallas hot path at these shapes).

def interp_bilinear(x, scale):
    """F.interpolate(..., mode='bilinear', align_corners=False) on NCHW."""
    _, _, h, w = x.shape
    ho = int(math.floor(h * scale))
    wo = int(math.floor(w * scale))

    def coords(in_size, out_size):
        d = (jnp.arange(out_size, dtype=jnp.float32) + 0.5) * (in_size / out_size) - 0.5
        d = jnp.clip(d, 0.0, float(in_size - 1))
        i0 = jnp.floor(d).astype(jnp.int32)
        i1 = jnp.minimum(i0 + 1, in_size - 1)
        return i0, i1, d - i0.astype(jnp.float32)

    y0, y1, fy = coords(h, ho)
    x0, x1, fx = coords(w, wo)
    top = x[:, :, y0, :]
    bot = x[:, :, y1, :]
    fy = fy[None, None, :, None]
    rows = top * (1.0 - fy) + bot * fy
    left = rows[:, :, :, x0]
    right = rows[:, :, :, x1]
    fx = fx[None, None, None, :]
    return left * (1.0 - fx) + right * fx


def pixel_shuffle(x, r):
    bsz, c, h, w = x.shape
    co = c // (r * r)
    x = x.reshape(bsz, co, r, r, h, w)
    x = jnp.transpose(x, (0, 1, 4, 2, 5, 3))
    return x.reshape(bsz, co, h * r, w * r)


# ----------------------------------------------------------------------------
# Parameter init (deterministic, synthetic) — weights stored MXU-ready
# ----------------------------------------------------------------------------

class PInit:
    def __init__(self, key):
        self.key = key
        self.count = 0

    def take(self, shape, scale):
        self.count += 1
        k = jax.random.fold_in(self.key, self.count)
        return jax.random.normal(k, shape, jnp.float32) * scale


def make_conv_params(pi, cin, cout, k, *, pad=0, dil=1, bias=True):
    w = pi.take((cout, cin, k, k), scale=1.0 / math.sqrt(cin * k * k))
    b = pi.take((cout,), scale=0.01) if bias else jnp.zeros((cout,), jnp.float32)
    kdim = k * k * cin
    kp = _round_up(kdim, _LANE)
    np_ = _round_up(cout, _LANE)
    # OIHW -> (KH, KW, Cin, O) -> [KH*KW*Cin, O]  (tap-major, cin-minor rows)
    wm = jnp.transpose(w, (2, 3, 1, 0)).reshape(kdim, cout)
    wm = jnp.pad(wm, ((0, kp - kdim), (0, np_ - cout))).astype(jnp.bfloat16)
    bias_row = jnp.pad(b.reshape(1, cout), ((0, 0), (0, np_ - cout)))
    return {"wm": wm, "bias": bias_row.astype(jnp.float32),
            "kh": k, "kw": k, "pad": pad, "dil": dil, "cout": cout}


def init_ghost_block(pi, inp, oup, d):
    init_ch = math.ceil(oup / 2)
    new_ch = init_ch  # ratio = 2
    return {"pw": make_conv_params(pi, inp, init_ch, 1, pad=0, dil=1, bias=False),
            "cw": make_conv_params(pi, init_ch, new_ch, 3, pad=d, dil=d, bias=False),
            "oup": oup}


def init_ghost_module(pi, inp, inter, d_list):
    blocks = []
    c = inp
    for d in d_list:
        blocks.append(init_ghost_block(pi, c, inter, d))
        c += inter
    return {"blocks": blocks,
            "conv": make_conv_params(pi, c, inp, 1, pad=0, dil=1, bias=True)}


def init_eca(pi):
    return {"w1": pi.take((9,), scale=1.0 / 3.0),
            "w2": pi.take((9,), scale=1.0 / 3.0)}


def init_sam(pi, c, d_list, inter):
    return {"bb0": init_ghost_module(pi, c, inter, d_list),
            "bb2": init_ghost_module(pi, c, inter, d_list),
            "bb4": init_ghost_module(pi, c, inter, d_list),
            "eca": init_eca(pi)}


def init_decoder_level(pi, f, inter, sam_n):
    return {"rdb": init_ghost_module(pi, f, inter, (1, 2, 1)),
            "sams": [init_sam(pi, f, (1, 2, 3, 4, 5, 4, 3, 2, 1), inter)
                     for _ in range(sam_n)],
            "conv": make_conv_params(pi, f, 12, 3, pad=1, dil=1, bias=True)}


def init_decoder(key, en, f, inter, sam_n):
    pi = PInit(key)
    return {"pc3": make_conv_params(pi, 4 * en, f, 3, pad=1, bias=True),
            "d3": init_decoder_level(pi, f, inter, sam_n),
            "pc2": make_conv_params(pi, 2 * en + f, f, 3, pad=1, bias=True),
            "d2": init_decoder_level(pi, f, inter, sam_n),
            "pc1": make_conv_params(pi, en + f, f, 3, pad=1, bias=True),
            "d1": init_decoder_level(pi, f, inter, sam_n)}


# ----------------------------------------------------------------------------
# Forward pass (mirrors the PyTorch modules)
# ----------------------------------------------------------------------------

def ghost_block_fwd(p, x):
    x1 = conv2d(x, p["pw"], relu=True)
    x2 = conv2d(x1, p["cw"], relu=True)
    out = jnp.concatenate([x1, x2], axis=1)
    return out[:, :p["oup"], :, :]


def ghost_module_fwd(p, x, residual):
    t = x
    for gb in p["blocks"]:
        _t = ghost_block_fwd(gb, t)
        t = jnp.concatenate([_t, t], axis=1)
    t = conv2d(t, p["conv"], relu=False)
    return t + x if residual else t


def eca_fwd(p, x):
    b, c = x.shape[0], x.shape[1]
    v = jnp.mean(x, axis=(2, 3))                       # AdaptiveAvgPool2d(1) -> [B, C]
    v = conv1d_eca(v, p["w2"])                         # conv2 first (matches reference)
    v = jnp.maximum(v, 0.0)
    v = v.reshape(b, 3, c // 3).transpose(0, 2, 1).reshape(b, c)   # ChannelShuffle(3)
    v = conv1d_eca(v, p["w1"])
    v = v.reshape(b, c // 3, 3).transpose(0, 2, 1).reshape(b, c)   # ChannelUnshuffle(3)
    return jax.nn.sigmoid(v)[:, :, None, None]


def sam_fwd(p, x):
    c = x.shape[1]
    x2 = interp_bilinear(x, 0.5)
    x4 = interp_bilinear(x, 0.25)
    y0 = ghost_module_fwd(p["bb0"], x, residual=False)
    y2 = ghost_module_fwd(p["bb2"], x2, residual=False)
    y4 = ghost_module_fwd(p["bb4"], x4, residual=False)
    y2 = interp_bilinear(y2, 2.0)
    y4 = interp_bilinear(y4, 4.0)
    y = jnp.concatenate([y0, y2, y4], axis=1)
    attn = eca_fwd(p["eca"], y)
    w0, w2, w4 = attn[:, :c], attn[:, c:2 * c], attn[:, 2 * c:]
    y = w0 * y0 + w2 * y2 + w4 * y4
    return x + y


def decoder_level_fwd(p, x, feat=True):
    x = ghost_module_fwd(p["rdb"], x, residual=True)
    for sp in p["sams"]:
        x = sam_fwd(sp, x)
    out = conv2d(x, p["conv"], relu=False)
    out = pixel_shuffle(out, 2)
    if feat:
        feature = interp_bilinear(x, 2.0)
        return out, feature
    return out


def decoder_fwd(p, y_1, y_2, y_3):
    x_3 = conv2d(y_3, p["pc3"], relu=True)
    out_3, feat_3 = decoder_level_fwd(p["d3"], x_3, feat=True)

    x_2 = jnp.concatenate([y_2, feat_3], axis=1)
    x_2 = conv2d(x_2, p["pc2"], relu=True)
    out_2, feat_2 = decoder_level_fwd(p["d2"], x_2, feat=True)

    x_1 = jnp.concatenate([y_1, feat_2], axis=1)
    x_1 = conv2d(x_1, p["pc1"], relu=True)
    out_1 = decoder_level_fwd(p["d1"], x_1, feat=False)

    return out_1, out_2, out_3, feat_2, feat_3


# ----------------------------------------------------------------------------
# Main
# ----------------------------------------------------------------------------

if __name__ == "__main__":
    en_num, feature_num, inter_num, sam_number = 4, 8, 4, 1
    B, H3, W3 = 1, 8, 8

    key = jax.random.PRNGKey(0)
    k1, k2, k3, kp = jax.random.split(key, 4)
    y_3 = jax.random.normal(k3, (B, 4 * en_num, H3, W3), jnp.float32)
    y_2 = jax.random.normal(k2, (B, 2 * en_num, 2 * H3, 2 * W3), jnp.float32)
    y_1 = jax.random.normal(k1, (B, en_num, 4 * H3, 4 * W3), jnp.float32)

    params = init_decoder(kp, en_num, feature_num, inter_num, sam_number)

    # Single top-level jit over the whole forward pass; params (including the
    # pre-padded bf16 weight matrices) are closed over as constants so the
    # static conv metadata stays Python-level.
    @jax.jit
    def run(a, b, c):
        return decoder_fwd(params, a, b, c)

    out_1, out_2, out_3, feat_2, feat_3 = run(y_1, y_2, y_3)
    for t in (out_1, out_2, out_3, feat_2, feat_3):
        jax.block_until_ready(t)

    assert out_3.shape == (B, 3, 2 * H3, 2 * W3)
    assert out_2.shape == (B, 3, 4 * H3, 4 * W3)
    assert out_1.shape == (B, 3, 8 * H3, 8 * W3)
    assert feat_3.shape == (B, feature_num, 2 * H3, 2 * W3)
    assert feat_2.shape == (B, feature_num, 4 * H3, 4 * W3)
    assert all(bool(jnp.isfinite(t).all()) for t in (out_1, out_2, out_3, feat_2, feat_3))

    print("KERNEL_OK")
</pallas_src>

<mosaic_0001>
module attributes {stable_mosaic.version = 11 : i64} {
  func.func @_mm_kernel(%arg0: i32, %arg1: memref<64x256xbf16, #tpu.memory_space<vmem>>, %arg2: memref<256x128xbf16, #tpu.memory_space<vmem>>, %arg3: memref<1x128xf32, #tpu.memory_space<vmem>>, %arg4: memref<64x128xf32, #tpu.memory_space<vmem>>) attributes {dimension_semantics = [#tpu.dimension_semantics<parallel>], iteration_bounds = array<i64: 1>, scalar_prefetch = 0 : i64, scratch_operands = 0 : i64, tpu.core_type = #tpu.core_type<tc>, window_params = [{transform_indices = @transform_0, window_bounds = array<i64: 64, 256>}, {pipeline_mode = #tpu.pipeline_mode<synchronous>, transform_indices = @transform_1, window_bounds = array<i64: 256, 128>}, {pipeline_mode = #tpu.pipeline_mode<synchronous>, transform_indices = @transform_2, window_bounds = array<i64: 1, 128>}, {transform_indices = @transform_3, window_bounds = array<i64: 64, 128>}]} {
    %c0 = arith.constant 0 : index
    %c0_0 = arith.constant 0 : index
    %0 = vector.load %arg1[%c0, %c0_0] : memref<64x256xbf16, #tpu.memory_space<vmem>>, vector<64x256xbf16>
    %c0_1 = arith.constant 0 : index
    %c0_2 = arith.constant 0 : index
    %1 = vector.load %arg2[%c0_1, %c0_2] : memref<256x128xbf16, #tpu.memory_space<vmem>>, vector<256x128xbf16>
    %cst = arith.constant dense<0.000000e+00> : vector<64x128xf32>
    %2 = tpu.matmul %0, %1, %cst {dimension_numbers = #tpu.dot_dimension_numbers<[1], [0], [0], [1], [0, 0, 1, 1], [], []>} : vector<64x256xbf16>, vector<256x128xbf16>, vector<64x128xf32> -> vector<64x128xf32>
    %c0_3 = arith.constant 0 : index
    %c0_4 = arith.constant 0 : index
    %3 = vector.load %arg3[%c0_3, %c0_4] : memref<1x128xf32, #tpu.memory_space<vmem>>, vector<1x128xf32>
    %4 = vector.broadcast %3 : vector<1x128xf32> to vector<64x128xf32>
    %5 = arith.addf %2, %4 : vector<64x128xf32>
    %cst_5 = arith.constant 0.000000e+00 : f32
    %6 = vector.broadcast %cst_5 : f32 to vector<64x128xf32>
    %7 = arith.maximumf %5, %6 : vector<64x128xf32>
    %c0_6 = arith.constant 0 : index
    %c0_7 = arith.constant 0 : index
    %8 = vector.load %arg4[%c0_6, %c0_7] : memref<64x128xf32, #tpu.memory_space<vmem>>, vector<64x128xf32>
    tpu.vector_store %arg4[%c0_6, %c0_7], %7 {strides = array<i32>} : memref<64x128xf32, #tpu.memory_space<vmem>>, vector<64x128xf32>,
    return
  }
  func.func @transform_0(%arg0: i32) -> (i32, i32) {
    %c0_i32 = arith.constant 0 : i32
    %c0_i32_0 = arith.constant 0 : i32
    return %arg0, %c0_i32 : i32, i32
  }
  func.func @transform_1(%arg0: i32) -> (i32, i32) {
    %c0_i32 = arith.constant 0 : i32
    %c0_i32_0 = arith.constant 0 : i32
    %c0_i32_1 = arith.constant 0 : i32
    return %c0_i32, %c0_i32_0 : i32, i32
  }
  func.func @transform_2(%arg0: i32) -> (i32, i32) {
    %c0_i32 = arith.constant 0 : i32
    %c0_i32_0 = arith.constant 0 : i32
    %c0_i32_1 = arith.constant 0 : i32
    return %c0_i32, %c0_i32_0 : i32, i32
  }
  func.func @transform_3(%arg0: i32) -> (i32, i32) {
    %c0_i32 = arith.constant 0 : i32
    %c0_i32_0 = arith.constant 0 : i32
    return %arg0, %c0_i32 : i32, i32
  }
}

module attributes {stable_mosaic.version = 11 : i64} {
  func.func @_mm_kernel(%arg0: i32, %arg1: memref<64x128xbf16, #tpu.memory_space<vmem>>, %arg2: memref<128x128xbf16, #tpu.memory_space<vmem>>, %arg3: memref<1x128xf32, #tpu.memory_space<vmem>>, %arg4: memref<64x128xf32, #tpu.memory_space<vmem>>) attributes {dimension_semantics = [#tpu.dimension_semantics<parallel>], iteration_bounds = array<i64: 1>, scalar_prefetch = 0 : i64, scratch_operands = 0 : i64, tpu.core_type = #tpu.core_type<tc>, window_params = [{transform_indices = @transform_0, window_bounds = array<i64: 64, 128>}, {pipeline_mode = #tpu.pipeline_mode<synchronous>, transform_indices = @transform_1, window_bounds = array<i64: 128, 128>}, {pipeline_mode = #tpu.pipeline_mode<synchronous>, transform_indices = @transform_2, window_bounds = array<i64: 1, 128>}, {transform_indices = @transform_3, window_bounds = array<i64: 64, 128>}]} {
    %c0 = arith.constant 0 : index
    %c0_0 = arith.constant 0 : index
    %0 = vector.load %arg1[%c0, %c0_0] : memref<64x128xbf16, #tpu.memory_space<vmem>>, vector<64x128xbf16>
    %c0_1 = arith.constant 0 : index
    %c0_2 = arith.constant 0 : index
    %1 = vector.load %arg2[%c0_1, %c0_2] : memref<128x128xbf16, #tpu.memory_space<vmem>>, vector<128x128xbf16>
    %cst = arith.constant dense<0.000000e+00> : vector<64x128xf32>
    %2 = tpu.matmul %0, %1, %cst {dimension_numbers = #tpu.dot_dimension_numbers<[1], [0], [0], [1], [0, 0, 1, 1], [], []>} : vector<64x128xbf16>, vector<128x128xbf16>, vector<64x128xf32> -> vector<64x128xf32>
    %c0_3 = arith.constant 0 : index
    %c0_4 = arith.constant 0 : index
    %3 = vector.load %arg3[%c0_3, %c0_4] : memref<1x128xf32, #tpu.memory_space<vmem>>, vector<1x128xf32>
    %4 = vector.broadcast %3 : vector<1x128xf32> to vector<64x128xf32>
    %5 = arith.addf %2, %4 : vector<64x128xf32>
    %cst_5 = arith.constant 0.000000e+00 : f32
    %6 = vector.broadcast %cst_5 : f32 to vector<64x128xf32>
    %7 = arith.maximumf %5, %6 : vector<64x128xf32>
    %c0_6 = arith.constant 0 : index
    %c0_7 = arith.constant 0 : index
    %8 = vector.load %arg4[%c0_6, %c0_7] : memref<64x128xf32, #tpu.memory_space<vmem>>, vector<64x128xf32>
    tpu.vector_store %arg4[%c0_6, %c0_7], %7 {strides = array<i32>} : memref<64x128xf32, #tpu.memory_space<vmem>>, vector<64x128xf32>,
    return
  }
  func.func @transform_0(%arg0: i32) -> (i32, i32) {
    %c0_i32 = arith.constant 0 : i32
    %c0_i32_0 = arith.constant 0 : i32
    return %arg0, %c0_i32 : i32, i32
  }
  func.func @transform_1(%arg0: i32) -> (i32, i32) {
    %c0_i32 = arith.constant 0 : i32
    %c0_i32_0 = arith.constant 0 : i32
    %c0_i32_1 = arith.constant 0 : i32
    return %c0_i32, %c0_i32_0 : i32, i32
  }
  func.func @transform_2(%arg0: i32) -> (i32, i32) {
    %c0_i32 = arith.constant 0 : i32
    %c0_i32_0 = arith.constant 0 : i32
    %c0_i32_1 = arith.constant 0 : i32
    return %c0_i32, %c0_i32_0 : i32, i32
  }
  func.func @transform_3(%arg0: i32) -> (i32, i32) {
    %c0_i32 = arith.constant 0 : i32
    %c0_i32_0 = arith.constant 0 : i32
    return %arg0, %c0_i32 : i32, i32
  }
}

module attributes {stable_mosaic.version = 11 : i64} {
  func.func @_mm_kernel(%arg0: i32, %arg1: memref<64x128xbf16, #tpu.memory_space<vmem>>, %arg2: memref<128x128xbf16, #tpu.memory_space<vmem>>, %arg3: memref<1x128xf32, #tpu.memory_space<vmem>>, %arg4: memref<64x128xf32, #tpu.memory_space<vmem>>) attributes {dimension_semantics = [#tpu.dimension_semantics<parallel>], iteration_bounds = array<i64: 1>, scalar_prefetch = 0 : i64, scratch_operands = 0 : i64, tpu.core_type = #tpu.core_type<tc>, window_params = [{transform_indices = @transform_0, window_bounds = array<i64: 64, 128>}, {pipeline_mode = #tpu.pipeline_mode<synchronous>, transform_indices = @transform_1, window_bounds = array<i64: 128, 128>}, {pipeline_mode = #tpu.pipeline_mode<synchronous>, transform_indices = @transform_2, window_bounds = array<i64: 1, 128>}, {transform_indices = @transform_3, window_bounds = array<i64: 64, 128>}]} {
    %c0 = arith.constant 0 : index
    %c0_0 = arith.constant 0 : index
    %0 = vector.load %arg1[%c0, %c0_0] : memref<64x128xbf16, #tpu.memory_space<vmem>>, vector<64x128xbf16>
    %c0_1 = arith.constant 0 : index
    %c0_2 = arith.constant 0 : index
    %1 = vector.load %arg2[%c0_1, %c0_2] : memref<128x128xbf16, #tpu.memory_space<vmem>>, vector<128x128xbf16>
    %cst = arith.constant dense<0.000000e+00> : vector<64x128xf32>
    %2 = tpu.matmul %0, %1, %cst {dimension_numbers = #tpu.dot_dimension_numbers<[1], [0], [0], [1], [0, 0, 1, 1], [], []>} : vector<64x128xbf16>, vector<128x128xbf16>, vector<64x128xf32> -> vector<64x128xf32>
    %c0_3 = arith.constant 0 : index
    %c0_4 = arith.constant 0 : index
    %3 = vector.load %arg3[%c0_3, %c0_4] : memref<1x128xf32, #tpu.memory_space<vmem>>, vector<1x128xf32>
    %4 = vector.broadcast %3 : vector<1x128xf32> to vector<64x128xf32>
    %5 = arith.addf %2, %4 : vector<64x128xf32>
    %cst_5 = arith.constant 0.000000e+00 : f32
    %6 = vector.broadcast %cst_5 : f32 to vector<64x128xf32>
    %7 = arith.maximumf %5, %6 : vector<64x128xf32>
    %c0_6 = arith.constant 0 : index
    %c0_7 = arith.constant 0 : index
    %8 = vector.load %arg4[%c0_6, %c0_7] : memref<64x128xf32, #tpu.memory_space<vmem>>, vector<64x128xf32>
    tpu.vector_store %arg4[%c0_6, %c0_7], %7 {strides = array<i32>} : memref<64x128xf32, #tpu.memory_space<vmem>>, vector<64x128xf32>,
    return
  }
  func.func @transform_0(%arg0: i32) -> (i32, i32) {
    %c0_i32 = arith.constant 0 : i32
    %c0_i32_0 = arith.constant 0 : i32
    return %arg0, %c0_i32 : i32, i32
  }
  func.func @transform_1(%arg0: i32) -> (i32, i32) {
    %c0_i32 = arith.constant 0 : i32
    %c0_i32_0 = arith.constant 0 : i32
    %c0_i32_1 = arith.constant 0 : i32
    return %c0_i32, %c0_i32_0 : i32, i32
  }
  func.func @transform_2(%arg0: i32) -> (i32, i32) {
    %c0_i32 = arith.constant 0 : i32
    %c0_i32_0 = arith.constant 0 : i32
    %c0_i32_1 = arith.constant 0 : i32
    return %c0_i32, %c0_i32_0 : i32, i32
  }
  func.func @transform_3(%arg0: i32) -> (i32, i32) {
    %c0_i32 = arith.constant 0 : i32
    %c0_i32_0 = arith.constant 0 : i32
    return %arg0, %c0_i32 : i32, i32
  }
}

module attributes {stable_mosaic.version = 11 : i64} {
  func.func @_mm_kernel(%arg0: i32, %arg1: memref<64x128xbf16, #tpu.memory_space<vmem>>, %arg2: memref<128x128xbf16, #tpu.memory_space<vmem>>, %arg3: memref<1x128xf32, #tpu.memory_space<vmem>>, %arg4: memref<64x128xf32, #tpu.memory_space<vmem>>) attributes {dimension_semantics = [#tpu.dimension_semantics<parallel>], iteration_bounds = array<i64: 1>, scalar_prefetch = 0 : i64, scratch_operands = 0 : i64, tpu.core_type = #tpu.core_type<tc>, window_params = [{transform_indices = @transform_0, window_bounds = array<i64: 64, 128>}, {pipeline_mode = #tpu.pipeline_mode<synchronous>, transform_indices = @transform_1, window_bounds = array<i64: 128, 128>}, {pipeline_mode = #tpu.pipeline_mode<synchronous>, transform_indices = @transform_2, window_bounds = array<i64: 1, 128>}, {transform_indices = @transform_3, window_bounds = array<i64: 64, 128>}]} {
    %c0 = arith.constant 0 : index
    %c0_0 = arith.constant 0 : index
    %0 = vector.load %arg1[%c0, %c0_0] : memref<64x128xbf16, #tpu.memory_space<vmem>>, vector<64x128xbf16>
    %c0_1 = arith.constant 0 : index
    %c0_2 = arith.constant 0 : index
    %1 = vector.load %arg2[%c0_1, %c0_2] : memref<128x128xbf16, #tpu.memory_space<vmem>>, vector<128x128xbf16>
    %cst = arith.constant dense<0.000000e+00> : vector<64x128xf32>
    %2 = tpu.matmul %0, %1, %cst {dimension_numbers = #tpu.dot_dimension_numbers<[1], [0], [0], [1], [0, 0, 1, 1], [], []>} : vector<64x128xbf16>, vector<128x128xbf16>, vector<64x128xf32> -> vector<64x128xf32>
    %c0_3 = arith.constant 0 : index
    %c0_4 = arith.constant 0 : index
    %3 = vector.load %arg3[%c0_3, %c0_4] : memref<1x128xf32, #tpu.memory_space<vmem>>, vector<1x128xf32>
    %4 = vector.broadcast %3 : vector<1x128xf32> to vector<64x128xf32>
    %5 = arith.addf %2, %4 : vector<64x128xf32>
    %c0_5 = arith.constant 0 : index
    %c0_6 = arith.constant 0 : index
    %6 = vector.load %arg4[%c0_5, %c0_6] : memref<64x128xf32, #tpu.memory_space<vmem>>, vector<64x128xf32>
    tpu.vector_store %arg4[%c0_5, %c0_6], %5 {strides = array<i32>} : memref<64x128xf32, #tpu.memory_space<vmem>>, vector<64x128xf32>,
    return
  }
  func.func @transform_0(%arg0: i32) -> (i32, i32) {
    %c0_i32 = arith.constant 0 : i32
    %c0_i32_0 = arith.constant 0 : i32
    return %arg0, %c0_i32 : i32, i32
  }
  func.func @transform_1(%arg0: i32) -> (i32, i32) {
    %c0_i32 = arith.constant 0 : i32
    %c0_i32_0 = arith.constant 0 : i32
    %c0_i32_1 = arith.constant 0 : i32
    return %c0_i32, %c0_i32_0 : i32, i32
  }
  func.func @transform_2(%arg0: i32) -> (i32, i32) {
    %c0_i32 = arith.constant 0 : i32
    %c0_i32_0 = arith.constant 0 : i32
    %c0_i32_1 = arith.constant 0 : i32
    return %c0_i32, %c0_i32_0 : i32, i32
  }
  func.func @transform_3(%arg0: i32) -> (i32, i32) {
    %c0_i32 = arith.constant 0 : i32
    %c0_i32_0 = arith.constant 0 : i32
    return %arg0, %c0_i32 : i32, i32
  }
}

module attributes {stable_mosaic.version = 11 : i64} {
  func.func @_mm_kernel(%arg0: i32, %arg1: memref<64x128xbf16, #tpu.memory_space<vmem>>, %arg2: memref<128x128xbf16, #tpu.memory_space<vmem>>, %arg3: memref<1x128xf32, #tpu.memory_space<vmem>>, %arg4: memref<64x128xf32, #tpu.memory_space<vmem>>) attributes {dimension_semantics = [#tpu.dimension_semantics<parallel>], iteration_bounds = array<i64: 1>, scalar_prefetch = 0 : i64, scratch_operands = 0 : i64, tpu.core_type = #tpu.core_type<tc>, window_params = [{transform_indices = @transform_0, window_bounds = array<i64: 64, 128>}, {pipeline_mode = #tpu.pipeline_mode<synchronous>, transform_indices = @transform_1, window_bounds = array<i64: 128, 128>}, {pipeline_mode = #tpu.pipeline_mode<synchronous>, transform_indices = @transform_2, window_bounds = array<i64: 1, 128>}, {transform_indices = @transform_3, window_bounds = array<i64: 64, 128>}]} {
    %c0 = arith.constant 0 : index
    %c0_0 = arith.constant 0 : index
    %0 = vector.load %arg1[%c0, %c0_0] : memref<64x128xbf16, #tpu.memory_space<vmem>>, vector<64x128xbf16>
    %c0_1 = arith.constant 0 : index
    %c0_2 = arith.constant 0 : index
    %1 = vector.load %arg2[%c0_1, %c0_2] : memref<128x128xbf16, #tpu.memory_space<vmem>>, vector<128x128xbf16>
    %cst = arith.constant dense<0.000000e+00> : vector<64x128xf32>
    %2 = tpu.matmul %0, %1, %cst {dimension_numbers = #tpu.dot_dimension_numbers<[1], [0], [0], [1], [0, 0, 1, 1], [], []>} : vector<64x128xbf16>, vector<128x128xbf16>, vector<64x128xf32> -> vector<64x128xf32>
    %c0_3 = arith.constant 0 : index
    %c0_4 = arith.constant 0 : index
    %3 = vector.load %arg3[%c0_3, %c0_4] : memref<1x128xf32, #tpu.memory_space<vmem>>, vector<1x128xf32>
    %4 = vector.broadcast %3 : vector<1x128xf32> to vector<64x128xf32>
    %5 = arith.addf %2, %4 : vector<64x128xf32>
    %c0_5 = arith.constant 0 : index
    %c0_6 = arith.constant 0 : index
    %6 = vector.load %arg4[%c0_5, %c0_6] : memref<64x128xf32, #tpu.memory_space<vmem>>, vector<64x128xf32>
    tpu.vector_store %arg4[%c0_5, %c0_6], %5 {strides = array<i32>} : memref<64x128xf32, #tpu.memory_space<vmem>>, vector<64x128xf32>,
    return
  }
  func.func @transform_0(%arg0: i32) -> (i32, i32) {
    %c0_i32 = arith.constant 0 : i32
    %c0_i32_0 = arith.constant 0 : i32
    return %arg0, %c0_i32 : i32, i32
  }
  func.func @transform_1(%arg0: i32) -> (i32, i32) {
    %c0_i32 = arith.constant 0 : i32
    %c0_i32_0 = arith.constant 0 : i32
    %c0_i32_1 = arith.constant 0 : i32
    return %c0_i32, %c0_i32_0 : i32, i32
  }
  func.func @transform_2(%arg0: i32) -> (i32, i32) {
    %c0_i32 = arith.constant 0 : i32
    %c0_i32_0 = arith.constant 0 : i32
    %c0_i32_1 = arith.constant 0 : i32
    return %c0_i32, %c0_i32_0 : i32, i32
  }
  func.func @transform_3(%arg0: i32) -> (i32, i32) {
    %c0_i32 = arith.constant 0 : i32
    %c0_i32_0 = arith.constant 0 : i32
    return %arg0, %c0_i32 : i32, i32
  }
}

module attributes {stable_mosaic.version = 11 : i64} {
  func.func @_mm_kernel(%arg0: i32, %arg1: memref<16x128xbf16, #tpu.memory_space<vmem>>, %arg2: memref<128x128xbf16, #tpu.memory_space<vmem>>, %arg3: memref<1x128xf32, #tpu.memory_space<vmem>>, %arg4: memref<16x128xf32, #tpu.memory_space<vmem>>) attributes {dimension_semantics = [#tpu.dimension_semantics<parallel>], iteration_bounds = array<i64: 1>, scalar_prefetch = 0 : i64, scratch_operands = 0 : i64, tpu.core_type = #tpu.core_type<tc>, window_params = [{transform_indices = @transform_0, window_bounds = array<i64: 16, 128>}, {pipeline_mode = #tpu.pipeline_mode<synchronous>, transform_indices = @transform_1, window_bounds = array<i64: 128, 128>}, {pipeline_mode = #tpu.pipeline_mode<synchronous>, transform_indices = @transform_2, window_bounds = array<i64: 1, 128>}, {transform_indices = @transform_3, window_bounds = array<i64: 16, 128>}]} {
    %c0 = arith.constant 0 : index
    %c0_0 = arith.constant 0 : index
    %0 = vector.load %arg1[%c0, %c0_0] : memref<16x128xbf16, #tpu.memory_space<vmem>>, vector<16x128xbf16>
    %c0_1 = arith.constant 0 : index
    %c0_2 = arith.constant 0 : index
    %1 = vector.load %arg2[%c0_1, %c0_2] : memref<128x128xbf16, #tpu.memory_space<vmem>>, vector<128x128xbf16>
    %cst = arith.constant dense<0.000000e+00> : vector<16x128xf32>
    %2 = tpu.matmul %0, %1, %cst {dimension_numbers = #tpu.dot_dimension_numbers<[1], [0], [0], [1], [0, 0, 1, 1], [], []>} : vector<16x128xbf16>, vector<128x128xbf16>, vector<16x128xf32> -> vector<16x128xf32>
    %c0_3 = arith.constant 0 : index
    %c0_4 = arith.constant 0 : index
    %3 = vector.load %arg3[%c0_3, %c0_4] : memref<1x128xf32, #tpu.memory_space<vmem>>, vector<1x128xf32>
    %4 = vector.broadcast %3 : vector<1x128xf32> to vector<16x128xf32>
    %5 = arith.addf %2, %4 : vector<16x128xf32>
    %cst_5 = arith.constant 0.000000e+00 : f32
    %6 = vector.broadcast %cst_5 : f32 to vector<16x128xf32>
    %7 = arith.maximumf %5, %6 : vector<16x128xf32>
    %c0_6 = arith.constant 0 : index
    %c0_7 = arith.constant 0 : index
    %8 = vector.load %arg4[%c0_6, %c0_7] : memref<16x128xf32, #tpu.memory_space<vmem>>, vector<16x128xf32>
    tpu.vector_store %arg4[%c0_6, %c0_7], %7 {strides = array<i32>} : memref<16x128xf32, #tpu.memory_space<vmem>>, vector<16x128xf32>,
    return
  }
  func.func @transform_0(%arg0: i32) -> (i32, i32) {
    %c0_i32 = arith.constant 0 : i32
    %c0_i32_0 = arith.constant 0 : i32
    return %arg0, %c0_i32 : i32, i32
  }
  func.func @transform_1(%arg0: i32) -> (i32, i32) {
    %c0_i32 = arith.constant 0 : i32
    %c0_i32_0 = arith.constant 0 : i32
    %c0_i32_1 = arith.constant 0 : i32
    return %c0_i32, %c0_i32_0 : i32, i32
  }
  func.func @transform_2(%arg0: i32) -> (i32, i32) {
    %c0_i32 = arith.constant 0 : i32
    %c0_i32_0 = arith.constant 0 : i32
    %c0_i32_1 = arith.constant 0 : i32
    return %c0_i32, %c0_i32_0 : i32, i32
  }
  func.func @transform_3(%arg0: i32) -> (i32, i32) {
    %c0_i32 = arith.constant 0 : i32
    %c0_i32_0 = arith.constant 0 : i32
    return %arg0, %c0_i32 : i32, i32
  }
}

module attributes {stable_mosaic.version = 11 : i64} {
  func.func @_mm_kernel(%arg0: i32, %arg1: memref<16x128xbf16, #tpu.memory_space<vmem>>, %arg2: memref<128x128xbf16, #tpu.memory_space<vmem>>, %arg3: memref<1x128xf32, #tpu.memory_space<vmem>>, %arg4: memref<16x128xf32, #tpu.memory_space<vmem>>) attributes {dimension_semantics = [#tpu.dimension_semantics<parallel>], iteration_bounds = array<i64: 1>, scalar_prefetch = 0 : i64, scratch_operands = 0 : i64, tpu.core_type = #tpu.core_type<tc>, window_params = [{transform_indices = @transform_0, window_bounds = array<i64: 16, 128>}, {pipeline_mode = #tpu.pipeline_mode<synchronous>, transform_indices = @transform_1, window_bounds = array<i64: 128, 128>}, {pipeline_mode = #tpu.pipeline_mode<synchronous>, transform_indices = @transform_2, window_bounds = array<i64: 1, 128>}, {transform_indices = @transform_3, window_bounds = array<i64: 16, 128>}]} {
    %c0 = arith.constant 0 : index
    %c0_0 = arith.constant 0 : index
    %0 = vector.load %arg1[%c0, %c0_0] : memref<16x128xbf16, #tpu.memory_space<vmem>>, vector<16x128xbf16>
    %c0_1 = arith.constant 0 : index
    %c0_2 = arith.constant 0 : index
    %1 = vector.load %arg2[%c0_1, %c0_2] : memref<128x128xbf16, #tpu.memory_space<vmem>>, vector<128x128xbf16>
    %cst = arith.constant dense<0.000000e+00> : vector<16x128xf32>
    %2 = tpu.matmul %0, %1, %cst {dimension_numbers = #tpu.dot_dimension_numbers<[1], [0], [0], [1], [0, 0, 1, 1], [], []>} : vector<16x128xbf16>, vector<128x128xbf16>, vector<16x128xf32> -> vector<16x128xf32>
    %c0_3 = arith.constant 0 : index
    %c0_4 = arith.constant 0 : index
    %3 = vector.load %arg3[%c0_3, %c0_4] : memref<1x128xf32, #tpu.memory_space<vmem>>, vector<1x128xf32>
    %4 = vector.broadcast %3 : vector<1x128xf32> to vector<16x128xf32>
    %5 = arith.addf %2, %4 : vector<16x128xf32>
    %c0_5 = arith.constant 0 : index
    %c0_6 = arith.constant 0 : index
    %6 = vector.load %arg4[%c0_5, %c0_6] : memref<16x128xf32, #tpu.memory_space<vmem>>, vector<16x128xf32>
    tpu.vector_store %arg4[%c0_5, %c0_6], %5 {strides = array<i32>} : memref<16x128xf32, #tpu.memory_space<vmem>>, vector<16x128xf32>,
    return
  }
  func.func @transform_0(%arg0: i32) -> (i32, i32) {
    %c0_i32 = arith.constant 0 : i32
    %c0_i32_0 = arith.constant 0 : i32
    return %arg0, %c0_i32 : i32, i32
  }
  func.func @transform_1(%arg0: i32) -> (i32, i32) {
    %c0_i32 = arith.constant 0 : i32
    %c0_i32_0 = arith.constant 0 : i32
    %c0_i32_1 = arith.constant 0 : i32
    return %c0_i32, %c0_i32_0 : i32, i32
  }
  func.func @transform_2(%arg0: i32) -> (i32, i32) {
    %c0_i32 = arith.constant 0 : i32
    %c0_i32_0 = arith.constant 0 : i32
    %c0_i32_1 = arith.constant 0 : i32
    return %c0_i32, %c0_i32_0 : i32, i32
  }
  func.func @transform_3(%arg0: i32) -> (i32, i32) {
    %c0_i32 = arith.constant 0 : i32
    %c0_i32_0 = arith.constant 0 : i32
    return %arg0, %c0_i32 : i32, i32
  }
}

module attributes {stable_mosaic.version = 11 : i64} {
  func.func @_mm_kernel(%arg0: i32, %arg1: memref<16x128xbf16, #tpu.memory_space<vmem>>, %arg2: memref<128x128xbf16, #tpu.memory_space<vmem>>, %arg3: memref<1x128xf32, #tpu.memory_space<vmem>>, %arg4: memref<16x128xf32, #tpu.memory_space<vmem>>) attributes {dimension_semantics = [#tpu.dimension_semantics<parallel>], iteration_bounds = array<i64: 1>, scalar_prefetch = 0 : i64, scratch_operands = 0 : i64, tpu.core_type = #tpu.core_type<tc>, window_params = [{transform_indices = @transform_0, window_bounds = array<i64: 16, 128>}, {pipeline_mode = #tpu.pipeline_mode<synchronous>, transform_indices = @transform_1, window_bounds = array<i64: 128, 128>}, {pipeline_mode = #tpu.pipeline_mode<synchronous>, transform_indices = @transform_2, window_bounds = array<i64: 1, 128>}, {transform_indices = @transform_3, window_bounds = array<i64: 16, 128>}]} {
    %c0 = arith.constant 0 : index
    %c0_0 = arith.constant 0 : index
    %0 = vector.load %arg1[%c0, %c0_0] : memref<16x128xbf16, #tpu.memory_space<vmem>>, vector<16x128xbf16>
    %c0_1 = arith.constant 0 : index
    %c0_2 = arith.constant 0 : index
    %1 = vector.load %arg2[%c0_1, %c0_2] : memref<128x128xbf16, #tpu.memory_space<vmem>>, vector<128x128xbf16>
    %cst = arith.constant dense<0.000000e+00> : vector<16x128xf32>
    %2 = tpu.matmul %0, %1, %cst {dimension_numbers = #tpu.dot_dimension_numbers<[1], [0], [0], [1], [0, 0, 1, 1], [], []>} : vector<16x128xbf16>, vector<128x128xbf16>, vector<16x128xf32> -> vector<16x128xf32>
    %c0_3 = arith.constant 0 : index
    %c0_4 = arith.constant 0 : index
    %3 = vector.load %arg3[%c0_3, %c0_4] : memref<1x128xf32, #tpu.memory_space<vmem>>, vector<1x128xf32>
    %4 = vector.broadcast %3 : vector<1x128xf32> to vector<16x128xf32>
    %5 = arith.addf %2, %4 : vector<16x128xf32>
    %c0_5 = arith.constant 0 : index
    %c0_6 = arith.constant 0 : index
    %6 = vector.load %arg4[%c0_5, %c0_6] : memref<16x128xf32, #tpu.memory_space<vmem>>, vector<16x128xf32>
    tpu.vector_store %arg4[%c0_5, %c0_6], %5 {strides = array<i32>} : memref<16x128xf32, #tpu.memory_space<vmem>>, vector<16x128xf32>,
    return
  }
  func.func @transform_0(%arg0: i32) -> (i32, i32) {
    %c0_i32 = arith.constant 0 : i32
    %c0_i32_0 = arith.constant 0 : i32
    return %arg0, %c0_i32 : i32, i32
  }
  func.func @transform_1(%arg0: i32) -> (i32, i32) {
    %c0_i32 = arith.constant 0 : i32
    %c0_i32_0 = arith.constant 0 : i32
    %c0_i32_1 = arith.constant 0 : i32
    return %c0_i32, %c0_i32_0 : i32, i32
  }
  func.func @transform_2(%arg0: i32) -> (i32, i32) {
    %c0_i32 = arith.constant 0 : i32
    %c0_i32_0 = arith.constant 0 : i32
    %c0_i32_1 = arith.constant 0 : i32
    return %c0_i32, %c0_i32_0 : i32, i32
  }
  func.func @transform_3(%arg0: i32) -> (i32, i32) {
    %c0_i32 = arith.constant 0 : i32
    %c0_i32_0 = arith.constant 0 : i32
    return %arg0, %c0_i32 : i32, i32
  }
}

module attributes {stable_mosaic.version = 11 : i64} {
  func.func @_mm_kernel(%arg0: i32, %arg1: memref<128x256xbf16, #tpu.memory_space<vmem>>, %arg2: memref<256x128xbf16, #tpu.memory_space<vmem>>, %arg3: memref<1x128xf32, #tpu.memory_space<vmem>>, %arg4: memref<128x128xf32, #tpu.memory_space<vmem>>) attributes {dimension_semantics = [#tpu.dimension_semantics<parallel>], iteration_bounds = array<i64: 2>, scalar_prefetch = 0 : i64, scratch_operands = 0 : i64, tpu.core_type = #tpu.core_type<tc>, window_params = [{transform_indices = @transform_0, window_bounds = array<i64: 128, 256>}, {pipeline_mode = #tpu.pipeline_mode<synchronous>, transform_indices = @transform_1, window_bounds = array<i64: 256, 128>}, {pipeline_mode = #tpu.pipeline_mode<synchronous>, transform_indices = @transform_2, window_bounds = array<i64: 1, 128>}, {transform_indices = @transform_3, window_bounds = array<i64: 128, 128>}]} {
    %c0 = arith.constant 0 : index
    %c0_0 = arith.constant 0 : index
    %0 = vector.load %arg1[%c0, %c0_0] : memref<128x256xbf16, #tpu.memory_space<vmem>>, vector<128x256xbf16>
    %c0_1 = arith.constant 0 : index
    %c0_2 = arith.constant 0 : index
    %1 = vector.load %arg2[%c0_1, %c0_2] : memref<256x128xbf16, #tpu.memory_space<vmem>>, vector<256x128xbf16>
    %cst = arith.constant dense<0.000000e+00> : vector<128x128xf32>
    %2 = tpu.matmul %0, %1, %cst {dimension_numbers = #tpu.dot_dimension_numbers<[1], [0], [0], [1], [0, 0, 1, 1], [], []>} : vector<128x256xbf16>, vector<256x128xbf16>, vector<128x128xf32> -> vector<128x128xf32>
    %c0_3 = arith.constant 0 : index
    %c0_4 = arith.constant 0 : index
    %3 = vector.load %arg3[%c0_3, %c0_4] : memref<1x128xf32, #tpu.memory_space<vmem>>, vector<1x128xf32>
    %4 = vector.broadcast %3 : vector<1x128xf32> to vector<128x128xf32>
    %5 = arith.addf %2, %4 : vector<128x128xf32>
    %cst_5 = arith.constant 0.000000e+00 : f32
    %6 = vector.broadcast %cst_5 : f32 to vector<128x128xf32>
    %7 = arith.maximumf %5, %6 : vector<128x128xf32>
    %c0_6 = arith.constant 0 : index
    %c0_7 = arith.constant 0 : index
    %8 = vector.load %arg4[%c0_6, %c0_7] : memref<128x128xf32, #tpu.memory_space<vmem>>, vector<128x128xf32>
    tpu.vector_store %arg4[%c0_6, %c0_7], %7 {strides = array<i32>} : memref<128x128xf32, #tpu.memory_space<vmem>>, vector<128x128xf32>,
    return
  }
  func.func @transform_0(%arg0: i32) -> (i32, i32) {
    %c0_i32 = arith.constant 0 : i32
    %c0_i32_0 = arith.constant 0 : i32
    return %arg0, %c0_i32 : i32, i32
  }
  func.func @transform_1(%arg0: i32) -> (i32, i32) {
    %c0_i32 = arith.constant 0 : i32
    %c0_i32_0 = arith.constant 0 : i32
    %c0_i32_1 = arith.constant 0 : i32
    return %c0_i32, %c0_i32_0 : i32, i32
  }
  func.func @transform_2(%arg0: i32) -> (i32, i32) {
    %c0_i32 = arith.constant 0 : i32
    %c0_i32_0 = arith.constant 0 : i32
    %c0_i32_1 = arith.constant 0 : i32
    return %c0_i32, %c0_i32_0 : i32, i32
  }
  func.func @transform_3(%arg0: i32) -> (i32, i32) {
    %c0_i32 = arith.constant 0 : i32
    %c0_i32_0 = arith.constant 0 : i32
    return %arg0, %c0_i32 : i32, i32
  }
}

module attributes {stable_mosaic.version = 11 : i64} {
  func.func @_mm_kernel(%arg0: i32, %arg1: memref<128x128xbf16, #tpu.memory_space<vmem>>, %arg2: memref<128x128xbf16, #tpu.memory_space<vmem>>, %arg3: memref<1x128xf32, #tpu.memory_space<vmem>>, %arg4: memref<128x128xf32, #tpu.memory_space<vmem>>) attributes {dimension_semantics = [#tpu.dimension_semantics<parallel>], iteration_bounds = array<i64: 2>, scalar_prefetch = 0 : i64, scratch_operands = 0 : i64, tpu.core_type = #tpu.core_type<tc>, window_params = [{transform_indices = @transform_0, window_bounds = array<i64: 128, 128>}, {pipeline_mode = #tpu.pipeline_mode<synchronous>, transform_indices = @transform_1, window_bounds = array<i64: 128, 128>}, {pipeline_mode = #tpu.pipeline_mode<synchronous>, transform_indices = @transform_2, window_bounds = array<i64: 1, 128>}, {transform_indices = @transform_3, window_bounds = array<i64: 128, 128>}]} {
    %c0 = arith.constant 0 : index
    %c0_0 = arith.constant 0 : index
    %0 = vector.load %arg1[%c0, %c0_0] : memref<128x128xbf16, #tpu.memory_space<vmem>>, vector<128x128xbf16>
    %c0_1 = arith.constant 0 : index
    %c0_2 = arith.constant 0 : index
    %1 = vector.load %arg2[%c0_1, %c0_2] : memref<128x128xbf16, #tpu.memory_space<vmem>>, vector<128x128xbf16>
    %cst = arith.constant dense<0.000000e+00> : vector<128x128xf32>
    %2 = tpu.matmul %0, %1, %cst {dimension_numbers = #tpu.dot_dimension_numbers<[1], [0], [0], [1], [0, 0, 1, 1], [], []>} : vector<128x128xbf16>, vector<128x128xbf16>, vector<128x128xf32> -> vector<128x128xf32>
    %c0_3 = arith.constant 0 : index
    %c0_4 = arith.constant 0 : index
    %3 = vector.load %arg3[%c0_3, %c0_4] : memref<1x128xf32, #tpu.memory_space<vmem>>, vector<1x128xf32>
    %4 = vector.broadcast %3 : vector<1x128xf32> to vector<128x128xf32>
    %5 = arith.addf %2, %4 : vector<128x128xf32>
    %cst_5 = arith.constant 0.000000e+00 : f32
    %6 = vector.broadcast %cst_5 : f32 to vector<128x128xf32>
    %7 = arith.maximumf %5, %6 : vector<128x128xf32>
    %c0_6 = arith.constant 0 : index
    %c0_7 = arith.constant 0 : index
    %8 = vector.load %arg4[%c0_6, %c0_7] : memref<128x128xf32, #tpu.memory_space<vmem>>, vector<128x128xf32>
    tpu.vector_store %arg4[%c0_6, %c0_7], %7 {strides = array<i32>} : memref<128x128xf32, #tpu.memory_space<vmem>>, vector<128x128xf32>,
    return
  }
  func.func @transform_0(%arg0: i32) -> (i32, i32) {
    %c0_i32 = arith.constant 0 : i32
    %c0_i32_0 = arith.constant 0 : i32
    return %arg0, %c0_i32 : i32, i32
  }
  func.func @transform_1(%arg0: i32) -> (i32, i32) {
    %c0_i32 = arith.constant 0 : i32
    %c0_i32_0 = arith.constant 0 : i32
    %c0_i32_1 = arith.constant 0 : i32
    return %c0_i32, %c0_i32_0 : i32, i32
  }
  func.func @transform_2(%arg0: i32) -> (i32, i32) {
    %c0_i32 = arith.constant 0 : i32
    %c0_i32_0 = arith.constant 0 : i32
    %c0_i32_1 = arith.constant 0 : i32
    return %c0_i32, %c0_i32_0 : i32, i32
  }
  func.func @transform_3(%arg0: i32) -> (i32, i32) {
    %c0_i32 = arith.constant 0 : i32
    %c0_i32_0 = arith.constant 0 : i32
    return %arg0, %c0_i32 : i32, i32
  }
}

module attributes {stable_mosaic.version = 11 : i64} {
  func.func @_mm_kernel(%arg0: i32, %arg1: memref<128x128xbf16, #tpu.memory_space<vmem>>, %arg2: memref<128x128xbf16, #tpu.memory_space<vmem>>, %arg3: memref<1x128xf32, #tpu.memory_space<vmem>>, %arg4: memref<128x128xf32, #tpu.memory_space<vmem>>) attributes {dimension_semantics = [#tpu.dimension_semantics<parallel>], iteration_bounds = array<i64: 2>, scalar_prefetch = 0 : i64, scratch_operands = 0 : i64, tpu.core_type = #tpu.core_type<tc>, window_params = [{transform_indices = @transform_0, window_bounds = array<i64: 128, 128>}, {pipeline_mode = #tpu.pipeline_mode<synchronous>, transform_indices = @transform_1, window_bounds = array<i64: 128, 128>}, {pipeline_mode = #tpu.pipeline_mode<synchronous>, transform_indices = @transform_2, window_bounds = array<i64: 1, 128>}, {transform_indices = @transform_3, window_bounds = array<i64: 128, 128>}]} {
    %c0 = arith.constant 0 : index
    %c0_0 = arith.constant 0 : index
    %0 = vector.load %arg1[%c0, %c0_0] : memref<128x128xbf16, #tpu.memory_space<vmem>>, vector<128x128xbf16>
    %c0_1 = arith.constant 0 : index
    %c0_2 = arith.constant 0 : index
    %1 = vector.load %arg2[%c0_1, %c0_2] : memref<128x128xbf16, #tpu.memory_space<vmem>>, vector<128x128xbf16>
    %cst = arith.constant dense<0.000000e+00> : vector<128x128xf32>
    %2 = tpu.matmul %0, %1, %cst {dimension_numbers = #tpu.dot_dimension_numbers<[1], [0], [0], [1], [0, 0, 1, 1], [], []>} : vector<128x128xbf16>, vector<128x128xbf16>, vector<128x128xf32> -> vector<128x128xf32>
    %c0_3 = arith.constant 0 : index
    %c0_4 = arith.constant 0 : index
    %3 = vector.load %arg3[%c0_3, %c0_4] : memref<1x128xf32, #tpu.memory_space<vmem>>, vector<1x128xf32>
    %4 = vector.broadcast %3 : vector<1x128xf32> to vector<128x128xf32>
    %5 = arith.addf %2, %4 : vector<128x128xf32>
    %c0_5 = arith.constant 0 : index
    %c0_6 = arith.constant 0 : index
    %6 = vector.load %arg4[%c0_5, %c0_6] : memref<128x128xf32, #tpu.memory_space<vmem>>, vector<128x128xf32>
    tpu.vector_store %arg4[%c0_5, %c0_6], %5 {strides = array<i32>} : memref<128x128xf32, #tpu.memory_space<vmem>>, vector<128x128xf32>,
    return
  }
  func.func @transform_0(%arg0: i32) -> (i32, i32) {
    %c0_i32 = arith.constant 0 : i32
    %c0_i32_0 = arith.constant 0 : i32
    return %arg0, %c0_i32 : i32, i32
  }
  func.func @transform_1(%arg0: i32) -> (i32, i32) {
    %c0_i32 = arith.constant 0 : i32
    %c0_i32_0 = arith.constant 0 : i32
    %c0_i32_1 = arith.constant 0 : i32
    return %c0_i32, %c0_i32_0 : i32, i32
  }
  func.func @transform_2(%arg0: i32) -> (i32, i32) {
    %c0_i32 = arith.constant 0 : i32
    %c0_i32_0 = arith.constant 0 : i32
    %c0_i32_1 = arith.constant 0 : i32
    return %c0_i32, %c0_i32_0 : i32, i32
  }
  func.func @transform_3(%arg0: i32) -> (i32, i32) {
    %c0_i32 = arith.constant 0 : i32
    %c0_i32_0 = arith.constant 0 : i32
    return %arg0, %c0_i32 : i32, i32
  }
}

module attributes {stable_mosaic.version = 11 : i64} {
  func.func @_mm_kernel(%arg0: i32, %arg1: memref<128x128xbf16, #tpu.memory_space<vmem>>, %arg2: memref<128x128xbf16, #tpu.memory_space<vmem>>, %arg3: memref<1x128xf32, #tpu.memory_space<vmem>>, %arg4: memref<128x128xf32, #tpu.memory_space<vmem>>) attributes {dimension_semantics = [#tpu.dimension_semantics<parallel>], iteration_bounds = array<i64: 8>, scalar_prefetch = 0 : i64, scratch_operands = 0 : i64, tpu.core_type = #tpu.core_type<tc>, window_params = [{transform_indices = @transform_0, window_bounds = array<i64: 128, 128>}, {pipeline_mode = #tpu.pipeline_mode<synchronous>, transform_indices = @transform_1, window_bounds = array<i64: 128, 128>}, {pipeline_mode = #tpu.pipeline_mode<synchronous>, transform_indices = @transform_2, window_bounds = array<i64: 1, 128>}, {transform_indices = @transform_3, window_bounds = array<i64: 128, 128>}]} {
    %c0 = arith.constant 0 : index
    %c0_0 = arith.constant 0 : index
    %0 = vector.load %arg1[%c0, %c0_0] : memref<128x128xbf16, #tpu.memory_space<vmem>>, vector<128x128xbf16>
    %c0_1 = arith.constant 0 : index
    %c0_2 = arith.constant 0 : index
    %1 = vector.load %arg2[%c0_1, %c0_2] : memref<128x128xbf16, #tpu.memory_space<vmem>>, vector<128x128xbf16>
    %cst = arith.constant dense<0.000000e+00> : vector<128x128xf32>
    %2 = tpu.matmul %0, %1, %cst {dimension_numbers = #tpu.dot_dimension_numbers<[1], [0], [0], [1], [0, 0, 1, 1], [], []>} : vector<128x128xbf16>, vector<128x128xbf16>, vector<128x128xf32> -> vector<128x128xf32>
    %c0_3 = arith.constant 0 : index
    %c0_4 = arith.constant 0 : index
    %3 = vector.load %arg3[%c0_3, %c0_4] : memref<1x128xf32, #tpu.memory_space<vmem>>, vector<1x128xf32>
    %4 = vector.broadcast %3 : vector<1x128xf32> to vector<128x128xf32>
    %5 = arith.addf %2, %4 : vector<128x128xf32>
    %cst_5 = arith.constant 0.000000e+00 : f32
    %6 = vector.broadcast %cst_5 : f32 to vector<128x128xf32>
    %7 = arith.maximumf %5, %6 : vector<128x128xf32>
    %c0_6 = arith.constant 0 : index
    %c0_7 = arith.constant 0 : index
    %8 = vector.load %arg4[%c0_6, %c0_7] : memref<128x128xf32, #tpu.memory_space<vmem>>, vector<128x128xf32>
    tpu.vector_store %arg4[%c0_6, %c0_7], %7 {strides = array<i32>} : memref<128x128xf32, #tpu.memory_space<vmem>>, vector<128x128xf32>,
    return
  }
  func.func @transform_0(%arg0: i32) -> (i32, i32) {
    %c0_i32 = arith.constant 0 : i32
    %c0_i32_0 = arith.constant 0 : i32
    return %arg0, %c0_i32 : i32, i32
  }
  func.func @transform_1(%arg0: i32) -> (i32, i32) {
    %c0_i32 = arith.constant 0 : i32
    %c0_i32_0 = arith.constant 0 : i32
    %c0_i32_1 = arith.constant 0 : i32
    return %c0_i32, %c0_i32_0 : i32, i32
  }
  func.func @transform_2(%arg0: i32) -> (i32, i32) {
    %c0_i32 = arith.constant 0 : i32
    %c0_i32_0 = arith.constant 0 : i32
    %c0_i32_1 = arith.constant 0 : i32
    return %c0_i32, %c0_i32_0 : i32, i32
  }
  func.func @transform_3(%arg0: i32) -> (i32, i32) {
    %c0_i32 = arith.constant 0 : i32
    %c0_i32_0 = arith.constant 0 : i32
    return %arg0, %c0_i32 : i32, i32
  }
}

module attributes {stable_mosaic.version = 11 : i64} {
  func.func @_mm_kernel(%arg0: i32, %arg1: memref<128x128xbf16, #tpu.memory_space<vmem>>, %arg2: memref<128x128xbf16, #tpu.memory_space<vmem>>, %arg3: memref<1x128xf32, #tpu.memory_space<vmem>>, %arg4: memref<128x128xf32, #tpu.memory_space<vmem>>) attributes {dimension_semantics = [#tpu.dimension_semantics<parallel>], iteration_bounds = array<i64: 8>, scalar_prefetch = 0 : i64, scratch_operands = 0 : i64, tpu.core_type = #tpu.core_type<tc>, window_params = [{transform_indices = @transform_0, window_bounds = array<i64: 128, 128>}, {pipeline_mode = #tpu.pipeline_mode<synchronous>, transform_indices = @transform_1, window_bounds = array<i64: 128, 128>}, {pipeline_mode = #tpu.pipeline_mode<synchronous>, transform_indices = @transform_2, window_bounds = array<i64: 1, 128>}, {transform_indices = @transform_3, window_bounds = array<i64: 128, 128>}]} {
    %c0 = arith.constant 0 : index
    %c0_0 = arith.constant 0 : index
    %0 = vector.load %arg1[%c0, %c0_0] : memref<128x128xbf16, #tpu.memory_space<vmem>>, vector<128x128xbf16>
    %c0_1 = arith.constant 0 : index
    %c0_2 = arith.constant 0 : index
    %1 = vector.load %arg2[%c0_1, %c0_2] : memref<128x128xbf16, #tpu.memory_space<vmem>>, vector<128x128xbf16>
    %cst = arith.constant dense<0.000000e+00> : vector<128x128xf32>
    %2 = tpu.matmul %0, %1, %cst {dimension_numbers = #tpu.dot_dimension_numbers<[1], [0], [0], [1], [0, 0, 1, 1], [], []>} : vector<128x128xbf16>, vector<128x128xbf16>, vector<128x128xf32> -> vector<128x128xf32>
    %c0_3 = arith.constant 0 : index
    %c0_4 = arith.constant 0 : index
    %3 = vector.load %arg3[%c0_3, %c0_4] : memref<1x128xf32, #tpu.memory_space<vmem>>, vector<1x128xf32>
    %4 = vector.broadcast %3 : vector<1x128xf32> to vector<128x128xf32>
    %5 = arith.addf %2, %4 : vector<128x128xf32>
    %c0_5 = arith.constant 0 : index
    %c0_6 = arith.constant 0 : index
    %6 = vector.load %arg4[%c0_5, %c0_6] : memref<128x128xf32, #tpu.memory_space<vmem>>, vector<128x128xf32>
    tpu.vector_store %arg4[%c0_5, %c0_6], %5 {strides = array<i32>} : memref<128x128xf32, #tpu.memory_space<vmem>>, vector<128x128xf32>,
    return
  }
  func.func @transform_0(%arg0: i32) -> (i32, i32) {
    %c0_i32 = arith.constant 0 : i32
    %c0_i32_0 = arith.constant 0 : i32
    return %arg0, %c0_i32 : i32, i32
  }
  func.func @transform_1(%arg0: i32) -> (i32, i32) {
    %c0_i32 = arith.constant 0 : i32
    %c0_i32_0 = arith.constant 0 : i32
    %c0_i32_1 = arith.constant 0 : i32
    return %c0_i32, %c0_i32_0 : i32, i32
  }
  func.func @transform_2(%arg0: i32) -> (i32, i32) {
    %c0_i32 = arith.constant 0 : i32
    %c0_i32_0 = arith.constant 0 : i32
    %c0_i32_1 = arith.constant 0 : i32
    return %c0_i32, %c0_i32_0 : i32, i32
  }
  func.func @transform_3(%arg0: i32) -> (i32, i32) {
    %c0_i32 = arith.constant 0 : i32
    %c0_i32_0 = arith.constant 0 : i32
    return %arg0, %c0_i32 : i32, i32
  }
}

</mosaic_0001>

<llo_original>
// kernel: run.199
$region0: #{run.199}
  #allocation0 [shape = 'u32[]', space=smem, size = 0x4, offset = 0x4, fixed_abs, tag = 'smem constant byte address 0x4 - core index']
  #allocation1 [shape = 'u32[144,128]{1,0:T(1,128)}', space=vmem, size = 0x12000, scoped, tag = 'internal scratch']
  %s0 = inlined_call_operand.vmem [shape: bf16[64,128], index: 0, kind: input, shape index: {}]
  %s1 = inlined_call_operand.hbm [shape: bf16[128,128], index: 1, kind: input, shape index: {}]
  %s2 = inlined_call_operand.vmem [shape: f32[1,128], index: 2, kind: input, shape index: {}]
  %s3 = inlined_call_operand.vmem [shape: f32[64,128], index: 3, kind: output, shape index: {}]
  %s4 = sld [smem:[#allocation0]]
  $region26: #{run.199} parent=0
    _
  %s6 = ssub.s32 1, %s4
  %s7 = scalar_select 0, %s6, %s4
  $region1: #{run.199} parent=0
    #allocation2 [shape = 'u8[32768]{0}', space=vmem, size = 0x8000, scoped, tag = 'input window, operand 1, single buffered']
    #allocation3 [shape = 's32[1]{0}', space=sflag, size = 0x4, scoped, tag = 'scoped memory for run.199']
    %8 = vsyncpa [#allocation3], 0
    // Predicated region
    $region2: #{run.199} parent=1 // pred_check
      _
    $region3: #{run.199} parent=1 // pred_check_branch
      %10 = sbr.rel (0) target = $region5
    $region4: #{run.199} parent=1 // pred_region
      _
    $region5: #{run.199} parent=1 // pred_fallthru
      _
    // Predicated region
    $region6: #{run.199} parent=1 // pred_check
      _
    $region7: #{run.199} parent=1 // pred_check_branch
      %12 = sbr.rel (0) target = $region9
    $region8: #{run.199} parent=1 // pred_region
      %s14 = ssub.s32 1024, 1024
      %15 = vsyncadd [#allocation3], %s14
      %s16 = sshll.u32 [#allocation2], 4
      %s17 = int_to_ptr.vmem [resolvable:$true] %s16
      %22 = dma.hbm_to_vmem [thread:$0]  %s1, 1024, %s17, [#allocation3], 64, 64, 4
    $region9: #{run.199} parent=1 // pred_fallthru
      _
    // Predicated region
    $region10: #{run.199} parent=1 // pred_check
      _
    $region11: #{run.199} parent=1 // pred_check_branch
      %24 = sbr.rel (0) target = $region13
    $region12: #{run.199} parent=1 // pred_region
      _
    $region13: #{run.199} parent=1 // pred_fallthru
      _
    // Predicated region
    $region14: #{run.199} parent=1 // pred_check
      _
    $region15: #{run.199} parent=1 // pred_check_branch
      %26 = sbr.rel (0) target = $region17
    $region16: #{run.199} parent=1 // pred_region
      %27 = dma.done [#allocation3], 1024
    $region17: #{run.199} parent=1 // pred_fallthru
      _
    %v29 = vld [vmem:[%s0] sm:$0xf]
    %v30 = vld [vmem:[%s0 + $0x4] sm:$0xf]
    %v31 = vld [vmem:[%s0 + $0x8] sm:$0xf]
    %v32 = vld [vmem:[%s0 + $0xc] sm:$0xf]
    %v33 = vld [vmem:[%s0 + $0x10] sm:$0xf]
    %v34 = vld [vmem:[%s0 + $0x14] sm:$0xf]
    %v35 = vld [vmem:[%s0 + $0x18] sm:$0xf]
    %v36 = vld [vmem:[%s0 + $0x1c] sm:$0xf]
    %v37 = vld [vmem:[#allocation2] sm:$0xf]
    %v38 = vld [vmem:[#allocation2 + $0x4] sm:$0xf]
    %v39 = vld [vmem:[#allocation2 + $0x8] sm:$0xf]
    %v40 = vld [vmem:[#allocation2 + $0xc] sm:$0xf]
    %v41 = vld [vmem:[#allocation2 + $0x10] sm:$0xf]
    %v42 = vld [vmem:[#allocation2 + $0x14] sm:$0xf]
    %v43 = vld [vmem:[#allocation2 + $0x18] sm:$0xf]
    %v44 = vld [vmem:[#allocation2 + $0x1c] sm:$0xf]
    %v45 = vld [vmem:[#allocation2 + $0x20] sm:$0xf]
    %v46 = vld [vmem:[#allocation2 + $0x24] sm:$0xf]
    %v47 = vld [vmem:[#allocation2 + $0x28] sm:$0xf]
    %v48 = vld [vmem:[#allocation2 + $0x2c] sm:$0xf]
    %v49 = vld [vmem:[#allocation2 + $0x30] sm:$0xf]
    %v50 = vld [vmem:[#allocation2 + $0x34] sm:$0xf]
    %v51 = vld [vmem:[#allocation2 + $0x38] sm:$0xf]
    %v52 = vld [vmem:[#allocation2 + $0x3c] sm:$0xf]
    %v53 = vld [vmem:[%s2] sm:$0x1]
    %v55 = vlaneseq
    %v56 = vshrl.u32 %v55, 7
    %v57 = vsub.s32 0, %v56
    %v58 = vrot.slane %v53, %v57
    %v68 = vunpack.c.l.b16 %v29
    %v69 = vunpack.c.l.b16 %v30
    %v70 = vunpack.c.l.b16 %v31
    %v71 = vunpack.c.l.b16 %v32
    %v72 = vunpack.c.l.b16 %v33
    %v73 = vunpack.c.l.b16 %v34
    %v74 = vunpack.c.l.b16 %v35
    %v75 = vunpack.c.l.b16 %v36
    %v76 = vpack.c.b16 %v69, %v68
    %v77 = vpack.c.b16 %v71, %v70
    %v78 = vpack.c.b16 %v73, %v72
    %v79 = vpack.c.b16 %v75, %v74
    %v100 = vunpack.c.l.b16 %v37
    %v101 = vunpack.c.l.b16 %v38
    %v102 = vunpack.c.l.b16 %v39
    %v103 = vunpack.c.l.b16 %v40
    %v104 = vunpack.c.l.b16 %v41
    %v105 = vunpack.c.l.b16 %v42
    %v106 = vunpack.c.l.b16 %v43
    %v107 = vunpack.c.l.b16 %v44
    %v108 = vunpack.c.l.b16 %v45
    %v109 = vunpack.c.l.b16 %v46
    %v110 = vunpack.c.l.b16 %v47
    %v111 = vunpack.c.l.b16 %v48
    %v112 = vunpack.c.l.b16 %v49
    %v113 = vunpack.c.l.b16 %v50
    %v114 = vunpack.c.l.b16 %v51
    %v115 = vunpack.c.l.b16 %v52
    %v116 = vpack.c.b16 %v101, %v100
    %v117 = vpack.c.b16 %v103, %v102
    %v118 = vpack.c.b16 %v105, %v104
    %v119 = vpack.c.b16 %v107, %v106
    %v120 = vpack.c.b16 %v109, %v108
    %v121 = vpack.c.b16 %v111, %v110
    %v122 = vpack.c.b16 %v113, %v112
    %v123 = vpack.c.b16 %v115, %v114
    %132 = vmatprep.subr.bf16.mxu0 0
    %133 = vmatpush1.bf16.msra.mxu0 %v123
    %134 = vmatprep.subr.bf16.mxu0 0
    %135 = vmatpush1.bf16.msra.mxu0 %v122
    %136 = vmatprep.subr.bf16.mxu0 0
    %137 = vmatpush1.bf16.msra.mxu0 %v121
    %138 = vmatprep.subr.bf16.mxu0 0
    %139 = vmatpush1.bf16.msra.mxu0 %v120
    %140 = vmatprep.subr.bf16.mxu0 0
    %141 = vmatpush1.bf16.msra.mxu0 %v119
    %142 = vmatprep.subr.bf16.mxu0 0
    %143 = vmatpush1.bf16.msra.mxu0 %v118
    %144 = vmatprep.subr.bf16.mxu0 0
    %145 = vmatpush1.bf16.msra.mxu0 %v117
    %146 = vmatprep.subr.bf16.mxu0 0
    %147 = vmatpush1.bf16.msra.mxu0 %v116
    %148 = vmatprep.subr.bf16.mxu0 0
    %149 = vmatpush2.bf16.msra.mxu0 0
    %150 = vmatprep.subr.bf16.mxu0 0
    %151 = vmatpush2.bf16.msra.mxu0 0
    %152 = vmatprep.subr.bf16.mxu0 0
    %153 = vmatpush2.bf16.msra.mxu0 0
    %154 = vmatprep.subr.bf16.mxu0 0
    %155 = vmatpush2.bf16.msra.mxu0 0
    %156 = vmatprep.subr.bf16.mxu0 0
    %157 = vmatpush2.bf16.msra.mxu0 0
    %158 = vmatprep.subr.bf16.mxu0 0
    %159 = vmatpush2.bf16.msra.mxu0 0
    %160 = vmatprep.subr.bf16.mxu0 0
    %161 = vmatpush2.bf16.msra.mxu0 0
    %162 = vmatprep.subr.bf16.mxu0 0
    %163 = vmatpush2.bf16.msra.mxu0 0
    %164 = vmatprep.mubr.bf16.mxu0 0
    %165 = vmatmul.mubr.bf16.gmra.mxu0 %v76
    %v166 = vpop.f32.mrf.mxu0
    %v167 = vadd.f32 %v58, %v166
    %v168 = vpop.f32.mrf.mxu0
    %v169 = vpop.f32.mrf.mxu0
    %v170 = vadd.f32 %v58, %v169
    %v171 = vpop.f32.mrf.mxu0
    %172 = vmatprep.mubr.bf16.mxu0 0
    %173 = vmatmul.mubr.bf16.gmra.mxu0 %v77
    %v174 = vpop.f32.mrf.mxu0
    %v175 = vadd.f32 %v58, %v174
    %v176 = vpop.f32.mrf.mxu0
    %v177 = vpop.f32.mrf.mxu0
    %v178 = vadd.f32 %v58, %v177
    %v179 = vpop.f32.mrf.mxu0
    %180 = vmatprep.mubr.bf16.mxu0 0
    %181 = vmatmul.mubr.bf16.gmra.mxu0 %v78
    %v182 = vpop.f32.mrf.mxu0
    %v183 = vadd.f32 %v58, %v182
    %v184 = vpop.f32.mrf.mxu0
    %v185 = vpop.f32.mrf.mxu0
    %v186 = vadd.f32 %v58, %v185
    %v187 = vpop.f32.mrf.mxu0
    %188 = vmatprep.mubr.bf16.mxu0 0
    %189 = vmatmul.mubr.bf16.gmra.mxu0 %v79
    %v190 = vpop.f32.mrf.mxu0
    %v191 = vadd.f32 %v58, %v190
    %v192 = vpop.f32.mrf.mxu0
    %v193 = vpop.f32.mrf.mxu0
    %v194 = vadd.f32 %v58, %v193
    %v195 = vpop.f32.mrf.mxu0
    %196 = vdwg.mxu0
    %v197 = vmax.f32 %v167, 0.0
    %v198 = vmax.f32 %v170, 0.0
    %v199 = vmax.f32 %v175, 0.0
    %v200 = vmax.f32 %v178, 0.0
    %v201 = vmax.f32 %v183, 0.0
    %v202 = vmax.f32 %v186, 0.0
    %v203 = vmax.f32 %v191, 0.0
    %v204 = vmax.f32 %v194, 0.0
    %205 = vst [vmem:[%s3] sm:$0xff] %v197
    %206 = vst [vmem:[%s3 + $0x8] sm:$0xff] %v198
    %207 = vst [vmem:[%s3 + $0x10] sm:$0xff] %v199
    %208 = vst [vmem:[%s3 + $0x18] sm:$0xff] %v200
    %209 = vst [vmem:[%s3 + $0x20] sm:$0xff] %v201
    %210 = vst [vmem:[%s3 + $0x28] sm:$0xff] %v202
    %211 = vst [vmem:[%s3 + $0x30] sm:$0xff] %v203
    %212 = vst [vmem:[%s3 + $0x38] sm:$0xff] %v204
    // Predicated region
    $region18: #{run.199} parent=1 // pred_check
      _
    $region19: #{run.199} parent=1 // pred_check_branch
      %214 = sbr.rel (0) target = $region21
    $region20: #{run.199} parent=1 // pred_region
      _
    $region21: #{run.199} parent=1 // pred_fallthru
      _
    // Predicated region
    $region22: #{run.199} parent=1 // pred_check
      _
    $region23: #{run.199} parent=1 // pred_check_branch
      %216 = sbr.rel (0) target = $region25
    $region24: #{run.199} parent=1 // pred_region
      _
    $region25: #{run.199} parent=1 // pred_fallthru
      _
    %217 = vsyncpa [#allocation3], 1

// kernel: run.198
$region0: #{run.198}
  #allocation0 [shape = 'u32[]', space=smem, size = 0x4, offset = 0x4, fixed_abs, tag = 'smem constant byte address 0x4 - core index']
  #allocation1 [shape = 'u32[144,128]{1,0:T(1,128)}', space=vmem, size = 0x12000, scoped, tag = 'internal scratch']
  %s0 = inlined_call_operand.vmem [shape: bf16[64,256], index: 0, kind: input, shape index: {}]
  %s1 = inlined_call_operand.hbm [shape: bf16[256,128], index: 1, kind: input, shape index: {}]
  %s2 = inlined_call_operand.hbm [shape: f32[1,128], index: 2, kind: input, shape index: {}]
  %s3 = inlined_call_operand.vmem [shape: f32[64,128], index: 3, kind: output, shape index: {}]
  %s4 = sld [smem:[#allocation0]]
  $region30: #{run.198} parent=0
    _
  %s6 = ssub.s32 1, %s4
  %s7 = scalar_select 0, %s6, %s4
  $region1: #{run.198} parent=0
    #allocation2 [shape = 'u8[65536]{0}', space=vmem, size = 0x10000, scoped, tag = 'input window, operand 1, single buffered']
    #allocation3 [shape = 's32[1]{0}', space=sflag, size = 0x4, scoped, tag = 'scoped memory for run.198']
    #allocation4 [shape = 'u8[512]{0}', space=vmem, size = 0x400, scoped, tag = 'input window, operand 2, single buffered']
    #allocation5 [shape = 's32[1]{0}', space=sflag, size = 0x4, scoped, tag = 'scoped memory for run.198']
    %8 = vsyncpa [#allocation3], 0
    %9 = vsyncpa [#allocation5], 0
    // Predicated region
    $region2: #{run.198} parent=1 // pred_check
      _
    $region3: #{run.198} parent=1 // pred_check_branch
      %11 = sbr.rel (0) target = $region5
    $region4: #{run.198} parent=1 // pred_region
      _
    $region5: #{run.198} parent=1 // pred_fallthru
      _
    // Predicated region
    $region6: #{run.198} parent=1 // pred_check
      _
    $region7: #{run.198} parent=1 // pred_check_branch
      %13 = sbr.rel (0) target = $region9
    $region8: #{run.198} parent=1 // pred_region
      %s15 = ssub.s32 2048, 2048
      %16 = vsyncadd [#allocation3], %s15
      %s17 = sshll.u32 [#allocation2], 4
      %s18 = int_to_ptr.vmem [resolvable:$true] %s17
      %23 = dma.hbm_to_vmem [thread:$0]  %s1, 2048, %s18, [#allocation3], 64, 64, 4
    $region9: #{run.198} parent=1 // pred_fallthru
      _
    // Predicated region
    $region10: #{run.198} parent=1 // pred_check
      _
    $region11: #{run.198} parent=1 // pred_check_branch
      %25 = sbr.rel (0) target = $region13
    $region12: #{run.198} parent=1 // pred_region
      %s27 = ssub.s32 16, 16
      %28 = vsyncadd [#allocation5], %s27
      %s30 = sshll.u32 [#allocation4], 4
      %s31 = int_to_ptr.vmem [resolvable:$true] %s30
      %33 = dma.hbm_to_vmem [thread:$0]  %s2, 16, %s31, [#allocation5]
    $region13: #{run.198} parent=1 // pred_fallthru
      _
    // Predicated region
    $region14: #{run.198} parent=1 // pred_check
      _
    $region15: #{run.198} parent=1 // pred_check_branch
      %35 = sbr.rel (0) target = $region17
    $region16: #{run.198} parent=1 // pred_region
      %36 = dma.done [#allocation3], 2048
    $region17: #{run.198} parent=1 // pred_fallthru
      _
    // Predicated region
    $region18: #{run.198} parent=1 // pred_check
      _
    $region19: #{run.198} parent=1 // pred_check_branch
      %38 = sbr.rel (0) target = $region21
    $region20: #{run.198} parent=1 // pred_region
      %39 = dma.done [#allocation5], 16
    $region21: #{run.198} parent=1 // pred_fallthru
      _
    %v41 = vld [vmem:[%s0] sm:$0xff]
    %v42 = vld [vmem:[%s0 + $0x8] sm:$0xff]
    %v43 = vld [vmem:[%s0 + $0x10] sm:$0xff]
    %v44 = vld [vmem:[%s0 + $0x18] sm:$0xff]
    %v45 = vld [vmem:[%s0 + $0x20] sm:$0xff]
    %v46 = vld [vmem:[%s0 + $0x28] sm:$0xff]
    %v47 = vld [vmem:[%s0 + $0x30] sm:$0xff]
    %v48 = vld [vmem:[%s0 + $0x38] sm:$0xff]
    %v49 = vld [vmem:[#allocation2] sm:$0xf]
    %v50 = vld [vmem:[#allocation2 + $0x4] sm:$0xf]
    %v51 = vld [vmem:[#allocation2 + $0x8] sm:$0xf]
    %v52 = vld [vmem:[#allocation2 + $0xc] sm:$0xf]
    %v53 = vld [vmem:[#allocation2 + $0x10] sm:$0xf]
    %v54 = vld [vmem:[#allocation2 + $0x14] sm:$0xf]
    %v55 = vld [vmem:[#allocation2 + $0x18] sm:$0xf]
    %v56 = vld [vmem:[#allocation2 + $0x1c] sm:$0xf]
    %v57 = vld [vmem:[#allocation2 + $0x20] sm:$0xf]
    %v58 = vld [vmem:[#allocation2 + $0x24] sm:$0xf]
    %v59 = vld [vmem:[#allocation2 + $0x28] sm:$0xf]
    %v60 = vld [vmem:[#allocation2 + $0x2c] sm:$0xf]
    %v61 = vld [vmem:[#allocation2 + $0x30] sm:$0xf]
    %v62 = vld [vmem:[#allocation2 + $0x34] sm:$0xf]
    %v63 = vld [vmem:[#allocation2 + $0x38] sm:$0xf]
    %v64 = vld [vmem:[#allocation2 + $0x3c] sm:$0xf]
    %v65 = vld [vmem:[#allocation2 + $0x40] sm:$0xf]
    %v66 = vld [vmem:[#allocation2 + $0x44] sm:$0xf]
    %v67 = vld [vmem:[#allocation2 + $0x48] sm:$0xf]
    %v68 = vld [vmem:[#allocation2 + $0x4c] sm:$0xf]
    %v69 = vld [vmem:[#allocation2 + $0x50] sm:$0xf]
    %v70 = vld [vmem:[#allocation2 + $0x54] sm:$0xf]
    %v71 = vld [vmem:[#allocation2 + $0x58] sm:$0xf]
    %v72 = vld [vmem:[#allocation2 + $0x5c] sm:$0xf]
    %v73 = vld [vmem:[#allocation2 + $0x60] sm:$0xf]
    %v74 = vld [vmem:[#allocation2 + $0x64] sm:$0xf]
    %v75 = vld [vmem:[#allocation2 + $0x68] sm:$0xf]
    %v76 = vld [vmem:[#allocation2 + $0x6c] sm:$0xf]
    %v77 = vld [vmem:[#allocation2 + $0x70] sm:$0xf]
    %v78 = vld [vmem:[#allocation2 + $0x74] sm:$0xf]
    %v79 = vld [vmem:[#allocation2 + $0x78] sm:$0xf]
    %v80 = vld [vmem:[#allocation2 + $0x7c] sm:$0xf]
    %v81 = vld [vmem:[#allocation4] sm:$0x1]
    %v83 = vlaneseq
    %v84 = vshrl.u32 %v83, 7
    %v85 = vsub.s32 0, %v84
    %v86 = vrot.slane %v81, %v85
    %v96 = vunpack.c.l.b16 %v41
    %v97 = vunpack.c.h.b16 %v41
    %v98 = vunpack.c.l.b16 %v42
    %v99 = vunpack.c.h.b16 %v42
    %v100 = vunpack.c.l.b16 %v43
    %v101 = vunpack.c.h.b16 %v43
    %v102 = vunpack.c.l.b16 %v44
    %v103 = vunpack.c.h.b16 %v44
    %v104 = vunpack.c.l.b16 %v45
    %v105 = vunpack.c.h.b16 %v45
    %v106 = vunpack.c.l.b16 %v46
    %v107 = vunpack.c.h.b16 %v46
    %v108 = vunpack.c.l.b16 %v47
    %v109 = vunpack.c.h.b16 %v47
    %v110 = vunpack.c.l.b16 %v48
    %v111 = vunpack.c.h.b16 %v48
    %v112 = vpack.c.b16 %v98, %v96
    %v113 = vpack.c.b16 %v99, %v97
    %v114 = vpack.c.b16 %v102, %v100
    %v115 = vpack.c.b16 %v103, %v101
    %v116 = vpack.c.b16 %v106, %v104
    %v117 = vpack.c.b16 %v107, %v105
    %v118 = vpack.c.b16 %v110, %v108
    %v119 = vpack.c.b16 %v111, %v109
    %v160 = vunpack.c.l.b16 %v49
    %v161 = vunpack.c.l.b16 %v50
    %v162 = vunpack.c.l.b16 %v51
    %v163 = vunpack.c.l.b16 %v52
    %v164 = vunpack.c.l.b16 %v53
    %v165 = vunpack.c.l.b16 %v54
    %v166 = vunpack.c.l.b16 %v55
    %v167 = vunpack.c.l.b16 %v56
    %v168 = vunpack.c.l.b16 %v57
    %v169 = vunpack.c.l.b16 %v58
    %v170 = vunpack.c.l.b16 %v59
    %v171 = vunpack.c.l.b16 %v60
    %v172 = vunpack.c.l.b16 %v61
    %v173 = vunpack.c.l.b16 %v62
    %v174 = vunpack.c.l.b16 %v63
    %v175 = vunpack.c.l.b16 %v64
    %v176 = vunpack.c.l.b16 %v65
    %v177 = vunpack.c.l.b16 %v66
    %v178 = vunpack.c.l.b16 %v67
    %v179 = vunpack.c.l.b16 %v68
    %v180 = vunpack.c.l.b16 %v69
    %v181 = vunpack.c.l.b16 %v70
    %v182 = vunpack.c.l.b16 %v71
    %v183 = vunpack.c.l.b16 %v72
    %v184 = vunpack.c.l.b16 %v73
    %v185 = vunpack.c.l.b16 %v74
    %v186 = vunpack.c.l.b16 %v75
    %v187 = vunpack.c.l.b16 %v76
    %v188 = vunpack.c.l.b16 %v77
    %v189 = vunpack.c.l.b16 %v78
    %v190 = vunpack.c.l.b16 %v79
    %v191 = vunpack.c.l.b16 %v80
    %v192 = vpack.c.b16 %v161, %v160
    %v193 = vpack.c.b16 %v163, %v162
    %v194 = vpack.c.b16 %v165, %v164
    %v195 = vpack.c.b16 %v167, %v166
    %v196 = vpack.c.b16 %v169, %v168
    %v197 = vpack.c.b16 %v171, %v170
    %v198 = vpack.c.b16 %v173, %v172
    %v199 = vpack.c.b16 %v175, %v174
    %v200 = vpack.c.b16 %v177, %v176
    %v201 = vpack.c.b16 %v179, %v178
    %v202 = vpack.c.b16 %v181, %v180
    %v203 = vpack.c.b16 %v183, %v182
    %v204 = vpack.c.b16 %v185, %v184
    %v205 = vpack.c.b16 %v187, %v186
    %v206 = vpack.c.b16 %v189, %v188
    %v207 = vpack.c.b16 %v191, %v190
    %224 = vmatprep.subr.bf16.mxu0 0
    %225 = vmatpush1.bf16.msra.mxu0 %v199
    %226 = vmatprep.subr.bf16.mxu0 0
    %227 = vmatpush1.bf16.msra.mxu0 %v198
    %228 = vmatprep.subr.bf16.mxu0 0
    %229 = vmatpush1.bf16.msra.mxu0 %v197
    %230 = vmatprep.subr.bf16.mxu0 0
    %231 = vmatpush1.bf16.msra.mxu0 %v196
    %232 = vmatprep.subr.bf16.mxu0 0
    %233 = vmatpush1.bf16.msra.mxu0 %v195
    %234 = vmatprep.subr.bf16.mxu0 0
    %235 = vmatpush1.bf16.msra.mxu0 %v194
    %236 = vmatprep.subr.bf16.mxu0 0
    %237 = vmatpush1.bf16.msra.mxu0 %v193
    %238 = vmatprep.subr.bf16.mxu0 0
    %239 = vmatpush1.bf16.msra.mxu0 %v192
    %240 = vmatprep.subr.bf16.mxu0 0
    %241 = vmatpush2.bf16.msra.mxu0 %v207
    %242 = vmatprep.subr.bf16.mxu0 0
    %243 = vmatpush2.bf16.msra.mxu0 %v206
    %244 = vmatprep.subr.bf16.mxu0 0
    %245 = vmatpush2.bf16.msra.mxu0 %v205
    %246 = vmatprep.subr.bf16.mxu0 0
    %247 = vmatpush2.bf16.msra.mxu0 %v204
    %248 = vmatprep.subr.bf16.mxu0 0
    %249 = vmatpush2.bf16.msra.mxu0 %v203
    %250 = vmatprep.subr.bf16.mxu0 0
    %251 = vmatpush2.bf16.msra.mxu0 %v202
    %252 = vmatprep.subr.bf16.mxu0 0
    %253 = vmatpush2.bf16.msra.mxu0 %v201
    %254 = vmatprep.subr.bf16.mxu0 0
    %255 = vmatpush2.bf16.msra.mxu0 %v200
    %256 = vmatprep.mubr.bf16.mxu0 %v113
    %257 = vmatmul.mubr.bf16.gmra.mxu0 %v112
    %v258 = vpop.f32.mrf.mxu0
    %v259 = vadd.f32 %v86, %v258
    %v260 = vpop.f32.mrf.mxu0
    %v261 = vpop.f32.mrf.mxu0
    %v262 = vadd.f32 %v86, %v261
    %v263 = vpop.f32.mrf.mxu0
    %264 = vmatprep.mubr.bf16.mxu0 %v115
    %265 = vmatmul.mubr.bf16.gmra.mxu0 %v114
    %v266 = vpop.f32.mrf.mxu0
    %v267 = vadd.f32 %v86, %v266
    %v268 = vpop.f32.mrf.mxu0
    %v269 = vpop.f32.mrf.mxu0
    %v270 = vadd.f32 %v86, %v269
    %v271 = vpop.f32.mrf.mxu0
    %272 = vmatprep.mubr.bf16.mxu0 %v117
    %273 = vmatmul.mubr.bf16.gmra.mxu0 %v116
    %v274 = vpop.f32.mrf.mxu0
    %v275 = vadd.f32 %v86, %v274
    %v276 = vpop.f32.mrf.mxu0
    %v277 = vpop.f32.mrf.mxu0
    %v278 = vadd.f32 %v86, %v277
    %v279 = vpop.f32.mrf.mxu0
    %280 = vmatprep.mubr.bf16.mxu0 %v119
    %281 = vmatmul.mubr.bf16.gmra.mxu0 %v118
    %v282 = vpop.f32.mrf.mxu0
    %v283 = vadd.f32 %v86, %v282
    %v284 = vpop.f32.mrf.mxu0
    %v285 = vpop.f32.mrf.mxu0
    %v286 = vadd.f32 %v86, %v285
    %v287 = vpop.f32.mrf.mxu0
    %288 = vdwg.mxu0
    %v289 = vmax.f32 %v259, 0.0
    %v290 = vmax.f32 %v262, 0.0
    %v291 = vmax.f32 %v267, 0.0
    %v292 = vmax.f32 %v270, 0.0
    %v293 = vmax.f32 %v275, 0.0
    %v294 = vmax.f32 %v278, 0.0
    %v295 = vmax.f32 %v283, 0.0
    %v296 = vmax.f32 %v286, 0.0
    %297 = vst [vmem:[%s3] sm:$0xff] %v289
    %298 = vst [vmem:[%s3 + $0x8] sm:$0xff] %v290
    %299 = vst [vmem:[%s3 + $0x10] sm:$0xff] %v291
    %300 = vst [vmem:[%s3 + $0x18] sm:$0xff] %v292
    %301 = vst [vmem:[%s3 + $0x20] sm:$0xff] %v293
    %302 = vst [vmem:[%s3 + $0x28] sm:$0xff] %v294
    %303 = vst [vmem:[%s3 + $0x30] sm:$0xff] %v295
    %304 = vst [vmem:[%s3 + $0x38] sm:$0xff] %v296
    // Predicated region
    $region22: #{run.198} parent=1 // pred_check
      _
    $region23: #{run.198} parent=1 // pred_check_branch
      %306 = sbr.rel (0) target = $region25
    $region24: #{run.198} parent=1 // pred_region
      _
    $region25: #{run.198} parent=1 // pred_fallthru
      _
    // Predicated region
    $region26: #{run.198} parent=1 // pred_check
      _
    $region27: #{run.198} parent=1 // pred_check_branch
      %308 = sbr.rel (0) target = $region29
    $region28: #{run.198} parent=1 // pred_region
      _
    $region29: #{run.198} parent=1 // pred_fallthru
      _
    %309 = vsyncpa [#allocation3], 1
    %310 = vsyncpa [#allocation5], 1

// kernel: run.204
$region0: #{run.204}
  #allocation0 [shape = 'u32[]', space=smem, size = 0x4, offset = 0x4, fixed_abs, tag = 'smem constant byte address 0x4 - core index']
  #allocation1 [shape = 'u32[144,128]{1,0:T(1,128)}', space=vmem, size = 0x12000, scoped, tag = 'internal scratch']
  %s0 = inlined_call_operand.vmem [shape: bf16[64,128], index: 0, kind: input, shape index: {}]
  %s1 = inlined_call_operand.vmem [shape: bf16[128,128], index: 1, kind: input, shape index: {}]
  %s2 = inlined_call_operand.vmem [shape: f32[1,128], index: 2, kind: input, shape index: {}]
  %s3 = inlined_call_operand.vmem [shape: f32[64,128], index: 3, kind: output, shape index: {}]
  %s4 = sld [smem:[#allocation0]]
  $region22: #{run.204} parent=0
    _
  %s6 = ssub.s32 1, %s4
  %s7 = scalar_select 0, %s6, %s4
  // Predicated region
  $region2: #{run.204} parent=0 // pred_check
    _
  $region3: #{run.204} parent=0 // pred_check_branch
    %9 = sbr.rel (0) target = $region5
  $region4: #{run.204} parent=0 // pred_region
    _
  $region5: #{run.204} parent=0 // pred_fallthru
    _
  // Predicated region
  $region6: #{run.204} parent=0 // pred_check
    _
  $region7: #{run.204} parent=0 // pred_check_branch
    %11 = sbr.rel (0) target = $region9
  $region8: #{run.204} parent=0 // pred_region
    _
  $region9: #{run.204} parent=0 // pred_fallthru
    _
  // Predicated region
  $region10: #{run.204} parent=0 // pred_check
    _
  $region11: #{run.204} parent=0 // pred_check_branch
    %13 = sbr.rel (0) target = $region13
  $region12: #{run.204} parent=0 // pred_region
    _
  $region13: #{run.204} parent=0 // pred_fallthru
    _
  %v15 = vld [vmem:[%s0] sm:$0xf]
  %v16 = vld [vmem:[%s0 + $0x4] sm:$0xf]
  %v17 = vld [vmem:[%s0 + $0x8] sm:$0xf]
  %v18 = vld [vmem:[%s0 + $0xc] sm:$0xf]
  %v19 = vld [vmem:[%s0 + $0x10] sm:$0xf]
  %v20 = vld [vmem:[%s0 + $0x14] sm:$0xf]
  %v21 = vld [vmem:[%s0 + $0x18] sm:$0xf]
  %v22 = vld [vmem:[%s0 + $0x1c] sm:$0xf]
  %v23 = vld [vmem:[%s1] sm:$0xf]
  %v24 = vld [vmem:[%s1 + $0x4] sm:$0xf]
  %v25 = vld [vmem:[%s1 + $0x8] sm:$0xf]
  %v26 = vld [vmem:[%s1 + $0xc] sm:$0xf]
  %v27 = vld [vmem:[%s1 + $0x10] sm:$0xf]
  %v28 = vld [vmem:[%s1 + $0x14] sm:$0xf]
  %v29 = vld [vmem:[%s1 + $0x18] sm:$0xf]
  %v30 = vld [vmem:[%s1 + $0x1c] sm:$0xf]
  %v31 = vld [vmem:[%s1 + $0x20] sm:$0xf]
  %v32 = vld [vmem:[%s1 + $0x24] sm:$0xf]
  %v33 = vld [vmem:[%s1 + $0x28] sm:$0xf]
  %v34 = vld [vmem:[%s1 + $0x2c] sm:$0xf]
  %v35 = vld [vmem:[%s1 + $0x30] sm:$0xf]
  %v36 = vld [vmem:[%s1 + $0x34] sm:$0xf]
  %v37 = vld [vmem:[%s1 + $0x38] sm:$0xf]
  %v38 = vld [vmem:[%s1 + $0x3c] sm:$0xf]
  %v39 = vld [vmem:[%s2] sm:$0x1]
  %v41 = vlaneseq
  %v42 = vshrl.u32 %v41, 7
  %v43 = vsub.s32 0, %v42
  %v44 = vrot.slane %v39, %v43
  %v54 = vunpack.c.l.b16 %v15
  %v55 = vunpack.c.l.b16 %v16
  %v56 = vunpack.c.l.b16 %v17
  %v57 = vunpack.c.l.b16 %v18
  %v58 = vunpack.c.l.b16 %v19
  %v59 = vunpack.c.l.b16 %v20
  %v60 = vunpack.c.l.b16 %v21
  %v61 = vunpack.c.l.b16 %v22
  %v62 = vpack.c.b16 %v55, %v54
  %v63 = vpack.c.b16 %v57, %v56
  %v64 = vpack.c.b16 %v59, %v58
  %v65 = vpack.c.b16 %v61, %v60
  %v86 = vunpack.c.l.b16 %v23
  %v87 = vunpack.c.l.b16 %v24
  %v88 = vunpack.c.l.b16 %v25
  %v89 = vunpack.c.l.b16 %v26
  %v90 = vunpack.c.l.b16 %v27
  %v91 = vunpack.c.l.b16 %v28
  %v92 = vunpack.c.l.b16 %v29
  %v93 = vunpack.c.l.b16 %v30
  %v94 = vunpack.c.l.b16 %v31
  %v95 = vunpack.c.l.b16 %v32
  %v96 = vunpack.c.l.b16 %v33
  %v97 = vunpack.c.l.b16 %v34
  %v98 = vunpack.c.l.b16 %v35
  %v99 = vunpack.c.l.b16 %v36
  %v100 = vunpack.c.l.b16 %v37
  %v101 = vunpack.c.l.b16 %v38
  %v102 = vpack.c.b16 %v87, %v86
  %v103 = vpack.c.b16 %v89, %v88
  %v104 = vpack.c.b16 %v91, %v90
  %v105 = vpack.c.b16 %v93, %v92
  %v106 = vpack.c.b16 %v95, %v94
  %v107 = vpack.c.b16 %v97, %v96
  %v108 = vpack.c.b16 %v99, %v98
  %v109 = vpack.c.b16 %v101, %v100
  %118 = vmatprep.subr.bf16.mxu0 0
  %119 = vmatpush1.bf16.msra.mxu0 %v109
  %120 = vmatprep.subr.bf16.mxu0 0
  %121 = vmatpush1.bf16.msra.mxu0 %v108
  %122 = vmatprep.subr.bf16.mxu0 0
  %123 = vmatpush1.bf16.msra.mxu0 %v107
  %124 = vmatprep.subr.bf16.mxu0 0
  %125 = vmatpush1.bf16.msra.mxu0 %v106
  %126 = vmatprep.subr.bf16.mxu0 0
  %127 = vmatpush1.bf16.msra.mxu0 %v105
  %128 = vmatprep.subr.bf16.mxu0 0
  %129 = vmatpush1.bf16.msra.mxu0 %v104
  %130 = vmatprep.subr.bf16.mxu0 0
  %131 = vmatpush1.bf16.msra.mxu0 %v103
  %132 = vmatprep.subr.bf16.mxu0 0
  %133 = vmatpush1.bf16.msra.mxu0 %v102
  %134 = vmatprep.subr.bf16.mxu0 0
  %135 = vmatpush2.bf16.msra.mxu0 0
  %136 = vmatprep.subr.bf16.mxu0 0
  %137 = vmatpush2.bf16.msra.mxu0 0
  %138 = vmatprep.subr.bf16.mxu0 0
  %139 = vmatpush2.bf16.msra.mxu0 0
  %140 = vmatprep.subr.bf16.mxu0 0
  %141 = vmatpush2.bf16.msra.mxu0 0
  %142 = vmatprep.subr.bf16.mxu0 0
  %143 = vmatpush2.bf16.msra.mxu0 0
  %144 = vmatprep.subr.bf16.mxu0 0
  %145 = vmatpush2.bf16.msra.mxu0 0
  %146 = vmatprep.subr.bf16.mxu0 0
  %147 = vmatpush2.bf16.msra.mxu0 0
  %148 = vmatprep.subr.bf16.mxu0 0
  %149 = vmatpush2.bf16.msra.mxu0 0
  %150 = vmatprep.mubr.bf16.mxu0 0
  %151 = vmatmul.mubr.bf16.gmra.mxu0 %v62
  %v152 = vpop.f32.mrf.mxu0
  %v153 = vadd.f32 %v44, %v152
  %v154 = vpop.f32.mrf.mxu0
  %v155 = vpop.f32.mrf.mxu0
  %v156 = vadd.f32 %v44, %v155
  %v157 = vpop.f32.mrf.mxu0
  %158 = vmatprep.mubr.bf16.mxu0 0
  %159 = vmatmul.mubr.bf16.gmra.mxu0 %v63
  %v160 = vpop.f32.mrf.mxu0
  %v161 = vadd.f32 %v44, %v160
  %v162 = vpop.f32.mrf.mxu0
  %v163 = vpop.f32.mrf.mxu0
  %v164 = vadd.f32 %v44, %v163
  %v165 = vpop.f32.mrf.mxu0
  %166 = vmatprep.mubr.bf16.mxu0 0
  %167 = vmatmul.mubr.bf16.gmra.mxu0 %v64
  %v168 = vpop.f32.mrf.mxu0
  %v169 = vadd.f32 %v44, %v168
  %v170 = vpop.f32.mrf.mxu0
  %v171 = vpop.f32.mrf.mxu0
  %v172 = vadd.f32 %v44, %v171
  %v173 = vpop.f32.mrf.mxu0
  %174 = vmatprep.mubr.bf16.mxu0 0
  %175 = vmatmul.mubr.bf16.gmra.mxu0 %v65
  %v176 = vpop.f32.mrf.mxu0
  %v177 = vadd.f32 %v44, %v176
  %v178 = vpop.f32.mrf.mxu0
  %v179 = vpop.f32.mrf.mxu0
  %v180 = vadd.f32 %v44, %v179
  %v181 = vpop.f32.mrf.mxu0
  %182 = vdwg.mxu0
  %v183 = vmax.f32 %v153, 0.0
  %v184 = vmax.f32 %v156, 0.0
  %v185 = vmax.f32 %v161, 0.0
  %v186 = vmax.f32 %v164, 0.0
  %v187 = vmax.f32 %v169, 0.0
  %v188 = vmax.f32 %v172, 0.0
  %v189 = vmax.f32 %v177, 0.0
  %v190 = vmax.f32 %v180, 0.0
  %191 = vst [vmem:[%s3] sm:$0xff] %v183
  %192 = vst [vmem:[%s3 + $0x8] sm:$0xff] %v184
  %193 = vst [vmem:[%s3 + $0x10] sm:$0xff] %v185
  %194 = vst [vmem:[%s3 + $0x18] sm:$0xff] %v186
  %195 = vst [vmem:[%s3 + $0x20] sm:$0xff] %v187
  %196 = vst [vmem:[%s3 + $0x28] sm:$0xff] %v188
  %197 = vst [vmem:[%s3 + $0x30] sm:$0xff] %v189
  %198 = vst [vmem:[%s3 + $0x38] sm:$0xff] %v190
  // Predicated region
  $region14: #{run.204} parent=0 // pred_check
    _
  $region15: #{run.204} parent=0 // pred_check_branch
    %200 = sbr.rel (0) target = $region17
  $region16: #{run.204} parent=0 // pred_region
    _
  $region17: #{run.204} parent=0 // pred_fallthru
    _
  // Predicated region
  $region18: #{run.204} parent=0 // pred_check
    _
  $region19: #{run.204} parent=0 // pred_check_branch
    %202 = sbr.rel (0) target = $region21
  $region20: #{run.204} parent=0 // pred_region
    _
  $region21: #{run.204} parent=0 // pred_fallthru
    _

// kernel: run.205
$region0: #{run.205}
  #allocation0 [shape = 'u32[]', space=smem, size = 0x4, offset = 0x4, fixed_abs, tag = 'smem constant byte address 0x4 - core index']
  #allocation1 [shape = 'u32[144,128]{1,0:T(1,128)}', space=vmem, size = 0x12000, scoped, tag = 'internal scratch']
  %s0 = inlined_call_operand.vmem [shape: bf16[64,128], index: 0, kind: input, shape index: {}]
  %s1 = inlined_call_operand.vmem [shape: bf16[128,128], index: 1, kind: input, shape index: {}]
  %s2 = inlined_call_operand.vmem [shape: f32[1,128], index: 2, kind: input, shape index: {}]
  %s3 = inlined_call_operand.vmem [shape: f32[64,128], index: 3, kind: output, shape index: {}]
  %s4 = sld [smem:[#allocation0]]
  $region22: #{run.205} parent=0
    _
  %s6 = ssub.s32 1, %s4
  %s7 = scalar_select 0, %s6, %s4
  // Predicated region
  $region2: #{run.205} parent=0 // pred_check
    _
  $region3: #{run.205} parent=0 // pred_check_branch
    %9 = sbr.rel (0) target = $region5
  $region4: #{run.205} parent=0 // pred_region
    _
  $region5: #{run.205} parent=0 // pred_fallthru
    _
  // Predicated region
  $region6: #{run.205} parent=0 // pred_check
    _
  $region7: #{run.205} parent=0 // pred_check_branch
    %11 = sbr.rel (0) target = $region9
  $region8: #{run.205} parent=0 // pred_region
    _
  $region9: #{run.205} parent=0 // pred_fallthru
    _
  // Predicated region
  $region10: #{run.205} parent=0 // pred_check
    _
  $region11: #{run.205} parent=0 // pred_check_branch
    %13 = sbr.rel (0) target = $region13
  $region12: #{run.205} parent=0 // pred_region
    _
  $region13: #{run.205} parent=0 // pred_fallthru
    _
  %v15 = vld [vmem:[%s0] sm:$0xf]
  %v16 = vld [vmem:[%s0 + $0x4] sm:$0xf]
  %v17 = vld [vmem:[%s0 + $0x8] sm:$0xf]
  %v18 = vld [vmem:[%s0 + $0xc] sm:$0xf]
  %v19 = vld [vmem:[%s0 + $0x10] sm:$0xf]
  %v20 = vld [vmem:[%s0 + $0x14] sm:$0xf]
  %v21 = vld [vmem:[%s0 + $0x18] sm:$0xf]
  %v22 = vld [vmem:[%s0 + $0x1c] sm:$0xf]
  %v23 = vld [vmem:[%s1] sm:$0xf]
  %v24 = vld [vmem:[%s1 + $0x4] sm:$0xf]
  %v25 = vld [vmem:[%s1 + $0x8] sm:$0xf]
  %v26 = vld [vmem:[%s1 + $0xc] sm:$0xf]
  %v27 = vld [vmem:[%s1 + $0x10] sm:$0xf]
  %v28 = vld [vmem:[%s1 + $0x14] sm:$0xf]
  %v29 = vld [vmem:[%s1 + $0x18] sm:$0xf]
  %v30 = vld [vmem:[%s1 + $0x1c] sm:$0xf]
  %v31 = vld [vmem:[%s1 + $0x20] sm:$0xf]
  %v32 = vld [vmem:[%s1 + $0x24] sm:$0xf]
  %v33 = vld [vmem:[%s1 + $0x28] sm:$0xf]
  %v34 = vld [vmem:[%s1 + $0x2c] sm:$0xf]
  %v35 = vld [vmem:[%s1 + $0x30] sm:$0xf]
  %v36 = vld [vmem:[%s1 + $0x34] sm:$0xf]
  %v37 = vld [vmem:[%s1 + $0x38] sm:$0xf]
  %v38 = vld [vmem:[%s1 + $0x3c] sm:$0xf]
  %v39 = vld [vmem:[%s2] sm:$0x1]
  %v41 = vlaneseq
  %v42 = vshrl.u32 %v41, 7
  %v43 = vsub.s32 0, %v42
  %v44 = vrot.slane %v39, %v43
  %v54 = vunpack.c.l.b16 %v15
  %v55 = vunpack.c.l.b16 %v16
  %v56 = vunpack.c.l.b16 %v17
  %v57 = vunpack.c.l.b16 %v18
  %v58 = vunpack.c.l.b16 %v19
  %v59 = vunpack.c.l.b16 %v20
  %v60 = vunpack.c.l.b16 %v21
  %v61 = vunpack.c.l.b16 %v22
  %v62 = vpack.c.b16 %v55, %v54
  %v63 = vpack.c.b16 %v57, %v56
  %v64 = vpack.c.b16 %v59, %v58
  %v65 = vpack.c.b16 %v61, %v60
  %v86 = vunpack.c.l.b16 %v23
  %v87 = vunpack.c.l.b16 %v24
  %v88 = vunpack.c.l.b16 %v25
  %v89 = vunpack.c.l.b16 %v26
  %v90 = vunpack.c.l.b16 %v27
  %v91 = vunpack.c.l.b16 %v28
  %v92 = vunpack.c.l.b16 %v29
  %v93 = vunpack.c.l.b16 %v30
  %v94 = vunpack.c.l.b16 %v31
  %v95 = vunpack.c.l.b16 %v32
  %v96 = vunpack.c.l.b16 %v33
  %v97 = vunpack.c.l.b16 %v34
  %v98 = vunpack.c.l.b16 %v35
  %v99 = vunpack.c.l.b16 %v36
  %v100 = vunpack.c.l.b16 %v37
  %v101 = vunpack.c.l.b16 %v38
  %v102 = vpack.c.b16 %v87, %v86
  %v103 = vpack.c.b16 %v89, %v88
  %v104 = vpack.c.b16 %v91, %v90
  %v105 = vpack.c.b16 %v93, %v92
  %v106 = vpack.c.b16 %v95, %v94
  %v107 = vpack.c.b16 %v97, %v96
  %v108 = vpack.c.b16 %v99, %v98
  %v109 = vpack.c.b16 %v101, %v100
  %118 = vmatprep.subr.bf16.mxu0 0
  %119 = vmatpush1.bf16.msra.mxu0 %v109
  %120 = vmatprep.subr.bf16.mxu0 0
  %121 = vmatpush1.bf16.msra.mxu0 %v108
  %122 = vmatprep.subr.bf16.mxu0 0
  %123 = vmatpush1.bf16.msra.mxu0 %v107
  %124 = vmatprep.subr.bf16.mxu0 0
  %125 = vmatpush1.bf16.msra.mxu0 %v106
  %126 = vmatprep.subr.bf16.mxu0 0
  %127 = vmatpush1.bf16.msra.mxu0 %v105
  %128 = vmatprep.subr.bf16.mxu0 0
  %129 = vmatpush1.bf16.msra.mxu0 %v104
  %130 = vmatprep.subr.bf16.mxu0 0
  %131 = vmatpush1.bf16.msra.mxu0 %v103
  %132 = vmatprep.subr.bf16.mxu0 0
  %133 = vmatpush1.bf16.msra.mxu0 %v102
  %134 = vmatprep.subr.bf16.mxu0 0
  %135 = vmatpush2.bf16.msra.mxu0 0
  %136 = vmatprep.subr.bf16.mxu0 0
  %137 = vmatpush2.bf16.msra.mxu0 0
  %138 = vmatprep.subr.bf16.mxu0 0
  %139 = vmatpush2.bf16.msra.mxu0 0
  %140 = vmatprep.subr.bf16.mxu0 0
  %141 = vmatpush2.bf16.msra.mxu0 0
  %142 = vmatprep.subr.bf16.mxu0 0
  %143 = vmatpush2.bf16.msra.mxu0 0
  %144 = vmatprep.subr.bf16.mxu0 0
  %145 = vmatpush2.bf16.msra.mxu0 0
  %146 = vmatprep.subr.bf16.mxu0 0
  %147 = vmatpush2.bf16.msra.mxu0 0
  %148 = vmatprep.subr.bf16.mxu0 0
  %149 = vmatpush2.bf16.msra.mxu0 0
  %150 = vmatprep.mubr.bf16.mxu0 0
  %151 = vmatmul.mubr.bf16.gmra.mxu0 %v62
  %v152 = vpop.f32.mrf.mxu0
  %v153 = vadd.f32 %v44, %v152
  %v154 = vpop.f32.mrf.mxu0
  %v155 = vpop.f32.mrf.mxu0
  %v156 = vadd.f32 %v44, %v155
  %v157 = vpop.f32.mrf.mxu0
  %158 = vmatprep.mubr.bf16.mxu0 0
  %159 = vmatmul.mubr.bf16.gmra.mxu0 %v63
  %v160 = vpop.f32.mrf.mxu0
  %v161 = vadd.f32 %v44, %v160
  %v162 = vpop.f32.mrf.mxu0
  %v163 = vpop.f32.mrf.mxu0
  %v164 = vadd.f32 %v44, %v163
  %v165 = vpop.f32.mrf.mxu0
  %166 = vmatprep.mubr.bf16.mxu0 0
  %167 = vmatmul.mubr.bf16.gmra.mxu0 %v64
  %v168 = vpop.f32.mrf.mxu0
  %v169 = vadd.f32 %v44, %v168
  %v170 = vpop.f32.mrf.mxu0
  %v171 = vpop.f32.mrf.mxu0
  %v172 = vadd.f32 %v44, %v171
  %v173 = vpop.f32.mrf.mxu0
  %174 = vmatprep.mubr.bf16.mxu0 0
  %175 = vmatmul.mubr.bf16.gmra.mxu0 %v65
  %v176 = vpop.f32.mrf.mxu0
  %v177 = vadd.f32 %v44, %v176
  %v178 = vpop.f32.mrf.mxu0
  %v179 = vpop.f32.mrf.mxu0
  %v180 = vadd.f32 %v44, %v179
  %v181 = vpop.f32.mrf.mxu0
  %182 = vdwg.mxu0
  %183 = vst [vmem:[%s3] sm:$0xff] %v153
  %184 = vst [vmem:[%s3 + $0x8] sm:$0xff] %v156
  %185 = vst [vmem:[%s3 + $0x10] sm:$0xff] %v161
  %186 = vst [vmem:[%s3 + $0x18] sm:$0xff] %v164
  %187 = vst [vmem:[%s3 + $0x20] sm:$0xff] %v169
  %188 = vst [vmem:[%s3 + $0x28] sm:$0xff] %v172
  %189 = vst [vmem:[%s3 + $0x30] sm:$0xff] %v177
  %190 = vst [vmem:[%s3 + $0x38] sm:$0xff] %v180
  // Predicated region
  $region14: #{run.205} parent=0 // pred_check
    _
  $region15: #{run.205} parent=0 // pred_check_branch
    %192 = sbr.rel (0) target = $region17
  $region16: #{run.205} parent=0 // pred_region
    _
  $region17: #{run.205} parent=0 // pred_fallthru
    _
  // Predicated region
  $region18: #{run.205} parent=0 // pred_check
    _
  $region19: #{run.205} parent=0 // pred_check_branch
    %194 = sbr.rel (0) target = $region21
  $region20: #{run.205} parent=0 // pred_region
    _
  $region21: #{run.205} parent=0 // pred_fallthru
    _

// kernel: run.224
$region0: #{run.224}
  #allocation0 [shape = 'u32[]', space=smem, size = 0x4, offset = 0x4, fixed_abs, tag = 'smem constant byte address 0x4 - core index']
  #allocation1 [shape = 'u32[144,128]{1,0:T(1,128)}', space=vmem, size = 0x12000, scoped, tag = 'internal scratch']
  %s0 = inlined_call_operand.vmem [shape: bf16[64,128], index: 0, kind: input, shape index: {}]
  %s1 = inlined_call_operand.vmem [shape: bf16[128,128], index: 1, kind: input, shape index: {}]
  %s2 = inlined_call_operand.hbm [shape: f32[1,128], index: 2, kind: input, shape index: {}]
  %s3 = inlined_call_operand.vmem [shape: f32[64,128], index: 3, kind: output, shape index: {}]
  %s4 = sld [smem:[#allocation0]]
  $region26: #{run.224} parent=0
    _
  %s6 = ssub.s32 1, %s4
  %s7 = scalar_select 0, %s6, %s4
  $region1: #{run.224} parent=0
    #allocation2 [shape = 'u8[512]{0}', space=vmem, size = 0x400, scoped, tag = 'input window, operand 2, single buffered']
    #allocation3 [shape = 's32[1]{0}', space=sflag, size = 0x4, scoped, tag = 'scoped memory for run.224']
    %8 = vsyncpa [#allocation3], 0
    // Predicated region
    $region2: #{run.224} parent=1 // pred_check
      _
    $region3: #{run.224} parent=1 // pred_check_branch
      %10 = sbr.rel (0) target = $region5
    $region4: #{run.224} parent=1 // pred_region
      _
    $region5: #{run.224} parent=1 // pred_fallthru
      _
    // Predicated region
    $region6: #{run.224} parent=1 // pred_check
      _
    $region7: #{run.224} parent=1 // pred_check_branch
      %12 = sbr.rel (0) target = $region9
    $region8: #{run.224} parent=1 // pred_region
      _
    $region9: #{run.224} parent=1 // pred_fallthru
      _
    // Predicated region
    $region10: #{run.224} parent=1 // pred_check
      _
    $region11: #{run.224} parent=1 // pred_check_branch
      %14 = sbr.rel (0) target = $region13
    $region12: #{run.224} parent=1 // pred_region
      %s16 = ssub.s32 16, 16
      %17 = vsyncadd [#allocation3], %s16
      %s19 = sshll.u32 [#allocation2], 4
      %s20 = int_to_ptr.vmem [resolvable:$true] %s19
      %22 = dma.hbm_to_vmem [thread:$0]  %s2, 16, %s20, [#allocation3]
    $region13: #{run.224} parent=1 // pred_fallthru
      _
    // Predicated region
    $region14: #{run.224} parent=1 // pred_check
      _
    $region15: #{run.224} parent=1 // pred_check_branch
      %24 = sbr.rel (0) target = $region17
    $region16: #{run.224} parent=1 // pred_region
      %25 = dma.done [#allocation3], 16
    $region17: #{run.224} parent=1 // pred_fallthru
      _
    %v27 = vld [vmem:[%s0] sm:$0xf]
    %v28 = vld [vmem:[%s0 + $0x4] sm:$0xf]
    %v29 = vld [vmem:[%s0 + $0x8] sm:$0xf]
    %v30 = vld [vmem:[%s0 + $0xc] sm:$0xf]
    %v31 = vld [vmem:[%s0 + $0x10] sm:$0xf]
    %v32 = vld [vmem:[%s0 + $0x14] sm:$0xf]
    %v33 = vld [vmem:[%s0 + $0x18] sm:$0xf]
    %v34 = vld [vmem:[%s0 + $0x1c] sm:$0xf]
    %v35 = vld [vmem:[%s1] sm:$0xf]
    %v36 = vld [vmem:[%s1 + $0x4] sm:$0xf]
    %v37 = vld [vmem:[%s1 + $0x8] sm:$0xf]
    %v38 = vld [vmem:[%s1 + $0xc] sm:$0xf]
    %v39 = vld [vmem:[%s1 + $0x10] sm:$0xf]
    %v40 = vld [vmem:[%s1 + $0x14] sm:$0xf]
    %v41 = vld [vmem:[%s1 + $0x18] sm:$0xf]
    %v42 = vld [vmem:[%s1 + $0x1c] sm:$0xf]
    %v43 = vld [vmem:[%s1 + $0x20] sm:$0xf]
    %v44 = vld [vmem:[%s1 + $0x24] sm:$0xf]
    %v45 = vld [vmem:[%s1 + $0x28] sm:$0xf]
    %v46 = vld [vmem:[%s1 + $0x2c] sm:$0xf]
    %v47 = vld [vmem:[%s1 + $0x30] sm:$0xf]
    %v48 = vld [vmem:[%s1 + $0x34] sm:$0xf]
    %v49 = vld [vmem:[%s1 + $0x38] sm:$0xf]
    %v50 = vld [vmem:[%s1 + $0x3c] sm:$0xf]
    %v51 = vld [vmem:[#allocation2] sm:$0x1]
    %v53 = vlaneseq
    %v54 = vshrl.u32 %v53, 7
    %v55 = vsub.s32 0, %v54
    %v56 = vrot.slane %v51, %v55
    %v66 = vunpack.c.l.b16 %v27
    %v67 = vunpack.c.l.b16 %v28
    %v68 = vunpack.c.l.b16 %v29
    %v69 = vunpack.c.l.b16 %v30
    %v70 = vunpack.c.l.b16 %v31
    %v71 = vunpack.c.l.b16 %v32
    %v72 = vunpack.c.l.b16 %v33
    %v73 = vunpack.c.l.b16 %v34
    %v74 = vpack.c.b16 %v67, %v66
    %v75 = vpack.c.b16 %v69, %v68
    %v76 = vpack.c.b16 %v71, %v70
    %v77 = vpack.c.b16 %v73, %v72
    %v98 = vunpack.c.l.b16 %v35
    %v99 = vunpack.c.l.b16 %v36
    %v100 = vunpack.c.l.b16 %v37
    %v101 = vunpack.c.l.b16 %v38
    %v102 = vunpack.c.l.b16 %v39
    %v103 = vunpack.c.l.b16 %v40
    %v104 = vunpack.c.l.b16 %v41
    %v105 = vunpack.c.l.b16 %v42
    %v106 = vunpack.c.l.b16 %v43
    %v107 = vunpack.c.l.b16 %v44
    %v108 = vunpack.c.l.b16 %v45
    %v109 = vunpack.c.l.b16 %v46
    %v110 = vunpack.c.l.b16 %v47
    %v111 = vunpack.c.l.b16 %v48
    %v112 = vunpack.c.l.b16 %v49
    %v113 = vunpack.c.l.b16 %v50
    %v114 = vpack.c.b16 %v99, %v98
    %v115 = vpack.c.b16 %v101, %v100
    %v116 = vpack.c.b16 %v103, %v102
    %v117 = vpack.c.b16 %v105, %v104
    %v118 = vpack.c.b16 %v107, %v106
    %v119 = vpack.c.b16 %v109, %v108
    %v120 = vpack.c.b16 %v111, %v110
    %v121 = vpack.c.b16 %v113, %v112
    %130 = vmatprep.subr.bf16.mxu0 0
    %131 = vmatpush1.bf16.msra.mxu0 %v121
    %132 = vmatprep.subr.bf16.mxu0 0
    %133 = vmatpush1.bf16.msra.mxu0 %v120
    %134 = vmatprep.subr.bf16.mxu0 0
    %135 = vmatpush1.bf16.msra.mxu0 %v119
    %136 = vmatprep.subr.bf16.mxu0 0
    %137 = vmatpush1.bf16.msra.mxu0 %v118
    %138 = vmatprep.subr.bf16.mxu0 0
    %139 = vmatpush1.bf16.msra.mxu0 %v117
    %140 = vmatprep.subr.bf16.mxu0 0
    %141 = vmatpush1.bf16.msra.mxu0 %v116
    %142 = vmatprep.subr.bf16.mxu0 0
    %143 = vmatpush1.bf16.msra.mxu0 %v115
    %144 = vmatprep.subr.bf16.mxu0 0
    %145 = vmatpush1.bf16.msra.mxu0 %v114
    %146 = vmatprep.subr.bf16.mxu0 0
    %147 = vmatpush2.bf16.msra.mxu0 0
    %148 = vmatprep.subr.bf16.mxu0 0
    %149 = vmatpush2.bf16.msra.mxu0 0
    %150 = vmatprep.subr.bf16.mxu0 0
    %151 = vmatpush2.bf16.msra.mxu0 0
    %152 = vmatprep.subr.bf16.mxu0 0
    %153 = vmatpush2.bf16.msra.mxu0 0
    %154 = vmatprep.subr.bf16.mxu0 0
    %155 = vmatpush2.bf16.msra.mxu0 0
    %156 = vmatprep.subr.bf16.mxu0 0
    %157 = vmatpush2.bf16.msra.mxu0 0
    %158 = vmatprep.subr.bf16.mxu0 0
    %159 = vmatpush2.bf16.msra.mxu0 0
    %160 = vmatprep.subr.bf16.mxu0 0
    %161 = vmatpush2.bf16.msra.mxu0 0
    %162 = vmatprep.mubr.bf16.mxu0 0
    %163 = vmatmul.mubr.bf16.gmra.mxu0 %v74
    %v164 = vpop.f32.mrf.mxu0
    %v165 = vadd.f32 %v56, %v164
    %v166 = vpop.f32.mrf.mxu0
    %v167 = vpop.f32.mrf.mxu0
    %v168 = vadd.f32 %v56, %v167
    %v169 = vpop.f32.mrf.mxu0
    %170 = vmatprep.mubr.bf16.mxu0 0
    %171 = vmatmul.mubr.bf16.gmra.mxu0 %v75
    %v172 = vpop.f32.mrf.mxu0
    %v173 = vadd.f32 %v56, %v172
    %v174 = vpop.f32.mrf.mxu0
    %v175 = vpop.f32.mrf.mxu0
    %v176 = vadd.f32 %v56, %v175
    %v177 = vpop.f32.mrf.mxu0
    %178 = vmatprep.mubr.bf16.mxu0 0
    %179 = vmatmul.mubr.bf16.gmra.mxu0 %v76
    %v180 = vpop.f32.mrf.mxu0
    %v181 = vadd.f32 %v56, %v180
    %v182 = vpop.f32.mrf.mxu0
    %v183 = vpop.f32.mrf.mxu0
    %v184 = vadd.f32 %v56, %v183
    %v185 = vpop.f32.mrf.mxu0
    %186 = vmatprep.mubr.bf16.mxu0 0
    %187 = vmatmul.mubr.bf16.gmra.mxu0 %v77
    %v188 = vpop.f32.mrf.mxu0
    %v189 = vadd.f32 %v56, %v188
    %v190 = vpop.f32.mrf.mxu0
    %v191 = vpop.f32.mrf.mxu0
    %v192 = vadd.f32 %v56, %v191
    %v193 = vpop.f32.mrf.mxu0
    %194 = vdwg.mxu0
    %195 = vst [vmem:[%s3] sm:$0xff] %v165
    %196 = vst [vmem:[%s3 + $0x8] sm:$0xff] %v168
    %197 = vst [vmem:[%s3 + $0x10] sm:$0xff] %v173
    %198 = vst [vmem:[%s3 + $0x18] sm:$0xff] %v176
    %199 = vst [vmem:[%s3 + $0x20] sm:$0xff] %v181
    %200 = vst [vmem:[%s3 + $0x28] sm:$0xff] %v184
    %201 = vst [vmem:[%s3 + $0x30] sm:$0xff] %v189
    %202 = vst [vmem:[%s3 + $0x38] sm:$0xff] %v192
    // Predicated region
    $region18: #{run.224} parent=1 // pred_check
      _
    $region19: #{run.224} parent=1 // pred_check_branch
      %204 = sbr.rel (0) target = $region21
    $region20: #{run.224} parent=1 // pred_region
      _
    $region21: #{run.224} parent=1 // pred_fallthru
      _
    // Predicated region
    $region22: #{run.224} parent=1 // pred_check
      _
    $region23: #{run.224} parent=1 // pred_check_branch
      %206 = sbr.rel (0) target = $region25
    $region24: #{run.224} parent=1 // pred_region
      _
    $region25: #{run.224} parent=1 // pred_fallthru
      _
    %207 = vsyncpa [#allocation3], 1

// kernel: run.225
$region0: #{run.225}
  #allocation0 [shape = 'u32[]', space=smem, size = 0x4, offset = 0x4, fixed_abs, tag = 'smem constant byte address 0x4 - core index']
  #allocation1 [shape = 'u32[144,128]{1,0:T(1,128)}', space=vmem, size = 0x12000, scoped, tag = 'internal scratch']
  %s0 = inlined_call_operand.vmem [shape: bf16[16,128], index: 0, kind: input, shape index: {}]
  %s1 = inlined_call_operand.vmem [shape: bf16[128,128], index: 1, kind: input, shape index: {}]
  %s2 = inlined_call_operand.vmem [shape: f32[1,128], index: 2, kind: input, shape index: {}]
  %s3 = inlined_call_operand.vmem [shape: f32[16,128], index: 3, kind: output, shape index: {}]
  %s4 = sld [smem:[#allocation0]]
  $region22: #{run.225} parent=0
    _
  %s6 = ssub.s32 1, %s4
  %s7 = scalar_select 0, %s6, %s4
  // Predicated region
  $region2: #{run.225} parent=0 // pred_check
    _
  $region3: #{run.225} parent=0 // pred_check_branch
    %9 = sbr.rel (0) target = $region5
  $region4: #{run.225} parent=0 // pred_region
    _
  $region5: #{run.225} parent=0 // pred_fallthru
    _
  // Predicated region
  $region6: #{run.225} parent=0 // pred_check
    _
  $region7: #{run.225} parent=0 // pred_check_branch
    %11 = sbr.rel (0) target = $region9
  $region8: #{run.225} parent=0 // pred_region
    _
  $region9: #{run.225} parent=0 // pred_fallthru
    _
  // Predicated region
  $region10: #{run.225} parent=0 // pred_check
    _
  $region11: #{run.225} parent=0 // pred_check_branch
    %13 = sbr.rel (0) target = $region13
  $region12: #{run.225} parent=0 // pred_region
    _
  $region13: #{run.225} parent=0 // pred_fallthru
    _
  %v15 = vld [vmem:[%s0] sm:$0xf]
  %v16 = vld [vmem:[%s0 + $0x4] sm:$0xf]
  %v17 = vld [vmem:[%s1] sm:$0xf]
  %v18 = vld [vmem:[%s1 + $0x4] sm:$0xf]
  %v19 = vld [vmem:[%s1 + $0x8] sm:$0xf]
  %v20 = vld [vmem:[%s1 + $0xc] sm:$0xf]
  %v21 = vld [vmem:[%s1 + $0x10] sm:$0xf]
  %v22 = vld [vmem:[%s1 + $0x14] sm:$0xf]
  %v23 = vld [vmem:[%s1 + $0x18] sm:$0xf]
  %v24 = vld [vmem:[%s1 + $0x1c] sm:$0xf]
  %v25 = vld [vmem:[%s1 + $0x20] sm:$0xf]
  %v26 = vld [vmem:[%s1 + $0x24] sm:$0xf]
  %v27 = vld [vmem:[%s1 + $0x28] sm:$0xf]
  %v28 = vld [vmem:[%s1 + $0x2c] sm:$0xf]
  %v29 = vld [vmem:[%s1 + $0x30] sm:$0xf]
  %v30 = vld [vmem:[%s1 + $0x34] sm:$0xf]
  %v31 = vld [vmem:[%s1 + $0x38] sm:$0xf]
  %v32 = vld [vmem:[%s1 + $0x3c] sm:$0xf]
  %v33 = vld [vmem:[%s2] sm:$0x1]
  %v35 = vlaneseq
  %v36 = vshrl.u32 %v35, 7
  %v37 = vsub.s32 0, %v36
  %v38 = vrot.slane %v33, %v37
  %v42 = vunpack.c.l.b16 %v15
  %v43 = vunpack.c.l.b16 %v16
  %v44 = vpack.c.b16 %v43, %v42
  %v62 = vunpack.c.l.b16 %v17
  %v63 = vunpack.c.l.b16 %v18
  %v64 = vunpack.c.l.b16 %v19
  %v65 = vunpack.c.l.b16 %v20
  %v66 = vunpack.c.l.b16 %v21
  %v67 = vunpack.c.l.b16 %v22
  %v68 = vunpack.c.l.b16 %v23
  %v69 = vunpack.c.l.b16 %v24
  %v70 = vunpack.c.l.b16 %v25
  %v71 = vunpack.c.l.b16 %v26
  %v72 = vunpack.c.l.b16 %v27
  %v73 = vunpack.c.l.b16 %v28
  %v74 = vunpack.c.l.b16 %v29
  %v75 = vunpack.c.l.b16 %v30
  %v76 = vunpack.c.l.b16 %v31
  %v77 = vunpack.c.l.b16 %v32
  %v78 = vpack.c.b16 %v63, %v62
  %v79 = vpack.c.b16 %v65, %v64
  %v80 = vpack.c.b16 %v67, %v66
  %v81 = vpack.c.b16 %v69, %v68
  %v82 = vpack.c.b16 %v71, %v70
  %v83 = vpack.c.b16 %v73, %v72
  %v84 = vpack.c.b16 %v75, %v74
  %v85 = vpack.c.b16 %v77, %v76
  %94 = vmatprep.subr.bf16.mxu0 0
  %95 = vmatpush1.bf16.msra.mxu0 %v85
  %96 = vmatprep.subr.bf16.mxu0 0
  %97 = vmatpush1.bf16.msra.mxu0 %v84
  %98 = vmatprep.subr.bf16.mxu0 0
  %99 = vmatpush1.bf16.msra.mxu0 %v83
  %100 = vmatprep.subr.bf16.mxu0 0
  %101 = vmatpush1.bf16.msra.mxu0 %v82
  %102 = vmatprep.subr.bf16.mxu0 0
  %103 = vmatpush1.bf16.msra.mxu0 %v81
  %104 = vmatprep.subr.bf16.mxu0 0
  %105 = vmatpush1.bf16.msra.mxu0 %v80
  %106 = vmatprep.subr.bf16.mxu0 0
  %107 = vmatpush1.bf16.msra.mxu0 %v79
  %108 = vmatprep.subr.bf16.mxu0 0
  %109 = vmatpush1.bf16.msra.mxu0 %v78
  %110 = vmatprep.subr.bf16.mxu0 0
  %111 = vmatpush2.bf16.msra.mxu0 0
  %112 = vmatprep.subr.bf16.mxu0 0
  %113 = vmatpush2.bf16.msra.mxu0 0
  %114 = vmatprep.subr.bf16.mxu0 0
  %115 = vmatpush2.bf16.msra.mxu0 0
  %116 = vmatprep.subr.bf16.mxu0 0
  %117 = vmatpush2.bf16.msra.mxu0 0
  %118 = vmatprep.subr.bf16.mxu0 0
  %119 = vmatpush2.bf16.msra.mxu0 0
  %120 = vmatprep.subr.bf16.mxu0 0
  %121 = vmatpush2.bf16.msra.mxu0 0
  %122 = vmatprep.subr.bf16.mxu0 0
  %123 = vmatpush2.bf16.msra.mxu0 0
  %124 = vmatprep.subr.bf16.mxu0 0
  %125 = vmatpush2.bf16.msra.mxu0 0
  %126 = vmatprep.mubr.bf16.mxu0 0
  %127 = vmatmul.mubr.bf16.gmra.mxu0 %v44
  %v128 = vpop.f32.mrf.mxu0
  %v129 = vadd.f32 %v38, %v128
  %v130 = vpop.f32.mrf.mxu0
  %v131 = vpop.f32.mrf.mxu0
  %v132 = vadd.f32 %v38, %v131
  %v133 = vpop.f32.mrf.mxu0
  %134 = vdwg.mxu0
  %v135 = vmax.f32 %v129, 0.0
  %v136 = vmax.f32 %v132, 0.0
  %137 = vst [vmem:[%s3] sm:$0xff] %v135
  %138 = vst [vmem:[%s3 + $0x8] sm:$0xff] %v136
  // Predicated region
  $region14: #{run.225} parent=0 // pred_check
    _
  $region15: #{run.225} parent=0 // pred_check_branch
    %140 = sbr.rel (0) target = $region17
  $region16: #{run.225} parent=0 // pred_region
    _
  $region17: #{run.225} parent=0 // pred_fallthru
    _
  // Predicated region
  $region18: #{run.225} parent=0 // pred_check
    _
  $region19: #{run.225} parent=0 // pred_check_branch
    %142 = sbr.rel (0) target = $region21
  $region20: #{run.225} parent=0 // pred_region
    _
  $region21: #{run.225} parent=0 // pred_fallthru
    _

// kernel: run.243
$region0: #{run.243}
  #allocation0 [shape = 'u32[]', space=smem, size = 0x4, offset = 0x4, fixed_abs, tag = 'smem constant byte address 0x4 - core index']
  #allocation1 [shape = 'u32[144,128]{1,0:T(1,128)}', space=vmem, size = 0x12000, scoped, tag = 'internal scratch']
  %s0 = inlined_call_operand.vmem [shape: bf16[16,128], index: 0, kind: input, shape index: {}]
  %s1 = inlined_call_operand.vmem [shape: bf16[128,128], index: 1, kind: input, shape index: {}]
  %s2 = inlined_call_operand.hbm [shape: f32[1,128], index: 2, kind: input, shape index: {}]
  %s3 = inlined_call_operand.vmem [shape: f32[16,128], index: 3, kind: output, shape index: {}]
  %s4 = sld [smem:[#allocation0]]
  $region26: #{run.243} parent=0
    _
  %s6 = ssub.s32 1, %s4
  %s7 = scalar_select 0, %s6, %s4
  $region1: #{run.243} parent=0
    #allocation2 [shape = 'u8[512]{0}', space=vmem, size = 0x400, scoped, tag = 'input window, operand 2, single buffered']
    #allocation3 [shape = 's32[1]{0}', space=sflag, size = 0x4, scoped, tag = 'scoped memory for run.243']
    %8 = vsyncpa [#allocation3], 0
    // Predicated region
    $region2: #{run.243} parent=1 // pred_check
      _
    $region3: #{run.243} parent=1 // pred_check_branch
      %10 = sbr.rel (0) target = $region5
    $region4: #{run.243} parent=1 // pred_region
      _
    $region5: #{run.243} parent=1 // pred_fallthru
      _
    // Predicated region
    $region6: #{run.243} parent=1 // pred_check
      _
    $region7: #{run.243} parent=1 // pred_check_branch
      %12 = sbr.rel (0) target = $region9
    $region8: #{run.243} parent=1 // pred_region
      _
    $region9: #{run.243} parent=1 // pred_fallthru
      _
    // Predicated region
    $region10: #{run.243} parent=1 // pred_check
      _
    $region11: #{run.243} parent=1 // pred_check_branch
      %14 = sbr.rel (0) target = $region13
    $region12: #{run.243} parent=1 // pred_region
      %s16 = ssub.s32 16, 16
      %17 = vsyncadd [#allocation3], %s16
      %s19 = sshll.u32 [#allocation2], 4
      %s20 = int_to_ptr.vmem [resolvable:$true] %s19
      %22 = dma.hbm_to_vmem [thread:$0]  %s2, 16, %s20, [#allocation3]
    $region13: #{run.243} parent=1 // pred_fallthru
      _
    // Predicated region
    $region14: #{run.243} parent=1 // pred_check
      _
    $region15: #{run.243} parent=1 // pred_check_branch
      %24 = sbr.rel (0) target = $region17
    $region16: #{run.243} parent=1 // pred_region
      %25 = dma.done [#allocation3], 16
    $region17: #{run.243} parent=1 // pred_fallthru
      _
    %v27 = vld [vmem:[%s0] sm:$0xf]
    %v28 = vld [vmem:[%s0 + $0x4] sm:$0xf]
    %v29 = vld [vmem:[%s1] sm:$0xf]
    %v30 = vld [vmem:[%s1 + $0x4] sm:$0xf]
    %v31 = vld [vmem:[%s1 + $0x8] sm:$0xf]
    %v32 = vld [vmem:[%s1 + $0xc] sm:$0xf]
    %v33 = vld [vmem:[%s1 + $0x10] sm:$0xf]
    %v34 = vld [vmem:[%s1 + $0x14] sm:$0xf]
    %v35 = vld [vmem:[%s1 + $0x18] sm:$0xf]
    %v36 = vld [vmem:[%s1 + $0x1c] sm:$0xf]
    %v37 = vld [vmem:[%s1 + $0x20] sm:$0xf]
    %v38 = vld [vmem:[%s1 + $0x24] sm:$0xf]
    %v39 = vld [vmem:[%s1 + $0x28] sm:$0xf]
    %v40 = vld [vmem:[%s1 + $0x2c] sm:$0xf]
    %v41 = vld [vmem:[%s1 + $0x30] sm:$0xf]
    %v42 = vld [vmem:[%s1 + $0x34] sm:$0xf]
    %v43 = vld [vmem:[%s1 + $0x38] sm:$0xf]
    %v44 = vld [vmem:[%s1 + $0x3c] sm:$0xf]
    %v45 = vld [vmem:[#allocation2] sm:$0x1]
    %v47 = vlaneseq
    %v48 = vshrl.u32 %v47, 7
    %v49 = vsub.s32 0, %v48
    %v50 = vrot.slane %v45, %v49
    %v54 = vunpack.c.l.b16 %v27
    %v55 = vunpack.c.l.b16 %v28
    %v56 = vpack.c.b16 %v55, %v54
    %v74 = vunpack.c.l.b16 %v29
    %v75 = vunpack.c.l.b16 %v30
    %v76 = vunpack.c.l.b16 %v31
    %v77 = vunpack.c.l.b16 %v32
    %v78 = vunpack.c.l.b16 %v33
    %v79 = vunpack.c.l.b16 %v34
    %v80 = vunpack.c.l.b16 %v35
    %v81 = vunpack.c.l.b16 %v36
    %v82 = vunpack.c.l.b16 %v37
    %v83 = vunpack.c.l.b16 %v38
    %v84 = vunpack.c.l.b16 %v39
    %v85 = vunpack.c.l.b16 %v40
    %v86 = vunpack.c.l.b16 %v41
    %v87 = vunpack.c.l.b16 %v42
    %v88 = vunpack.c.l.b16 %v43
    %v89 = vunpack.c.l.b16 %v44
    %v90 = vpack.c.b16 %v75, %v74
    %v91 = vpack.c.b16 %v77, %v76
    %v92 = vpack.c.b16 %v79, %v78
    %v93 = vpack.c.b16 %v81, %v80
    %v94 = vpack.c.b16 %v83, %v82
    %v95 = vpack.c.b16 %v85, %v84
    %v96 = vpack.c.b16 %v87, %v86
    %v97 = vpack.c.b16 %v89, %v88
    %106 = vmatprep.subr.bf16.mxu0 0
    %107 = vmatpush1.bf16.msra.mxu0 %v97
    %108 = vmatprep.subr.bf16.mxu0 0
    %109 = vmatpush1.bf16.msra.mxu0 %v96
    %110 = vmatprep.subr.bf16.mxu0 0
    %111 = vmatpush1.bf16.msra.mxu0 %v95
    %112 = vmatprep.subr.bf16.mxu0 0
    %113 = vmatpush1.bf16.msra.mxu0 %v94
    %114 = vmatprep.subr.bf16.mxu0 0
    %115 = vmatpush1.bf16.msra.mxu0 %v93
    %116 = vmatprep.subr.bf16.mxu0 0
    %117 = vmatpush1.bf16.msra.mxu0 %v92
    %118 = vmatprep.subr.bf16.mxu0 0
    %119 = vmatpush1.bf16.msra.mxu0 %v91
    %120 = vmatprep.subr.bf16.mxu0 0
    %121 = vmatpush1.bf16.msra.mxu0 %v90
    %122 = vmatprep.subr.bf16.mxu0 0
    %123 = vmatpush2.bf16.msra.mxu0 0
    %124 = vmatprep.subr.bf16.mxu0 0
    %125 = vmatpush2.bf16.msra.mxu0 0
    %126 = vmatprep.subr.bf16.mxu0 0
    %127 = vmatpush2.bf16.msra.mxu0 0
    %128 = vmatprep.subr.bf16.mxu0 0
    %129 = vmatpush2.bf16.msra.mxu0 0
    %130 = vmatprep.subr.bf16.mxu0 0
    %131 = vmatpush2.bf16.msra.mxu0 0
    %132 = vmatprep.subr.bf16.mxu0 0
    %133 = vmatpush2.bf16.msra.mxu0 0
    %134 = vmatprep.subr.bf16.mxu0 0
    %135 = vmatpush2.bf16.msra.mxu0 0
    %136 = vmatprep.subr.bf16.mxu0 0
    %137 = vmatpush2.bf16.msra.mxu0 0
    %138 = vmatprep.mubr.bf16.mxu0 0
    %139 = vmatmul.mubr.bf16.gmra.mxu0 %v56
    %v140 = vpop.f32.mrf.mxu0
    %v141 = vadd.f32 %v50, %v140
    %v142 = vpop.f32.mrf.mxu0
    %v143 = vpop.f32.mrf.mxu0
    %v144 = vadd.f32 %v50, %v143
    %v145 = vpop.f32.mrf.mxu0
    %146 = vdwg.mxu0
    %147 = vst [vmem:[%s3] sm:$0xff] %v141
    %148 = vst [vmem:[%s3 + $0x8] sm:$0xff] %v144
    // Predicated region
    $region18: #{run.243} parent=1 // pred_check
      _
    $region19: #{run.243} parent=1 // pred_check_branch
      %150 = sbr.rel (0) target = $region21
    $region20: #{run.243} parent=1 // pred_region
      _
    $region21: #{run.243} parent=1 // pred_fallthru
      _
    // Predicated region
    $region22: #{run.243} parent=1 // pred_check
      _
    $region23: #{run.243} parent=1 // pred_check_branch
      %152 = sbr.rel (0) target = $region25
    $region24: #{run.243} parent=1 // pred_region
      _
    $region25: #{run.243} parent=1 // pred_fallthru
      _
    %153 = vsyncpa [#allocation3], 1

// kernel: run.262
$region0: #{run.262}
  #allocation0 [shape = 'u32[]', space=smem, size = 0x4, offset = 0x4, fixed_abs, tag = 'smem constant byte address 0x4 - core index']
  #allocation1 [shape = 'u32[144,128]{1,0:T(1,128)}', space=vmem, size = 0x12000, scoped, tag = 'internal scratch']
  %s0 = inlined_call_operand.vmem [shape: bf16[16,128], index: 0, kind: input, shape index: {}]
  %s1 = inlined_call_operand.vmem [shape: bf16[128,128], index: 1, kind: input, shape index: {}]
  %s2 = inlined_call_operand.vmem [shape: f32[1,128], index: 2, kind: input, shape index: {}]
  %s3 = inlined_call_operand.vmem [shape: f32[16,128], index: 3, kind: output, shape index: {}]
  %s4 = sld [smem:[#allocation0]]
  $region22: #{run.262} parent=0
    _
  %s6 = ssub.s32 1, %s4
  %s7 = scalar_select 0, %s6, %s4
  // Predicated region
  $region2: #{run.262} parent=0 // pred_check
    _
  $region3: #{run.262} parent=0 // pred_check_branch
    %9 = sbr.rel (0) target = $region5
  $region4: #{run.262} parent=0 // pred_region
    _
  $region5: #{run.262} parent=0 // pred_fallthru
    _
  // Predicated region
  $region6: #{run.262} parent=0 // pred_check
    _
  $region7: #{run.262} parent=0 // pred_check_branch
    %11 = sbr.rel (0) target = $region9
  $region8: #{run.262} parent=0 // pred_region
    _
  $region9: #{run.262} parent=0 // pred_fallthru
    _
  // Predicated region
  $region10: #{run.262} parent=0 // pred_check
    _
  $region11: #{run.262} parent=0 // pred_check_branch
    %13 = sbr.rel (0) target = $region13
  $region12: #{run.262} parent=0 // pred_region
    _
  $region13: #{run.262} parent=0 // pred_fallthru
    _
  %v15 = vld [vmem:[%s0] sm:$0xf]
  %v16 = vld [vmem:[%s0 + $0x4] sm:$0xf]
  %v17 = vld [vmem:[%s1] sm:$0xf]
  %v18 = vld [vmem:[%s1 + $0x4] sm:$0xf]
  %v19 = vld [vmem:[%s1 + $0x8] sm:$0xf]
  %v20 = vld [vmem:[%s1 + $0xc] sm:$0xf]
  %v21 = vld [vmem:[%s1 + $0x10] sm:$0xf]
  %v22 = vld [vmem:[%s1 + $0x14] sm:$0xf]
  %v23 = vld [vmem:[%s1 + $0x18] sm:$0xf]
  %v24 = vld [vmem:[%s1 + $0x1c] sm:$0xf]
  %v25 = vld [vmem:[%s1 + $0x20] sm:$0xf]
  %v26 = vld [vmem:[%s1 + $0x24] sm:$0xf]
  %v27 = vld [vmem:[%s1 + $0x28] sm:$0xf]
  %v28 = vld [vmem:[%s1 + $0x2c] sm:$0xf]
  %v29 = vld [vmem:[%s1 + $0x30] sm:$0xf]
  %v30 = vld [vmem:[%s1 + $0x34] sm:$0xf]
  %v31 = vld [vmem:[%s1 + $0x38] sm:$0xf]
  %v32 = vld [vmem:[%s1 + $0x3c] sm:$0xf]
  %v33 = vld [vmem:[%s2] sm:$0x1]
  %v35 = vlaneseq
  %v36 = vshrl.u32 %v35, 7
  %v37 = vsub.s32 0, %v36
  %v38 = vrot.slane %v33, %v37
  %v42 = vunpack.c.l.b16 %v15
  %v43 = vunpack.c.l.b16 %v16
  %v44 = vpack.c.b16 %v43, %v42
  %v62 = vunpack.c.l.b16 %v17
  %v63 = vunpack.c.l.b16 %v18
  %v64 = vunpack.c.l.b16 %v19
  %v65 = vunpack.c.l.b16 %v20
  %v66 = vunpack.c.l.b16 %v21
  %v67 = vunpack.c.l.b16 %v22
  %v68 = vunpack.c.l.b16 %v23
  %v69 = vunpack.c.l.b16 %v24
  %v70 = vunpack.c.l.b16 %v25
  %v71 = vunpack.c.l.b16 %v26
  %v72 = vunpack.c.l.b16 %v27
  %v73 = vunpack.c.l.b16 %v28
  %v74 = vunpack.c.l.b16 %v29
  %v75 = vunpack.c.l.b16 %v30
  %v76 = vunpack.c.l.b16 %v31
  %v77 = vunpack.c.l.b16 %v32
  %v78 = vpack.c.b16 %v63, %v62
  %v79 = vpack.c.b16 %v65, %v64
  %v80 = vpack.c.b16 %v67, %v66
  %v81 = vpack.c.b16 %v69, %v68
  %v82 = vpack.c.b16 %v71, %v70
  %v83 = vpack.c.b16 %v73, %v72
  %v84 = vpack.c.b16 %v75, %v74
  %v85 = vpack.c.b16 %v77, %v76
  %94 = vmatprep.subr.bf16.mxu0 0
  %95 = vmatpush1.bf16.msra.mxu0 %v85
  %96 = vmatprep.subr.bf16.mxu0 0
  %97 = vmatpush1.bf16.msra.mxu0 %v84
  %98 = vmatprep.subr.bf16.mxu0 0
  %99 = vmatpush1.bf16.msra.mxu0 %v83
  %100 = vmatprep.subr.bf16.mxu0 0
  %101 = vmatpush1.bf16.msra.mxu0 %v82
  %102 = vmatprep.subr.bf16.mxu0 0
  %103 = vmatpush1.bf16.msra.mxu0 %v81
  %104 = vmatprep.subr.bf16.mxu0 0
  %105 = vmatpush1.bf16.msra.mxu0 %v80
  %106 = vmatprep.subr.bf16.mxu0 0
  %107 = vmatpush1.bf16.msra.mxu0 %v79
  %108 = vmatprep.subr.bf16.mxu0 0
  %109 = vmatpush1.bf16.msra.mxu0 %v78
  %110 = vmatprep.subr.bf16.mxu0 0
  %111 = vmatpush2.bf16.msra.mxu0 0
  %112 = vmatprep.subr.bf16.mxu0 0
  %113 = vmatpush2.bf16.msra.mxu0 0
  %114 = vmatprep.subr.bf16.mxu0 0
  %115 = vmatpush2.bf16.msra.mxu0 0
  %116 = vmatprep.subr.bf16.mxu0 0
  %117 = vmatpush2.bf16.msra.mxu0 0
  %118 = vmatprep.subr.bf16.mxu0 0
  %119 = vmatpush2.bf16.msra.mxu0 0
  %120 = vmatprep.subr.bf16.mxu0 0
  %121 = vmatpush2.bf16.msra.mxu0 0
  %122 = vmatprep.subr.bf16.mxu0 0
  %123 = vmatpush2.bf16.msra.mxu0 0
  %124 = vmatprep.subr.bf16.mxu0 0
  %125 = vmatpush2.bf16.msra.mxu0 0
  %126 = vmatprep.mubr.bf16.mxu0 0
  %127 = vmatmul.mubr.bf16.gmra.mxu0 %v44
  %v128 = vpop.f32.mrf.mxu0
  %v129 = vadd.f32 %v38, %v128
  %v130 = vpop.f32.mrf.mxu0
  %v131 = vpop.f32.mrf.mxu0
  %v132 = vadd.f32 %v38, %v131
  %v133 = vpop.f32.mrf.mxu0
  %134 = vdwg.mxu0
  %135 = vst [vmem:[%s3] sm:$0xff] %v129
  %136 = vst [vmem:[%s3 + $0x8] sm:$0xff] %v132
  // Predicated region
  $region14: #{run.262} parent=0 // pred_check
    _
  $region15: #{run.262} parent=0 // pred_check_branch
    %138 = sbr.rel (0) target = $region17
  $region16: #{run.262} parent=0 // pred_region
    _
  $region17: #{run.262} parent=0 // pred_fallthru
    _
  // Predicated region
  $region18: #{run.262} parent=0 // pred_check
    _
  $region19: #{run.262} parent=0 // pred_check_branch
    %140 = sbr.rel (0) target = $region21
  $region20: #{run.262} parent=0 // pred_region
    _
  $region21: #{run.262} parent=0 // pred_fallthru
    _

// kernel: run.264
$region0: #{run.264}
  #allocation0 [shape = 'u32[]', space=smem, size = 0x4, offset = 0x4, fixed_abs, tag = 'smem constant byte address 0x4 - core index']
  #allocation1 [shape = 'u32[144,128]{1,0:T(1,128)}', space=vmem, size = 0x12000, scoped, tag = 'internal scratch']
  %s0 = inlined_call_operand.vmem [shape: bf16[256,256], index: 0, kind: input, shape index: {}]
  %s1 = inlined_call_operand.vmem [shape: bf16[256,128], index: 1, kind: input, shape index: {}]
  %s2 = inlined_call_operand.vmem [shape: f32[1,128], index: 2, kind: input, shape index: {}]
  %s3 = inlined_call_operand.vmem [shape: f32[256,128], index: 3, kind: output, shape index: {}]
  %s4 = sld [smem:[#allocation0]]
  $region45: #{run.264} parent=0
    _
  %s6 = ssub.s32 1, %s4
  %s7 = scalar_select 0, %s6, %s4
  loop: start=0, step=1, limit=4
  $region2: #{run.264} parent=0 // loop_pre_header
    _
  $region3: #{run.264} parent=0 // loop_header
    %s9 = sphi 0, %s13
    %p10 = scmp.ge.s32.totalorder %s9, 4
    %s19 = sphi 0, %s21
    %s22 = sphi 0, %s19
    %s23 = sphi 0, %s22
    %s39 = sphi 0, %s23
    %s43 = sphi 0, %s43
    %s45 = sphi 0, %s43
    %s46 = sphi 0, %s45
    %s60 = sphi 0, %s46
    %s64 = sphi 0, %s64
    %s66 = sphi 0, %s64
    %s67 = sphi 0, %s66
    %s81 = sphi 0, %s67
    %s87 = sphi 0, %s89
    %s90 = sphi 0, %s87
    %s91 = sphi 0, %s90
    %s107 = sphi 0, %s91
  $region4: #{run.264} parent=0 // loop_header_branch
    %12 = sbr.rel (%p10) target = $region8
  $region5: #{run.264} parent=0 // loop_body
    %s14 = ssub.s32 %s9, 1
    %s15 = ssub.s32 %s9, 2
    %s16 = sadd.s32 %s9, 1
    %s17 = ssub.s32 %s9, %s16
    %p18 = scmp.eq.s32.totalorder %s17, 0
    %s20 = sadd.s32 %s19, 1
    %s21 = scalar_select %p18, %s19, %s20
    %p24 = pneg %p18
    %p25 = scmp.eq.s32.totalorder %s9, 1
    %p26 = por %p24, %p25
    %p27 = scmp.ne.s32.totalorder %s19, %s22
    %p28 = scmp.eq.s32.totalorder %s9, 0
    %p29 = por %p27, %p28
    %p30 = scmp.ne.s32.totalorder %s19, %s22
    %p31 = scmp.eq.s32.totalorder %s14, 1
    %p32 = por %p30, %p31
    %p33 = scmp.ne.s32.totalorder %s22, %s23
    %p34 = scmp.eq.s32.totalorder %s14, 0
    %p35 = por %p33, %p34
    %p36 = scmp.ne.s32.totalorder %s22, %s23
    %p37 = scmp.eq.s32.totalorder %s15, 1
    %p38 = por %p36, %p37
    %p40 = scmp.ne.s32.totalorder %s23, %s39
    %p41 = scmp.eq.s32.totalorder %s15, 0
    %p42 = por %p40, %p41
    %s44 = sadd.s32 %s43, 1
    %p47 = scmp.eq.s32.totalorder %s9, 1
    %p48 = scmp.ne.s32.totalorder %s43, %s45
    %p49 = scmp.eq.s32.totalorder %s9, 0
    %p50 = por %p48, %p49
    %p51 = scmp.ne.s32.totalorder %s43, %s45
    %p52 = scmp.eq.s32.totalorder %s14, 1
    %p53 = por %p51, %p52
    %p54 = scmp.ne.s32.totalorder %s45, %s46
    %p55 = scmp.eq.s32.totalorder %s14, 0
    %p56 = por %p54, %p55
    %p57 = scmp.ne.s32.totalorder %s45, %s46
    %p58 = scmp.eq.s32.totalorder %s15, 1
    %p59 = por %p57, %p58
    %p61 = scmp.ne.s32.totalorder %s46, %s60
    %p62 = scmp.eq.s32.totalorder %s15, 0
    %p63 = por %p61, %p62
    %s65 = sadd.s32 %s64, 1
    %p68 = scmp.eq.s32.totalorder %s9, 1
    %p69 = scmp.ne.s32.totalorder %s64, %s66
    %p70 = scmp.eq.s32.totalorder %s9, 0
    %p71 = por %p69, %p70
    %p72 = scmp.ne.s32.totalorder %s64, %s66
    %p73 = scmp.eq.s32.totalorder %s14, 1
    %p74 = por %p72, %p73
    %p75 = scmp.ne.s32.totalorder %s66, %s67
    %p76 = scmp.eq.s32.totalorder %s14, 0
    %p77 = por %p75, %p76
    %p78 = scmp.ne.s32.totalorder %s66, %s67
    %p79 = scmp.eq.s32.totalorder %s15, 1
    %p80 = por %p78, %p79
    %p82 = scmp.ne.s32.totalorder %s67, %s81
    %p83 = scmp.eq.s32.totalorder %s15, 0
    %p84 = por %p82, %p83
    %s85 = ssub.s32 %s9, %s16
    %p86 = scmp.eq.s32.totalorder %s85, 0
    %s88 = sadd.s32 %s87, 1
    %s89 = scalar_select %p86, %s87, %s88
    %p92 = pneg %p86
    %p93 = scmp.eq.s32.totalorder %s9, 1
    %p94 = por %p92, %p93
    %p95 = scmp.ne.s32.totalorder %s87, %s90
    %p96 = scmp.eq.s32.totalorder %s9, 0
    %p97 = por %p95, %p96
    %p98 = scmp.ne.s32.totalorder %s87, %s90
    %p99 = scmp.eq.s32.totalorder %s14, 1
    %p100 = por %p98, %p99
    %p101 = scmp.ne.s32.totalorder %s90, %s91
    %p102 = scmp.eq.s32.totalorder %s14, 0
    %p103 = por %p101, %p102
    %p104 = scmp.ne.s32.totalorder %s90, %s91
    %p105 = scmp.eq.s32.totalorder %s15, 1
    %p106 = por %p104, %p105
    %p108 = scmp.ne.s32.totalorder %s91, %s107
    %p109 = scmp.eq.s32.totalorder %s15, 0
    %p110 = por %p108, %p109
    %p111 = scmp.le.s32.totalorder 1, %s9
    %p112 = scmp.lt.s32.totalorder %s9, 3
    %p113 = pnand %p111, %p112
    %p114 = pneg %p113
    // Predicated region
    $region9: #{run.264} parent=5 // pred_check
      _
    $region10: #{run.264} parent=5 // pred_check_branch
      %116 = sbr.rel (%p113) target = $region12
    $region11: #{run.264} parent=5 // pred_region
      %s117 = ssub.s32 %s9, 1
      // Predicated region
      $region13: #{run.264} parent=11 // pred_check
        %p118 = pneg %p56
      $region14: #{run.264} parent=11 // pred_check_branch
        %120 = sbr.rel (%p118) target = $region16
      $region15: #{run.264} parent=11 // pred_region
        _
      $region16: #{run.264} parent=11 // pred_fallthru
        _
      // Predicated region
      $region17: #{run.264} parent=11 // pred_check
        %p121 = pneg %p77
      $region18: #{run.264} parent=11 // pred_check_branch
        %123 = sbr.rel (%p121) target = $region20
      $region19: #{run.264} parent=11 // pred_region
        _
      $region20: #{run.264} parent=11 // pred_fallthru
        _
    $region12: #{run.264} parent=5 // pred_fallthru
      _
    %p124 = scmp.lt.s32.totalorder %s9, 2
    // Predicated region
    $region21: #{run.264} parent=5 // pred_check
      %p125 = pneg %p124
    $region22: #{run.264} parent=5 // pred_check_branch
      %127 = sbr.rel (%p125) target = $region24
    $region23: #{run.264} parent=5 // pred_region
      // Predicated region
      $region25: #{run.264} parent=23 // pred_check
        %p128 = pneg %p29
      $region26: #{run.264} parent=23 // pred_check_branch
        %130 = sbr.rel (%p128) target = $region28
      $region27: #{run.264} parent=23 // pred_region
        %s131 = smul.u32 16, %s9
        %p132 = scmp.lt.s32.totalorder %s131, 31
        %s133 = scalar_select %p132, %s131, 31
        %s134 = smul.addr %s133, 2
        %s135 = smul.addr %s134, 4
        %s136 = scalar_lea.vmem %s0, %s135
        %s137 = smul.u32 16, %s9
      $region28: #{run.264} parent=23 // pred_fallthru
        _
    $region24: #{run.264} parent=5 // pred_fallthru
      _
    %p138 = scmp.le.s32.totalorder 1, %s9
    %p139 = scmp.lt.s32.totalorder %s9, 3
    %p140 = pnand %p138, %p139
    %p141 = pneg %p140
    // Predicated region
    $region29: #{run.264} parent=5 // pred_check
      _
    $region30: #{run.264} parent=5 // pred_check_branch
      %143 = sbr.rel (%p140) target = $region32
    $region31: #{run.264} parent=5 // pred_region
      %s144 = ssub.s32 %s9, 1
      %s145 = smul.u32 16, %s14
      %p146 = scmp.lt.s32.totalorder %s145, 31
      %s147 = scalar_select %p146, %s145, 31
      %s148 = smul.addr %s147, 2
      %s149 = smul.addr %s148, 4
      %s150 = scalar_lea.vmem %s0, %s149
      %p151 = pneg %p35
      %p152 = pneg %p32
      %p153 = pneg %p56
      %p154 = pneg %p53
      %p155 = pneg %p77
      %p156 = pneg %p74
      %p157 = pneg %p103
      %p158 = pneg %p100
      %s159 = smul.u32 16, %s14
      %p160 = scmp.lt.s32.totalorder %s159, 31
      %s161 = scalar_select %p160, %s159, 31
      %s162 = smul.addr %s161, 8
      %s163 = scalar_lea.vmem %s3, %s162
      %s164 = smul.u32 16, %s14
      %p165 = scmp.lt.s32.totalorder %s164, 31
      %s166 = scalar_select %p165, %s164, 31
      %s167 = smul.addr %s166, 2
      %s168 = smul.addr %s167, 4
      %s169 = scalar_lea.vmem %s0, %s168
      %s170 = smul.u32 16, %s14
      %s171 = smul.u32 16, %s14
      %p172 = scmp.lt.s32.totalorder %s171, 31
      %s173 = scalar_select %p172, %s171, 31
      %s174 = smul.addr %s173, 8
      %s175 = scalar_lea.vmem %s3, %s174
      %s176 = smul.u32 16, %s14
      %v178 = vld [vmem:[%s169] sm:$0xff]
      %v179 = vld [vmem:[%s169 + $0x8] sm:$0xff]
      %v180 = vld [vmem:[%s169 + $0x10] sm:$0xff]
      %v181 = vld [vmem:[%s169 + $0x18] sm:$0xff]
      %v182 = vld [vmem:[%s169 + $0x20] sm:$0xff]
      %v183 = vld [vmem:[%s169 + $0x28] sm:$0xff]
      %v184 = vld [vmem:[%s169 + $0x30] sm:$0xff]
      %v185 = vld [vmem:[%s169 + $0x38] sm:$0xff]
      %v186 = vld [vmem:[%s169 + $0x40] sm:$0xff]
      %v187 = vld [vmem:[%s169 + $0x48] sm:$0xff]
      %v188 = vld [vmem:[%s169 + $0x50] sm:$0xff]
      %v189 = vld [vmem:[%s169 + $0x58] sm:$0xff]
      %v190 = vld [vmem:[%s169 + $0x60] sm:$0xff]
      %v191 = vld [vmem:[%s169 + $0x68] sm:$0xff]
      %v192 = vld [vmem:[%s169 + $0x70] sm:$0xff]
      %v193 = vld [vmem:[%s169 + $0x78] sm:$0xff]
      %v194 = vld [vmem:[%s1] sm:$0xf]
      %v195 = vld [vmem:[%s1 + $0x4] sm:$0xf]
      %v196 = vld [vmem:[%s1 + $0x8] sm:$0xf]
      %v197 = vld [vmem:[%s1 + $0xc] sm:$0xf]
      %v198 = vld [vmem:[%s1 + $0x10] sm:$0xf]
      %v199 = vld [vmem:[%s1 + $0x14] sm:$0xf]
      %v200 = vld [vmem:[%s1 + $0x18] sm:$0xf]
      %v201 = vld [vmem:[%s1 + $0x1c] sm:$0xf]
      %v202 = vld [vmem:[%s1 + $0x20] sm:$0xf]
      %v203 = vld [vmem:[%s1 + $0x24] sm:$0xf]
      %v204 = vld [vmem:[%s1 + $0x28] sm:$0xf]
      %v205 = vld [vmem:[%s1 + $0x2c] sm:$0xf]
      %v206 = vld [vmem:[%s1 + $0x30] sm:$0xf]
      %v207 = vld [vmem:[%s1 + $0x34] sm:$0xf]
      %v208 = vld [vmem:[%s1 + $0x38] sm:$0xf]
      %v209 = vld [vmem:[%s1 + $0x3c] sm:$0xf]
      %v210 = vld [vmem:[%s1 + $0x40] sm:$0xf]
      %v211 = vld [vmem:[%s1 + $0x44] sm:$0xf]
      %v212 = vld [vmem:[%s1 + $0x48] sm:$0xf]
      %v213 = vld [vmem:[%s1 + $0x4c] sm:$0xf]
      %v214 = vld [vmem:[%s1 + $0x50] sm:$0xf]
      %v215 = vld [vmem:[%s1 + $0x54] sm:$0xf]
      %v216 = vld [vmem:[%s1 + $0x58] sm:$0xf]
      %v217 = vld [vmem:[%s1 + $0x5c] sm:$0xf]
      %v218 = vld [vmem:[%s1 + $0x60] sm:$0xf]
      %v219 = vld [vmem:[%s1 + $0x64] sm:$0xf]
      %v220 = vld [vmem:[%s1 + $0x68] sm:$0xf]
      %v221 = vld [vmem:[%s1 + $0x6c] sm:$0xf]
      %v222 = vld [vmem:[%s1 + $0x70] sm:$0xf]
      %v223 = vld [vmem:[%s1 + $0x74] sm:$0xf]
      %v224 = vld [vmem:[%s1 + $0x78] sm:$0xf]
      %v225 = vld [vmem:[%s1 + $0x7c] sm:$0xf]
      %v226 = vld [vmem:[%s2] sm:$0x1]
      %v228 = vlaneseq
      %v229 = vshrl.u32 %v228, 7
      %v230 = vsub.s32 0, %v229
      %v231 = vrot.slane %v226, %v230
      %v249 = vunpack.c.l.b16 %v178
      %v250 = vunpack.c.h.b16 %v178
      %v251 = vunpack.c.l.b16 %v179
      %v252 = vunpack.c.h.b16 %v179
      %v253 = vunpack.c.l.b16 %v180
      %v254 = vunpack.c.h.b16 %v180
      %v255 = vunpack.c.l.b16 %v181
      %v256 = vunpack.c.h.b16 %v181
      %v257 = vunpack.c.l.b16 %v182
      %v258 = vunpack.c.h.b16 %v182
      %v259 = vunpack.c.l.b16 %v183
      %v260 = vunpack.c.h.b16 %v183
      %v261 = vunpack.c.l.b16 %v184
      %v262 = vunpack.c.h.b16 %v184
      %v263 = vunpack.c.l.b16 %v185
      %v264 = vunpack.c.h.b16 %v185
      %v265 = vunpack.c.l.b16 %v186
      %v266 = vunpack.c.h.b16 %v186
      %v267 = vunpack.c.l.b16 %v187
      %v268 = vunpack.c.h.b16 %v187
      %v269 = vunpack.c.l.b16 %v188
      %v270 = vunpack.c.h.b16 %v188
      %v271 = vunpack.c.l.b16 %v189
      %v272 = vunpack.c.h.b16 %v189
      %v273 = vunpack.c.l.b16 %v190
      %v274 = vunpack.c.h.b16 %v190
      %v275 = vunpack.c.l.b16 %v191
      %v276 = vunpack.c.h.b16 %v191
      %v277 = vunpack.c.l.b16 %v192
      %v278 = vunpack.c.h.b16 %v192
      %v279 = vunpack.c.l.b16 %v193
      %v280 = vunpack.c.h.b16 %v193
      %v281 = vpack.c.b16 %v251, %v249
      %v282 = vpack.c.b16 %v252, %v250
      %v283 = vpack.c.b16 %v255, %v253
      %v284 = vpack.c.b16 %v256, %v254
      %v285 = vpack.c.b16 %v259, %v257
      %v286 = vpack.c.b16 %v260, %v258
      %v287 = vpack.c.b16 %v263, %v261
      %v288 = vpack.c.b16 %v264, %v262
      %v289 = vpack.c.b16 %v267, %v265
      %v290 = vpack.c.b16 %v268, %v266
      %v291 = vpack.c.b16 %v271, %v269
      %v292 = vpack.c.b16 %v272, %v270
      %v293 = vpack.c.b16 %v275, %v273
      %v294 = vpack.c.b16 %v276, %v274
      %v295 = vpack.c.b16 %v279, %v277
      %v296 = vpack.c.b16 %v280, %v278
      %v345 = vunpack.c.l.b16 %v194
      %v346 = vunpack.c.l.b16 %v195
      %v347 = vunpack.c.l.b16 %v196
      %v348 = vunpack.c.l.b16 %v197
      %v349 = vunpack.c.l.b16 %v198
      %v350 = vunpack.c.l.b16 %v199
      %v351 = vunpack.c.l.b16 %v200
      %v352 = vunpack.c.l.b16 %v201
      %v353 = vunpack.c.l.b16 %v202
      %v354 = vunpack.c.l.b16 %v203
      %v355 = vunpack.c.l.b16 %v204
      %v356 = vunpack.c.l.b16 %v205
      %v357 = vunpack.c.l.b16 %v206
      %v358 = vunpack.c.l.b16 %v207
      %v359 = vunpack.c.l.b16 %v208
      %v360 = vunpack.c.l.b16 %v209
      %v361 = vunpack.c.l.b16 %v210
      %v362 = vunpack.c.l.b16 %v211
      %v363 = vunpack.c.l.b16 %v212
      %v364 = vunpack.c.l.b16 %v213
      %v365 = vunpack.c.l.b16 %v214
      %v366 = vunpack.c.l.b16 %v215
      %v367 = vunpack.c.l.b16 %v216
      %v368 = vunpack.c.l.b16 %v217
      %v369 = vunpack.c.l.b16 %v218
      %v370 = vunpack.c.l.b16 %v219
      %v371 = vunpack.c.l.b16 %v220
      %v372 = vunpack.c.l.b16 %v221
      %v373 = vunpack.c.l.b16 %v222
      %v374 = vunpack.c.l.b16 %v223
      %v375 = vunpack.c.l.b16 %v224
      %v376 = vunpack.c.l.b16 %v225
      %v377 = vpack.c.b16 %v346, %v345
      %v378 = vpack.c.b16 %v348, %v347
      %v379 = vpack.c.b16 %v350, %v349
      %v380 = vpack.c.b16 %v352, %v351
      %v381 = vpack.c.b16 %v354, %v353
      %v382 = vpack.c.b16 %v356, %v355
      %v383 = vpack.c.b16 %v358, %v357
      %v384 = vpack.c.b16 %v360, %v359
      %v385 = vpack.c.b16 %v362, %v361
      %v386 = vpack.c.b16 %v364, %v363
      %v387 = vpack.c.b16 %v366, %v365
      %v388 = vpack.c.b16 %v368, %v367
      %v389 = vpack.c.b16 %v370, %v369
      %v390 = vpack.c.b16 %v372, %v371
      %v391 = vpack.c.b16 %v374, %v373
      %v392 = vpack.c.b16 %v376, %v375
      %409 = vmatprep.subr.bf16.mxu0 0
      %410 = vmatpush1.bf16.msra.mxu0 %v384
      %411 = vmatprep.subr.bf16.mxu0 0
      %412 = vmatpush1.bf16.msra.mxu0 %v383
      %413 = vmatprep.subr.bf16.mxu0 0
      %414 = vmatpush1.bf16.msra.mxu0 %v382
      %415 = vmatprep.subr.bf16.mxu0 0
      %416 = vmatpush1.bf16.msra.mxu0 %v381
      %417 = vmatprep.subr.bf16.mxu0 0
      %418 = vmatpush1.bf16.msra.mxu0 %v380
      %419 = vmatprep.subr.bf16.mxu0 0
      %420 = vmatpush1.bf16.msra.mxu0 %v379
      %421 = vmatprep.subr.bf16.mxu0 0
      %422 = vmatpush1.bf16.msra.mxu0 %v378
      %423 = vmatprep.subr.bf16.mxu0 0
      %424 = vmatpush1.bf16.msra.mxu0 %v377
      %425 = vmatprep.subr.bf16.mxu0 0
      %426 = vmatpush2.bf16.msra.mxu0 %v392
      %427 = vmatprep.subr.bf16.mxu0 0
      %428 = vmatpush2.bf16.msra.mxu0 %v391
      %429 = vmatprep.subr.bf16.mxu0 0
      %430 = vmatpush2.bf16.msra.mxu0 %v390
      %431 = vmatprep.subr.bf16.mxu0 0
      %432 = vmatpush2.bf16.msra.mxu0 %v389
      %433 = vmatprep.subr.bf16.mxu0 0
      %434 = vmatpush2.bf16.msra.mxu0 %v388
      %435 = vmatprep.subr.bf16.mxu0 0
      %436 = vmatpush2.bf16.msra.mxu0 %v387
      %437 = vmatprep.subr.bf16.mxu0 0
      %438 = vmatpush2.bf16.msra.mxu0 %v386
      %439 = vmatprep.subr.bf16.mxu0 0
      %440 = vmatpush2.bf16.msra.mxu0 %v385
      %441 = vmatprep.mubr.bf16.mxu0 %v282
      %442 = vmatmul.mubr.bf16.gmra.mxu0 %v281
      %v443 = vpop.f32.mrf.mxu0
      %v444 = vadd.f32 %v231, %v443
      %v445 = vpop.f32.mrf.mxu0
      %v446 = vpop.f32.mrf.mxu0
      %v447 = vadd.f32 %v231, %v446
      %v448 = vpop.f32.mrf.mxu0
      %449 = vmatprep.mubr.bf16.mxu0 %v284
      %450 = vmatmul.mubr.bf16.gmra.mxu0 %v283
      %v451 = vpop.f32.mrf.mxu0
      %v452 = vadd.f32 %v231, %v451
      %v453 = vpop.f32.mrf.mxu0
      %v454 = vpop.f32.mrf.mxu0
      %v455 = vadd.f32 %v231, %v454
      %v456 = vpop.f32.mrf.mxu0
      %457 = vmatprep.mubr.bf16.mxu0 %v286
      %458 = vmatmul.mubr.bf16.gmra.mxu0 %v285
      %v459 = vpop.f32.mrf.mxu0
      %v460 = vadd.f32 %v231, %v459
      %v461 = vpop.f32.mrf.mxu0
      %v462 = vpop.f32.mrf.mxu0
      %v463 = vadd.f32 %v231, %v462
      %v464 = vpop.f32.mrf.mxu0
      %465 = vmatprep.mubr.bf16.mxu0 %v288
      %466 = vmatmul.mubr.bf16.gmra.mxu0 %v287
      %v467 = vpop.f32.mrf.mxu0
      %v468 = vadd.f32 %v231, %v467
      %v469 = vpop.f32.mrf.mxu0
      %v470 = vpop.f32.mrf.mxu0
      %v471 = vadd.f32 %v231, %v470
      %v472 = vpop.f32.mrf.mxu0
      %473 = vmatprep.mubr.bf16.mxu0 %v290
      %474 = vmatmul.mubr.bf16.gmra.mxu0 %v289
      %v475 = vpop.f32.mrf.mxu0
      %v476 = vadd.f32 %v231, %v475
      %v477 = vpop.f32.mrf.mxu0
      %v478 = vpop.f32.mrf.mxu0
      %v479 = vadd.f32 %v231, %v478
      %v480 = vpop.f32.mrf.mxu0
      %481 = vmatprep.mubr.bf16.mxu0 %v292
      %482 = vmatmul.mubr.bf16.gmra.mxu0 %v291
      %v483 = vpop.f32.mrf.mxu0
      %v484 = vadd.f32 %v231, %v483
      %v485 = vpop.f32.mrf.mxu0
      %v486 = vpop.f32.mrf.mxu0
      %v487 = vadd.f32 %v231, %v486
      %v488 = vpop.f32.mrf.mxu0
      %489 = vmatprep.mubr.bf16.mxu0 %v294
      %490 = vmatmul.mubr.bf16.gmra.mxu0 %v293
      %v491 = vpop.f32.mrf.mxu0
      %v492 = vadd.f32 %v231, %v491
      %v493 = vpop.f32.mrf.mxu0
      %v494 = vpop.f32.mrf.mxu0
      %v495 = vadd.f32 %v231, %v494
      %v496 = vpop.f32.mrf.mxu0
      %497 = vmatprep.mubr.bf16.mxu0 %v296
      %498 = vmatmul.mubr.bf16.gmra.mxu0 %v295
      %v499 = vpop.f32.mrf.mxu0
      %v500 = vadd.f32 %v231, %v499
      %v501 = vpop.f32.mrf.mxu0
      %v502 = vpop.f32.mrf.mxu0
      %v503 = vadd.f32 %v231, %v502
      %v504 = vpop.f32.mrf.mxu0
      %505 = vdwg.mxu0
      %v506 = vmax.f32 %v444, 0.0
      %v507 = vmax.f32 %v447, 0.0
      %v508 = vmax.f32 %v452, 0.0
      %v509 = vmax.f32 %v455, 0.0
      %v510 = vmax.f32 %v460, 0.0
      %v511 = vmax.f32 %v463, 0.0
      %v512 = vmax.f32 %v468, 0.0
      %v513 = vmax.f32 %v471, 0.0
      %v514 = vmax.f32 %v476, 0.0
      %v515 = vmax.f32 %v479, 0.0
      %v516 = vmax.f32 %v484, 0.0
      %v517 = vmax.f32 %v487, 0.0
      %v518 = vmax.f32 %v492, 0.0
      %v519 = vmax.f32 %v495, 0.0
      %v520 = vmax.f32 %v500, 0.0
      %v521 = vmax.f32 %v503, 0.0
      %522 = vst [vmem:[%s175] sm:$0xff] %v506
      %523 = vst [vmem:[%s175 + $0x8] sm:$0xff] %v507
      %524 = vst [vmem:[%s175 + $0x10] sm:$0xff] %v508
      %525 = vst [vmem:[%s175 + $0x18] sm:$0xff] %v509
      %526 = vst [vmem:[%s175 + $0x20] sm:$0xff] %v510
      %527 = vst [vmem:[%s175 + $0x28] sm:$0xff] %v511
      %528 = vst [vmem:[%s175 + $0x30] sm:$0xff] %v512
      %529 = vst [vmem:[%s175 + $0x38] sm:$0xff] %v513
      %530 = vst [vmem:[%s175 + $0x40] sm:$0xff] %v514
      %531 = vst [vmem:[%s175 + $0x48] sm:$0xff] %v515
      %532 = vst [vmem:[%s175 + $0x50] sm:$0xff] %v516
      %533 = vst [vmem:[%s175 + $0x58] sm:$0xff] %v517
      %534 = vst [vmem:[%s175 + $0x60] sm:$0xff] %v518
      %535 = vst [vmem:[%s175 + $0x68] sm:$0xff] %v519
      %536 = vst [vmem:[%s175 + $0x70] sm:$0xff] %v520
      %537 = vst [vmem:[%s175 + $0x78] sm:$0xff] %v521
      %s538 = smul.u32 16, %s14
      %p539 = scmp.lt.s32.totalorder %s538, 31
      %s540 = scalar_select %p539, %s538, 31
      %s541 = smul.addr %s540, 8
      %s542 = scalar_lea.vmem %s3, %s541
      // Predicated region
      $region33: #{run.264} parent=31 // pred_check
        %p543 = pneg %p100
      $region34: #{run.264} parent=31 // pred_check_branch
        %545 = sbr.rel (%p543) target = $region36
      $region35: #{run.264} parent=31 // pred_region
        %s546 = smul.u32 16, %s14
      $region36: #{run.264} parent=31 // pred_fallthru
        _
    $region32: #{run.264} parent=5 // pred_fallthru
      _
    %p547 = scmp.le.s32.totalorder 2, %s9
    // Predicated region
    $region37: #{run.264} parent=5 // pred_check
      %p548 = pneg %p547
    $region38: #{run.264} parent=5 // pred_check_branch
      %550 = sbr.rel (%p548) target = $region40
    $region39: #{run.264} parent=5 // pred_region
      %s551 = ssub.s32 %s9, 2
      // Predicated region
      $region41: #{run.264} parent=39 // pred_check
        %p552 = pneg %p106
      $region42: #{run.264} parent=39 // pred_check_branch
        %554 = sbr.rel (%p552) target = $region44
      $region43: #{run.264} parent=39 // pred_region
        %s555 = smul.u32 16, %s15
        %p556 = scmp.lt.s32.totalorder %s555, 31
        %s557 = scalar_select %p556, %s555, 31
        %s558 = smul.addr %s557, 8
        %s559 = scalar_lea.vmem %s3, %s558
      $region44: #{run.264} parent=39 // pred_fallthru
        _
    $region40: #{run.264} parent=5 // pred_fallthru
      _
  $region6: #{run.264} parent=0 // loop_footer
    %s13 = sadd.s32 1, %s9
  $region7: #{run.264} parent=0 // loop_footer_branch
    %8 = sbr.rel target = $region3
  $region8: #{run.264} parent=0 // loop_exit
    _

// kernel: run.265
$region0: #{run.265}
  #allocation0 [shape = 'u32[]', space=smem, size = 0x4, offset = 0x4, fixed_abs, tag = 'smem constant byte address 0x4 - core index']
  #allocation1 [shape = 'u32[144,128]{1,0:T(1,128)}', space=vmem, size = 0x12000, scoped, tag = 'internal scratch']
  %s0 = inlined_call_operand.vmem [shape: bf16[256,128], index: 0, kind: input, shape index: {}]
  %s1 = inlined_call_operand.vmem [shape: bf16[128,128], index: 1, kind: input, shape index: {}]
  %s2 = inlined_call_operand.vmem [shape: f32[1,128], index: 2, kind: input, shape index: {}]
  %s3 = inlined_call_operand.vmem [shape: f32[256,128], index: 3, kind: output, shape index: {}]
  %s4 = sld [smem:[#allocation0]]
  $region45: #{run.265} parent=0
    _
  %s6 = ssub.s32 1, %s4
  %s7 = scalar_select 0, %s6, %s4
  loop: start=0, step=1, limit=4
  $region2: #{run.265} parent=0 // loop_pre_header
    _
  $region3: #{run.265} parent=0 // loop_header
    %s9 = sphi 0, %s13
    %p10 = scmp.ge.s32.totalorder %s9, 4
    %s19 = sphi 0, %s21
    %s22 = sphi 0, %s19
    %s23 = sphi 0, %s22
    %s39 = sphi 0, %s23
    %s43 = sphi 0, %s43
    %s45 = sphi 0, %s43
    %s46 = sphi 0, %s45
    %s60 = sphi 0, %s46
    %s64 = sphi 0, %s64
    %s66 = sphi 0, %s64
    %s67 = sphi 0, %s66
    %s81 = sphi 0, %s67
    %s87 = sphi 0, %s89
    %s90 = sphi 0, %s87
    %s91 = sphi 0, %s90
    %s107 = sphi 0, %s91
  $region4: #{run.265} parent=0 // loop_header_branch
    %12 = sbr.rel (%p10) target = $region8
  $region5: #{run.265} parent=0 // loop_body
    %s14 = ssub.s32 %s9, 1
    %s15 = ssub.s32 %s9, 2
    %s16 = sadd.s32 %s9, 1
    %s17 = ssub.s32 %s9, %s16
    %p18 = scmp.eq.s32.totalorder %s17, 0
    %s20 = sadd.s32 %s19, 1
    %s21 = scalar_select %p18, %s19, %s20
    %p24 = pneg %p18
    %p25 = scmp.eq.s32.totalorder %s9, 1
    %p26 = por %p24, %p25
    %p27 = scmp.ne.s32.totalorder %s19, %s22
    %p28 = scmp.eq.s32.totalorder %s9, 0
    %p29 = por %p27, %p28
    %p30 = scmp.ne.s32.totalorder %s19, %s22
    %p31 = scmp.eq.s32.totalorder %s14, 1
    %p32 = por %p30, %p31
    %p33 = scmp.ne.s32.totalorder %s22, %s23
    %p34 = scmp.eq.s32.totalorder %s14, 0
    %p35 = por %p33, %p34
    %p36 = scmp.ne.s32.totalorder %s22, %s23
    %p37 = scmp.eq.s32.totalorder %s15, 1
    %p38 = por %p36, %p37
    %p40 = scmp.ne.s32.totalorder %s23, %s39
    %p41 = scmp.eq.s32.totalorder %s15, 0
    %p42 = por %p40, %p41
    %s44 = sadd.s32 %s43, 1
    %p47 = scmp.eq.s32.totalorder %s9, 1
    %p48 = scmp.ne.s32.totalorder %s43, %s45
    %p49 = scmp.eq.s32.totalorder %s9, 0
    %p50 = por %p48, %p49
    %p51 = scmp.ne.s32.totalorder %s43, %s45
    %p52 = scmp.eq.s32.totalorder %s14, 1
    %p53 = por %p51, %p52
    %p54 = scmp.ne.s32.totalorder %s45, %s46
    %p55 = scmp.eq.s32.totalorder %s14, 0
    %p56 = por %p54, %p55
    %p57 = scmp.ne.s32.totalorder %s45, %s46
    %p58 = scmp.eq.s32.totalorder %s15, 1
    %p59 = por %p57, %p58
    %p61 = scmp.ne.s32.totalorder %s46, %s60
    %p62 = scmp.eq.s32.totalorder %s15, 0
    %p63 = por %p61, %p62
    %s65 = sadd.s32 %s64, 1
    %p68 = scmp.eq.s32.totalorder %s9, 1
    %p69 = scmp.ne.s32.totalorder %s64, %s66
    %p70 = scmp.eq.s32.totalorder %s9, 0
    %p71 = por %p69, %p70
    %p72 = scmp.ne.s32.totalorder %s64, %s66
    %p73 = scmp.eq.s32.totalorder %s14, 1
    %p74 = por %p72, %p73
    %p75 = scmp.ne.s32.totalorder %s66, %s67
    %p76 = scmp.eq.s32.totalorder %s14, 0
    %p77 = por %p75, %p76
    %p78 = scmp.ne.s32.totalorder %s66, %s67
    %p79 = scmp.eq.s32.totalorder %s15, 1
    %p80 = por %p78, %p79
    %p82 = scmp.ne.s32.totalorder %s67, %s81
    %p83 = scmp.eq.s32.totalorder %s15, 0
    %p84 = por %p82, %p83
    %s85 = ssub.s32 %s9, %s16
    %p86 = scmp.eq.s32.totalorder %s85, 0
    %s88 = sadd.s32 %s87, 1
    %s89 = scalar_select %p86, %s87, %s88
    %p92 = pneg %p86
    %p93 = scmp.eq.s32.totalorder %s9, 1
    %p94 = por %p92, %p93
    %p95 = scmp.ne.s32.totalorder %s87, %s90
    %p96 = scmp.eq.s32.totalorder %s9, 0
    %p97 = por %p95, %p96
    %p98 = scmp.ne.s32.totalorder %s87, %s90
    %p99 = scmp.eq.s32.totalorder %s14, 1
    %p100 = por %p98, %p99
    %p101 = scmp.ne.s32.totalorder %s90, %s91
    %p102 = scmp.eq.s32.totalorder %s14, 0
    %p103 = por %p101, %p102
    %p104 = scmp.ne.s32.totalorder %s90, %s91
    %p105 = scmp.eq.s32.totalorder %s15, 1
    %p106 = por %p104, %p105
    %p108 = scmp.ne.s32.totalorder %s91, %s107
    %p109 = scmp.eq.s32.totalorder %s15, 0
    %p110 = por %p108, %p109
    %p111 = scmp.le.s32.totalorder 1, %s9
    %p112 = scmp.lt.s32.totalorder %s9, 3
    %p113 = pnand %p111, %p112
    %p114 = pneg %p113
    // Predicated region
    $region9: #{run.265} parent=5 // pred_check
      _
    $region10: #{run.265} parent=5 // pred_check_branch
      %116 = sbr.rel (%p113) target = $region12
    $region11: #{run.265} parent=5 // pred_region
      %s117 = ssub.s32 %s9, 1
      // Predicated region
      $region13: #{run.265} parent=11 // pred_check
        %p118 = pneg %p56
      $region14: #{run.265} parent=11 // pred_check_branch
        %120 = sbr.rel (%p118) target = $region16
      $region15: #{run.265} parent=11 // pred_region
        _
      $region16: #{run.265} parent=11 // pred_fallthru
        _
      // Predicated region
      $region17: #{run.265} parent=11 // pred_check
        %p121 = pneg %p77
      $region18: #{run.265} parent=11 // pred_check_branch
        %123 = sbr.rel (%p121) target = $region20
      $region19: #{run.265} parent=11 // pred_region
        _
      $region20: #{run.265} parent=11 // pred_fallthru
        _
    $region12: #{run.265} parent=5 // pred_fallthru
      _
    %p124 = scmp.lt.s32.totalorder %s9, 2
    // Predicated region
    $region21: #{run.265} parent=5 // pred_check
      %p125 = pneg %p124
    $region22: #{run.265} parent=5 // pred_check_branch
      %127 = sbr.rel (%p125) target = $region24
    $region23: #{run.265} parent=5 // pred_region
      // Predicated region
      $region25: #{run.265} parent=23 // pred_check
        %p128 = pneg %p29
      $region26: #{run.265} parent=23 // pred_check_branch
        %130 = sbr.rel (%p128) target = $region28
      $region27: #{run.265} parent=23 // pred_region
        %s131 = smul.u32 16, %s9
        %p132 = scmp.lt.s32.totalorder %s131, 31
        %s133 = scalar_select %p132, %s131, 31
        %s134 = smul.addr %s133, 4
        %s135 = scalar_lea.vmem %s0, %s134
        %s136 = smul.u32 16, %s9
      $region28: #{run.265} parent=23 // pred_fallthru
        _
    $region24: #{run.265} parent=5 // pred_fallthru
      _
    %p137 = scmp.le.s32.totalorder 1, %s9
    %p138 = scmp.lt.s32.totalorder %s9, 3
    %p139 = pnand %p137, %p138
    %p140 = pneg %p139
    // Predicated region
    $region29: #{run.265} parent=5 // pred_check
      _
    $region30: #{run.265} parent=5 // pred_check_branch
      %142 = sbr.rel (%p139) target = $region32
    $region31: #{run.265} parent=5 // pred_region
      %s143 = ssub.s32 %s9, 1
      %s144 = smul.u32 16, %s14
      %p145 = scmp.lt.s32.totalorder %s144, 31
      %s146 = scalar_select %p145, %s144, 31
      %s147 = smul.addr %s146, 4
      %s148 = scalar_lea.vmem %s0, %s147
      %p149 = pneg %p35
      %p150 = pneg %p32
      %p151 = pneg %p56
      %p152 = pneg %p53
      %p153 = pneg %p77
      %p154 = pneg %p74
      %p155 = pneg %p103
      %p156 = pneg %p100
      %s157 = smul.u32 16, %s14
      %p158 = scmp.lt.s32.totalorder %s157, 31
      %s159 = scalar_select %p158, %s157, 31
      %s160 = smul.addr %s159, 8
      %s161 = scalar_lea.vmem %s3, %s160
      %s162 = smul.u32 16, %s14
      %p163 = scmp.lt.s32.totalorder %s162, 31
      %s164 = scalar_select %p163, %s162, 31
      %s165 = smul.addr %s164, 4
      %s166 = scalar_lea.vmem %s0, %s165
      %s167 = smul.u32 16, %s14
      %s168 = smul.u32 16, %s14
      %p169 = scmp.lt.s32.totalorder %s168, 31
      %s170 = scalar_select %p169, %s168, 31
      %s171 = smul.addr %s170, 8
      %s172 = scalar_lea.vmem %s3, %s171
      %s173 = smul.u32 16, %s14
      %v175 = vld [vmem:[%s166] sm:$0xf]
      %v176 = vld [vmem:[%s166 + $0x4] sm:$0xf]
      %v177 = vld [vmem:[%s166 + $0x8] sm:$0xf]
      %v178 = vld [vmem:[%s166 + $0xc] sm:$0xf]
      %v179 = vld [vmem:[%s166 + $0x10] sm:$0xf]
      %v180 = vld [vmem:[%s166 + $0x14] sm:$0xf]
      %v181 = vld [vmem:[%s166 + $0x18] sm:$0xf]
      %v182 = vld [vmem:[%s166 + $0x1c] sm:$0xf]
      %v183 = vld [vmem:[%s166 + $0x20] sm:$0xf]
      %v184 = vld [vmem:[%s166 + $0x24] sm:$0xf]
      %v185 = vld [vmem:[%s166 + $0x28] sm:$0xf]
      %v186 = vld [vmem:[%s166 + $0x2c] sm:$0xf]
      %v187 = vld [vmem:[%s166 + $0x30] sm:$0xf]
      %v188 = vld [vmem:[%s166 + $0x34] sm:$0xf]
      %v189 = vld [vmem:[%s166 + $0x38] sm:$0xf]
      %v190 = vld [vmem:[%s166 + $0x3c] sm:$0xf]
      %v191 = vld [vmem:[%s1] sm:$0xf]
      %v192 = vld [vmem:[%s1 + $0x4] sm:$0xf]
      %v193 = vld [vmem:[%s1 + $0x8] sm:$0xf]
      %v194 = vld [vmem:[%s1 + $0xc] sm:$0xf]
      %v195 = vld [vmem:[%s1 + $0x10] sm:$0xf]
      %v196 = vld [vmem:[%s1 + $0x14] sm:$0xf]
      %v197 = vld [vmem:[%s1 + $0x18] sm:$0xf]
      %v198 = vld [vmem:[%s1 + $0x1c] sm:$0xf]
      %v199 = vld [vmem:[%s1 + $0x20] sm:$0xf]
      %v200 = vld [vmem:[%s1 + $0x24] sm:$0xf]
      %v201 = vld [vmem:[%s1 + $0x28] sm:$0xf]
      %v202 = vld [vmem:[%s1 + $0x2c] sm:$0xf]
      %v203 = vld [vmem:[%s1 + $0x30] sm:$0xf]
      %v204 = vld [vmem:[%s1 + $0x34] sm:$0xf]
      %v205 = vld [vmem:[%s1 + $0x38] sm:$0xf]
      %v206 = vld [vmem:[%s1 + $0x3c] sm:$0xf]
      %v207 = vld [vmem:[%s2] sm:$0x1]
      %v209 = vlaneseq
      %v210 = vshrl.u32 %v209, 7
      %v211 = vsub.s32 0, %v210
      %v212 = vrot.slane %v207, %v211
      %v230 = vunpack.c.l.b16 %v175
      %v231 = vunpack.c.l.b16 %v176
      %v232 = vunpack.c.l.b16 %v177
      %v233 = vunpack.c.l.b16 %v178
      %v234 = vunpack.c.l.b16 %v179
      %v235 = vunpack.c.l.b16 %v180
      %v236 = vunpack.c.l.b16 %v181
      %v237 = vunpack.c.l.b16 %v182
      %v238 = vunpack.c.l.b16 %v183
      %v239 = vunpack.c.l.b16 %v184
      %v240 = vunpack.c.l.b16 %v185
      %v241 = vunpack.c.l.b16 %v186
      %v242 = vunpack.c.l.b16 %v187
      %v243 = vunpack.c.l.b16 %v188
      %v244 = vunpack.c.l.b16 %v189
      %v245 = vunpack.c.l.b16 %v190
      %v246 = vpack.c.b16 %v231, %v230
      %v247 = vpack.c.b16 %v233, %v232
      %v248 = vpack.c.b16 %v235, %v234
      %v249 = vpack.c.b16 %v237, %v236
      %v250 = vpack.c.b16 %v239, %v238
      %v251 = vpack.c.b16 %v241, %v240
      %v252 = vpack.c.b16 %v243, %v242
      %v253 = vpack.c.b16 %v245, %v244
      %v278 = vunpack.c.l.b16 %v191
      %v279 = vunpack.c.l.b16 %v192
      %v280 = vunpack.c.l.b16 %v193
      %v281 = vunpack.c.l.b16 %v194
      %v282 = vunpack.c.l.b16 %v195
      %v283 = vunpack.c.l.b16 %v196
      %v284 = vunpack.c.l.b16 %v197
      %v285 = vunpack.c.l.b16 %v198
      %v286 = vunpack.c.l.b16 %v199
      %v287 = vunpack.c.l.b16 %v200
      %v288 = vunpack.c.l.b16 %v201
      %v289 = vunpack.c.l.b16 %v202
      %v290 = vunpack.c.l.b16 %v203
      %v291 = vunpack.c.l.b16 %v204
      %v292 = vunpack.c.l.b16 %v205
      %v293 = vunpack.c.l.b16 %v206
      %v294 = vpack.c.b16 %v279, %v278
      %v295 = vpack.c.b16 %v281, %v280
      %v296 = vpack.c.b16 %v283, %v282
      %v297 = vpack.c.b16 %v285, %v284
      %v298 = vpack.c.b16 %v287, %v286
      %v299 = vpack.c.b16 %v289, %v288
      %v300 = vpack.c.b16 %v291, %v290
      %v301 = vpack.c.b16 %v293, %v292
      %310 = vmatprep.subr.bf16.mxu0 0
      %311 = vmatpush1.bf16.msra.mxu0 %v301
      %312 = vmatprep.subr.bf16.mxu0 0
      %313 = vmatpush1.bf16.msra.mxu0 %v300
      %314 = vmatprep.subr.bf16.mxu0 0
      %315 = vmatpush1.bf16.msra.mxu0 %v299
      %316 = vmatprep.subr.bf16.mxu0 0
      %317 = vmatpush1.bf16.msra.mxu0 %v298
      %318 = vmatprep.subr.bf16.mxu0 0
      %319 = vmatpush1.bf16.msra.mxu0 %v297
      %320 = vmatprep.subr.bf16.mxu0 0
      %321 = vmatpush1.bf16.msra.mxu0 %v296
      %322 = vmatprep.subr.bf16.mxu0 0
      %323 = vmatpush1.bf16.msra.mxu0 %v295
      %324 = vmatprep.subr.bf16.mxu0 0
      %325 = vmatpush1.bf16.msra.mxu0 %v294
      %326 = vmatprep.subr.bf16.mxu0 0
      %327 = vmatpush2.bf16.msra.mxu0 0
      %328 = vmatprep.subr.bf16.mxu0 0
      %329 = vmatpush2.bf16.msra.mxu0 0
      %330 = vmatprep.subr.bf16.mxu0 0
      %331 = vmatpush2.bf16.msra.mxu0 0
      %332 = vmatprep.subr.bf16.mxu0 0
      %333 = vmatpush2.bf16.msra.mxu0 0
      %334 = vmatprep.subr.bf16.mxu0 0
      %335 = vmatpush2.bf16.msra.mxu0 0
      %336 = vmatprep.subr.bf16.mxu0 0
      %337 = vmatpush2.bf16.msra.mxu0 0
      %338 = vmatprep.subr.bf16.mxu0 0
      %339 = vmatpush2.bf16.msra.mxu0 0
      %340 = vmatprep.subr.bf16.mxu0 0
      %341 = vmatpush2.bf16.msra.mxu0 0
      %342 = vmatprep.mubr.bf16.mxu0 0
      %343 = vmatmul.mubr.bf16.gmra.mxu0 %v246
      %v344 = vpop.f32.mrf.mxu0
      %v345 = vadd.f32 %v212, %v344
      %v346 = vpop.f32.mrf.mxu0
      %v347 = vpop.f32.mrf.mxu0
      %v348 = vadd.f32 %v212, %v347
      %v349 = vpop.f32.mrf.mxu0
      %350 = vmatprep.mubr.bf16.mxu0 0
      %351 = vmatmul.mubr.bf16.gmra.mxu0 %v247
      %v352 = vpop.f32.mrf.mxu0
      %v353 = vadd.f32 %v212, %v352
      %v354 = vpop.f32.mrf.mxu0
      %v355 = vpop.f32.mrf.mxu0
      %v356 = vadd.f32 %v212, %v355
      %v357 = vpop.f32.mrf.mxu0
      %358 = vmatprep.mubr.bf16.mxu0 0
      %359 = vmatmul.mubr.bf16.gmra.mxu0 %v248
      %v360 = vpop.f32.mrf.mxu0
      %v361 = vadd.f32 %v212, %v360
      %v362 = vpop.f32.mrf.mxu0
      %v363 = vpop.f32.mrf.mxu0
      %v364 = vadd.f32 %v212, %v363
      %v365 = vpop.f32.mrf.mxu0
      %366 = vmatprep.mubr.bf16.mxu0 0
      %367 = vmatmul.mubr.bf16.gmra.mxu0 %v249
      %v368 = vpop.f32.mrf.mxu0
      %v369 = vadd.f32 %v212, %v368
      %v370 = vpop.f32.mrf.mxu0
      %v371 = vpop.f32.mrf.mxu0
      %v372 = vadd.f32 %v212, %v371
      %v373 = vpop.f32.mrf.mxu0
      %374 = vmatprep.mubr.bf16.mxu0 0
      %375 = vmatmul.mubr.bf16.gmra.mxu0 %v250
      %v376 = vpop.f32.mrf.mxu0
      %v377 = vadd.f32 %v212, %v376
      %v378 = vpop.f32.mrf.mxu0
      %v379 = vpop.f32.mrf.mxu0
      %v380 = vadd.f32 %v212, %v379
      %v381 = vpop.f32.mrf.mxu0
      %382 = vmatprep.mubr.bf16.mxu0 0
      %383 = vmatmul.mubr.bf16.gmra.mxu0 %v251
      %v384 = vpop.f32.mrf.mxu0
      %v385 = vadd.f32 %v212, %v384
      %v386 = vpop.f32.mrf.mxu0
      %v387 = vpop.f32.mrf.mxu0
      %v388 = vadd.f32 %v212, %v387
      %v389 = vpop.f32.mrf.mxu0
      %390 = vmatprep.mubr.bf16.mxu0 0
      %391 = vmatmul.mubr.bf16.gmra.mxu0 %v252
      %v392 = vpop.f32.mrf.mxu0
      %v393 = vadd.f32 %v212, %v392
      %v394 = vpop.f32.mrf.mxu0
      %v395 = vpop.f32.mrf.mxu0
      %v396 = vadd.f32 %v212, %v395
      %v397 = vpop.f32.mrf.mxu0
      %398 = vmatprep.mubr.bf16.mxu0 0
      %399 = vmatmul.mubr.bf16.gmra.mxu0 %v253
      %v400 = vpop.f32.mrf.mxu0
      %v401 = vadd.f32 %v212, %v400
      %v402 = vpop.f32.mrf.mxu0
      %v403 = vpop.f32.mrf.mxu0
      %v404 = vadd.f32 %v212, %v403
      %v405 = vpop.f32.mrf.mxu0
      %406 = vdwg.mxu0
      %v407 = vmax.f32 %v345, 0.0
      %v408 = vmax.f32 %v348, 0.0
      %v409 = vmax.f32 %v353, 0.0
      %v410 = vmax.f32 %v356, 0.0
      %v411 = vmax.f32 %v361, 0.0
      %v412 = vmax.f32 %v364, 0.0
      %v413 = vmax.f32 %v369, 0.0
      %v414 = vmax.f32 %v372, 0.0
      %v415 = vmax.f32 %v377, 0.0
      %v416 = vmax.f32 %v380, 0.0
      %v417 = vmax.f32 %v385, 0.0
      %v418 = vmax.f32 %v388, 0.0
      %v419 = vmax.f32 %v393, 0.0
      %v420 = vmax.f32 %v396, 0.0
      %v421 = vmax.f32 %v401, 0.0
      %v422 = vmax.f32 %v404, 0.0
      %423 = vst [vmem:[%s172] sm:$0xff] %v407
      %424 = vst [vmem:[%s172 + $0x8] sm:$0xff] %v408
      %425 = vst [vmem:[%s172 + $0x10] sm:$0xff] %v409
      %426 = vst [vmem:[%s172 + $0x18] sm:$0xff] %v410
      %427 = vst [vmem:[%s172 + $0x20] sm:$0xff] %v411
      %428 = vst [vmem:[%s172 + $0x28] sm:$0xff] %v412
      %429 = vst [vmem:[%s172 + $0x30] sm:$0xff] %v413
      %430 = vst [vmem:[%s172 + $0x38] sm:$0xff] %v414
      %431 = vst [vmem:[%s172 + $0x40] sm:$0xff] %v415
      %432 = vst [vmem:[%s172 + $0x48] sm:$0xff] %v416
      %433 = vst [vmem:[%s172 + $0x50] sm:$0xff] %v417
      %434 = vst [vmem:[%s172 + $0x58] sm:$0xff] %v418
      %435 = vst [vmem:[%s172 + $0x60] sm:$0xff] %v419
      %436 = vst [vmem:[%s172 + $0x68] sm:$0xff] %v420
      %437 = vst [vmem:[%s172 + $0x70] sm:$0xff] %v421
      %438 = vst [vmem:[%s172 + $0x78] sm:$0xff] %v422
      %s439 = smul.u32 16, %s14
      %p440 = scmp.lt.s32.totalorder %s439, 31
      %s441 = scalar_select %p440, %s439, 31
      %s442 = smul.addr %s441, 8
      %s443 = scalar_lea.vmem %s3, %s442
      // Predicated region
      $region33: #{run.265} parent=31 // pred_check
        %p444 = pneg %p100
      $region34: #{run.265} parent=31 // pred_check_branch
        %446 = sbr.rel (%p444) target = $region36
      $region35: #{run.265} parent=31 // pred_region
        %s447 = smul.u32 16, %s14
      $region36: #{run.265} parent=31 // pred_fallthru
        _
    $region32: #{run.265} parent=5 // pred_fallthru
      _
    %p448 = scmp.le.s32.totalorder 2, %s9
    // Predicated region
    $region37: #{run.265} parent=5 // pred_check
      %p449 = pneg %p448
    $region38: #{run.265} parent=5 // pred_check_branch
      %451 = sbr.rel (%p449) target = $region40
    $region39: #{run.265} parent=5 // pred_region
      %s452 = ssub.s32 %s9, 2
      // Predicated region
      $region41: #{run.265} parent=39 // pred_check
        %p453 = pneg %p106
      $region42: #{run.265} parent=39 // pred_check_branch
        %455 = sbr.rel (%p453) target = $region44
      $region43: #{run.265} parent=39 // pred_region
        %s456 = smul.u32 16, %s15
        %p457 = scmp.lt.s32.totalorder %s456, 31
        %s458 = scalar_select %p457, %s456, 31
        %s459 = smul.addr %s458, 8
        %s460 = scalar_lea.vmem %s3, %s459
      $region44: #{run.265} parent=39 // pred_fallthru
        _
    $region40: #{run.265} parent=5 // pred_fallthru
      _
  $region6: #{run.265} parent=0 // loop_footer
    %s13 = sadd.s32 1, %s9
  $region7: #{run.265} parent=0 // loop_footer_branch
    %8 = sbr.rel target = $region3
  $region8: #{run.265} parent=0 // loop_exit
    _

// kernel: run.271
$region0: #{run.271}
  #allocation0 [shape = 'u32[]', space=smem, size = 0x4, offset = 0x4, fixed_abs, tag = 'smem constant byte address 0x4 - core index']
  #allocation1 [shape = 'u32[144,128]{1,0:T(1,128)}', space=vmem, size = 0x12000, scoped, tag = 'internal scratch']
  %s0 = inlined_call_operand.vmem [shape: bf16[256,128], index: 0, kind: input, shape index: {}]
  %s1 = inlined_call_operand.vmem [shape: bf16[128,128], index: 1, kind: input, shape index: {}]
  %s2 = inlined_call_operand.vmem [shape: f32[1,128], index: 2, kind: input, shape index: {}]
  %s3 = inlined_call_operand.vmem [shape: f32[256,128], index: 3, kind: output, shape index: {}]
  %s4 = sld [smem:[#allocation0]]
  $region45: #{run.271} parent=0
    _
  %s6 = ssub.s32 1, %s4
  %s7 = scalar_select 0, %s6, %s4
  loop: start=0, step=1, limit=4
  $region2: #{run.271} parent=0 // loop_pre_header
    _
  $region3: #{run.271} parent=0 // loop_header
    %s9 = sphi 0, %s13
    %p10 = scmp.ge.s32.totalorder %s9, 4
    %s19 = sphi 0, %s21
    %s22 = sphi 0, %s19
    %s23 = sphi 0, %s22
    %s39 = sphi 0, %s23
    %s43 = sphi 0, %s43
    %s45 = sphi 0, %s43
    %s46 = sphi 0, %s45
    %s60 = sphi 0, %s46
    %s64 = sphi 0, %s64
    %s66 = sphi 0, %s64
    %s67 = sphi 0, %s66
    %s81 = sphi 0, %s67
    %s87 = sphi 0, %s89
    %s90 = sphi 0, %s87
    %s91 = sphi 0, %s90
    %s107 = sphi 0, %s91
  $region4: #{run.271} parent=0 // loop_header_branch
    %12 = sbr.rel (%p10) target = $region8
  $region5: #{run.271} parent=0 // loop_body
    %s14 = ssub.s32 %s9, 1
    %s15 = ssub.s32 %s9, 2
    %s16 = sadd.s32 %s9, 1
    %s17 = ssub.s32 %s9, %s16
    %p18 = scmp.eq.s32.totalorder %s17, 0
    %s20 = sadd.s32 %s19, 1
    %s21 = scalar_select %p18, %s19, %s20
    %p24 = pneg %p18
    %p25 = scmp.eq.s32.totalorder %s9, 1
    %p26 = por %p24, %p25
    %p27 = scmp.ne.s32.totalorder %s19, %s22
    %p28 = scmp.eq.s32.totalorder %s9, 0
    %p29 = por %p27, %p28
    %p30 = scmp.ne.s32.totalorder %s19, %s22
    %p31 = scmp.eq.s32.totalorder %s14, 1
    %p32 = por %p30, %p31
    %p33 = scmp.ne.s32.totalorder %s22, %s23
    %p34 = scmp.eq.s32.totalorder %s14, 0
    %p35 = por %p33, %p34
    %p36 = scmp.ne.s32.totalorder %s22, %s23
    %p37 = scmp.eq.s32.totalorder %s15, 1
    %p38 = por %p36, %p37
    %p40 = scmp.ne.s32.totalorder %s23, %s39
    %p41 = scmp.eq.s32.totalorder %s15, 0
    %p42 = por %p40, %p41
    %s44 = sadd.s32 %s43, 1
    %p47 = scmp.eq.s32.totalorder %s9, 1
    %p48 = scmp.ne.s32.totalorder %s43, %s45
    %p49 = scmp.eq.s32.totalorder %s9, 0
    %p50 = por %p48, %p49
    %p51 = scmp.ne.s32.totalorder %s43, %s45
    %p52 = scmp.eq.s32.totalorder %s14, 1
    %p53 = por %p51, %p52
    %p54 = scmp.ne.s32.totalorder %s45, %s46
    %p55 = scmp.eq.s32.totalorder %s14, 0
    %p56 = por %p54, %p55
    %p57 = scmp.ne.s32.totalorder %s45, %s46
    %p58 = scmp.eq.s32.totalorder %s15, 1
    %p59 = por %p57, %p58
    %p61 = scmp.ne.s32.totalorder %s46, %s60
    %p62 = scmp.eq.s32.totalorder %s15, 0
    %p63 = por %p61, %p62
    %s65 = sadd.s32 %s64, 1
    %p68 = scmp.eq.s32.totalorder %s9, 1
    %p69 = scmp.ne.s32.totalorder %s64, %s66
    %p70 = scmp.eq.s32.totalorder %s9, 0
    %p71 = por %p69, %p70
    %p72 = scmp.ne.s32.totalorder %s64, %s66
    %p73 = scmp.eq.s32.totalorder %s14, 1
    %p74 = por %p72, %p73
    %p75 = scmp.ne.s32.totalorder %s66, %s67
    %p76 = scmp.eq.s32.totalorder %s14, 0
    %p77 = por %p75, %p76
    %p78 = scmp.ne.s32.totalorder %s66, %s67
    %p79 = scmp.eq.s32.totalorder %s15, 1
    %p80 = por %p78, %p79
    %p82 = scmp.ne.s32.totalorder %s67, %s81
    %p83 = scmp.eq.s32.totalorder %s15, 0
    %p84 = por %p82, %p83
    %s85 = ssub.s32 %s9, %s16
    %p86 = scmp.eq.s32.totalorder %s85, 0
    %s88 = sadd.s32 %s87, 1
    %s89 = scalar_select %p86, %s87, %s88
    %p92 = pneg %p86
    %p93 = scmp.eq.s32.totalorder %s9, 1
    %p94 = por %p92, %p93
    %p95 = scmp.ne.s32.totalorder %s87, %s90
    %p96 = scmp.eq.s32.totalorder %s9, 0
    %p97 = por %p95, %p96
    %p98 = scmp.ne.s32.totalorder %s87, %s90
    %p99 = scmp.eq.s32.totalorder %s14, 1
    %p100 = por %p98, %p99
    %p101 = scmp.ne.s32.totalorder %s90, %s91
    %p102 = scmp.eq.s32.totalorder %s14, 0
    %p103 = por %p101, %p102
    %p104 = scmp.ne.s32.totalorder %s90, %s91
    %p105 = scmp.eq.s32.totalorder %s15, 1
    %p106 = por %p104, %p105
    %p108 = scmp.ne.s32.totalorder %s91, %s107
    %p109 = scmp.eq.s32.totalorder %s15, 0
    %p110 = por %p108, %p109
    %p111 = scmp.le.s32.totalorder 1, %s9
    %p112 = scmp.lt.s32.totalorder %s9, 3
    %p113 = pnand %p111, %p112
    %p114 = pneg %p113
    // Predicated region
    $region9: #{run.271} parent=5 // pred_check
      _
    $region10: #{run.271} parent=5 // pred_check_branch
      %116 = sbr.rel (%p113) target = $region12
    $region11: #{run.271} parent=5 // pred_region
      %s117 = ssub.s32 %s9, 1
      // Predicated region
      $region13: #{run.271} parent=11 // pred_check
        %p118 = pneg %p56
      $region14: #{run.271} parent=11 // pred_check_branch
        %120 = sbr.rel (%p118) target = $region16
      $region15: #{run.271} parent=11 // pred_region
        _
      $region16: #{run.271} parent=11 // pred_fallthru
        _
      // Predicated region
      $region17: #{run.271} parent=11 // pred_check
        %p121 = pneg %p77
      $region18: #{run.271} parent=11 // pred_check_branch
        %123 = sbr.rel (%p121) target = $region20
      $region19: #{run.271} parent=11 // pred_region
        _
      $region20: #{run.271} parent=11 // pred_fallthru
        _
    $region12: #{run.271} parent=5 // pred_fallthru
      _
    %p124 = scmp.lt.s32.totalorder %s9, 2
    // Predicated region
    $region21: #{run.271} parent=5 // pred_check
      %p125 = pneg %p124
    $region22: #{run.271} parent=5 // pred_check_branch
      %127 = sbr.rel (%p125) target = $region24
    $region23: #{run.271} parent=5 // pred_region
      // Predicated region
      $region25: #{run.271} parent=23 // pred_check
        %p128 = pneg %p29
      $region26: #{run.271} parent=23 // pred_check_branch
        %130 = sbr.rel (%p128) target = $region28
      $region27: #{run.271} parent=23 // pred_region
        %s131 = smul.u32 16, %s9
        %p132 = scmp.lt.s32.totalorder %s131, 31
        %s133 = scalar_select %p132, %s131, 31
        %s134 = smul.addr %s133, 4
        %s135 = scalar_lea.vmem %s0, %s134
        %s136 = smul.u32 16, %s9
      $region28: #{run.271} parent=23 // pred_fallthru
        _
    $region24: #{run.271} parent=5 // pred_fallthru
      _
    %p137 = scmp.le.s32.totalorder 1, %s9
    %p138 = scmp.lt.s32.totalorder %s9, 3
    %p139 = pnand %p137, %p138
    %p140 = pneg %p139
    // Predicated region
    $region29: #{run.271} parent=5 // pred_check
      _
    $region30: #{run.271} parent=5 // pred_check_branch
      %142 = sbr.rel (%p139) target = $region32
    $region31: #{run.271} parent=5 // pred_region
      %s143 = ssub.s32 %s9, 1
      %s144 = smul.u32 16, %s14
      %p145 = scmp.lt.s32.totalorder %s144, 31
      %s146 = scalar_select %p145, %s144, 31
      %s147 = smul.addr %s146, 4
      %s148 = scalar_lea.vmem %s0, %s147
      %p149 = pneg %p35
      %p150 = pneg %p32
      %p151 = pneg %p56
      %p152 = pneg %p53
      %p153 = pneg %p77
      %p154 = pneg %p74
      %p155 = pneg %p103
      %p156 = pneg %p100
      %s157 = smul.u32 16, %s14
      %p158 = scmp.lt.s32.totalorder %s157, 31
      %s159 = scalar_select %p158, %s157, 31
      %s160 = smul.addr %s159, 8
      %s161 = scalar_lea.vmem %s3, %s160
      %s162 = smul.u32 16, %s14
      %p163 = scmp.lt.s32.totalorder %s162, 31
      %s164 = scalar_select %p163, %s162, 31
      %s165 = smul.addr %s164, 4
      %s166 = scalar_lea.vmem %s0, %s165
      %s167 = smul.u32 16, %s14
      %s168 = smul.u32 16, %s14
      %p169 = scmp.lt.s32.totalorder %s168, 31
      %s170 = scalar_select %p169, %s168, 31
      %s171 = smul.addr %s170, 8
      %s172 = scalar_lea.vmem %s3, %s171
      %s173 = smul.u32 16, %s14
      %v175 = vld [vmem:[%s166] sm:$0xf]
      %v176 = vld [vmem:[%s166 + $0x4] sm:$0xf]
      %v177 = vld [vmem:[%s166 + $0x8] sm:$0xf]
      %v178 = vld [vmem:[%s166 + $0xc] sm:$0xf]
      %v179 = vld [vmem:[%s166 + $0x10] sm:$0xf]
      %v180 = vld [vmem:[%s166 + $0x14] sm:$0xf]
      %v181 = vld [vmem:[%s166 + $0x18] sm:$0xf]
      %v182 = vld [vmem:[%s166 + $0x1c] sm:$0xf]
      %v183 = vld [vmem:[%s166 + $0x20] sm:$0xf]
      %v184 = vld [vmem:[%s166 + $0x24] sm:$0xf]
      %v185 = vld [vmem:[%s166 + $0x28] sm:$0xf]
      %v186 = vld [vmem:[%s166 + $0x2c] sm:$0xf]
      %v187 = vld [vmem:[%s166 + $0x30] sm:$0xf]
      %v188 = vld [vmem:[%s166 + $0x34] sm:$0xf]
      %v189 = vld [vmem:[%s166 + $0x38] sm:$0xf]
      %v190 = vld [vmem:[%s166 + $0x3c] sm:$0xf]
      %v191 = vld [vmem:[%s1] sm:$0xf]
      %v192 = vld [vmem:[%s1 + $0x4] sm:$0xf]
      %v193 = vld [vmem:[%s1 + $0x8] sm:$0xf]
      %v194 = vld [vmem:[%s1 + $0xc] sm:$0xf]
      %v195 = vld [vmem:[%s1 + $0x10] sm:$0xf]
      %v196 = vld [vmem:[%s1 + $0x14] sm:$0xf]
      %v197 = vld [vmem:[%s1 + $0x18] sm:$0xf]
      %v198 = vld [vmem:[%s1 + $0x1c] sm:$0xf]
      %v199 = vld [vmem:[%s1 + $0x20] sm:$0xf]
      %v200 = vld [vmem:[%s1 + $0x24] sm:$0xf]
      %v201 = vld [vmem:[%s1 + $0x28] sm:$0xf]
      %v202 = vld [vmem:[%s1 + $0x2c] sm:$0xf]
      %v203 = vld [vmem:[%s1 + $0x30] sm:$0xf]
      %v204 = vld [vmem:[%s1 + $0x34] sm:$0xf]
      %v205 = vld [vmem:[%s1 + $0x38] sm:$0xf]
      %v206 = vld [vmem:[%s1 + $0x3c] sm:$0xf]
      %v207 = vld [vmem:[%s2] sm:$0x1]
      %v209 = vlaneseq
      %v210 = vshrl.u32 %v209, 7
      %v211 = vsub.s32 0, %v210
      %v212 = vrot.slane %v207, %v211
      %v230 = vunpack.c.l.b16 %v175
      %v231 = vunpack.c.l.b16 %v176
      %v232 = vunpack.c.l.b16 %v177
      %v233 = vunpack.c.l.b16 %v178
      %v234 = vunpack.c.l.b16 %v179
      %v235 = vunpack.c.l.b16 %v180
      %v236 = vunpack.c.l.b16 %v181
      %v237 = vunpack.c.l.b16 %v182
      %v238 = vunpack.c.l.b16 %v183
      %v239 = vunpack.c.l.b16 %v184
      %v240 = vunpack.c.l.b16 %v185
      %v241 = vunpack.c.l.b16 %v186
      %v242 = vunpack.c.l.b16 %v187
      %v243 = vunpack.c.l.b16 %v188
      %v244 = vunpack.c.l.b16 %v189
      %v245 = vunpack.c.l.b16 %v190
      %v246 = vpack.c.b16 %v231, %v230
      %v247 = vpack.c.b16 %v233, %v232
      %v248 = vpack.c.b16 %v235, %v234
      %v249 = vpack.c.b16 %v237, %v236
      %v250 = vpack.c.b16 %v239, %v238
      %v251 = vpack.c.b16 %v241, %v240
      %v252 = vpack.c.b16 %v243, %v242
      %v253 = vpack.c.b16 %v245, %v244
      %v278 = vunpack.c.l.b16 %v191
      %v279 = vunpack.c.l.b16 %v192
      %v280 = vunpack.c.l.b16 %v193
      %v281 = vunpack.c.l.b16 %v194
      %v282 = vunpack.c.l.b16 %v195
      %v283 = vunpack.c.l.b16 %v196
      %v284 = vunpack.c.l.b16 %v197
      %v285 = vunpack.c.l.b16 %v198
      %v286 = vunpack.c.l.b16 %v199
      %v287 = vunpack.c.l.b16 %v200
      %v288 = vunpack.c.l.b16 %v201
      %v289 = vunpack.c.l.b16 %v202
      %v290 = vunpack.c.l.b16 %v203
      %v291 = vunpack.c.l.b16 %v204
      %v292 = vunpack.c.l.b16 %v205
      %v293 = vunpack.c.l.b16 %v206
      %v294 = vpack.c.b16 %v279, %v278
      %v295 = vpack.c.b16 %v281, %v280
      %v296 = vpack.c.b16 %v283, %v282
      %v297 = vpack.c.b16 %v285, %v284
      %v298 = vpack.c.b16 %v287, %v286
      %v299 = vpack.c.b16 %v289, %v288
      %v300 = vpack.c.b16 %v291, %v290
      %v301 = vpack.c.b16 %v293, %v292
      %310 = vmatprep.subr.bf16.mxu0 0
      %311 = vmatpush1.bf16.msra.mxu0 %v301
      %312 = vmatprep.subr.bf16.mxu0 0
      %313 = vmatpush1.bf16.msra.mxu0 %v300
      %314 = vmatprep.subr.bf16.mxu0 0
      %315 = vmatpush1.bf16.msra.mxu0 %v299
      %316 = vmatprep.subr.bf16.mxu0 0
      %317 = vmatpush1.bf16.msra.mxu0 %v298
      %318 = vmatprep.subr.bf16.mxu0 0
      %319 = vmatpush1.bf16.msra.mxu0 %v297
      %320 = vmatprep.subr.bf16.mxu0 0
      %321 = vmatpush1.bf16.msra.mxu0 %v296
      %322 = vmatprep.subr.bf16.mxu0 0
      %323 = vmatpush1.bf16.msra.mxu0 %v295
      %324 = vmatprep.subr.bf16.mxu0 0
      %325 = vmatpush1.bf16.msra.mxu0 %v294
      %326 = vmatprep.subr.bf16.mxu0 0
      %327 = vmatpush2.bf16.msra.mxu0 0
      %328 = vmatprep.subr.bf16.mxu0 0
      %329 = vmatpush2.bf16.msra.mxu0 0
      %330 = vmatprep.subr.bf16.mxu0 0
      %331 = vmatpush2.bf16.msra.mxu0 0
      %332 = vmatprep.subr.bf16.mxu0 0
      %333 = vmatpush2.bf16.msra.mxu0 0
      %334 = vmatprep.subr.bf16.mxu0 0
      %335 = vmatpush2.bf16.msra.mxu0 0
      %336 = vmatprep.subr.bf16.mxu0 0
      %337 = vmatpush2.bf16.msra.mxu0 0
      %338 = vmatprep.subr.bf16.mxu0 0
      %339 = vmatpush2.bf16.msra.mxu0 0
      %340 = vmatprep.subr.bf16.mxu0 0
      %341 = vmatpush2.bf16.msra.mxu0 0
      %342 = vmatprep.mubr.bf16.mxu0 0
      %343 = vmatmul.mubr.bf16.gmra.mxu0 %v246
      %v344 = vpop.f32.mrf.mxu0
      %v345 = vadd.f32 %v212, %v344
      %v346 = vpop.f32.mrf.mxu0
      %v347 = vpop.f32.mrf.mxu0
      %v348 = vadd.f32 %v212, %v347
      %v349 = vpop.f32.mrf.mxu0
      %350 = vmatprep.mubr.bf16.mxu0 0
      %351 = vmatmul.mubr.bf16.gmra.mxu0 %v247
      %v352 = vpop.f32.mrf.mxu0
      %v353 = vadd.f32 %v212, %v352
      %v354 = vpop.f32.mrf.mxu0
      %v355 = vpop.f32.mrf.mxu0
      %v356 = vadd.f32 %v212, %v355
      %v357 = vpop.f32.mrf.mxu0
      %358 = vmatprep.mubr.bf16.mxu0 0
      %359 = vmatmul.mubr.bf16.gmra.mxu0 %v248
      %v360 = vpop.f32.mrf.mxu0
      %v361 = vadd.f32 %v212, %v360
      %v362 = vpop.f32.mrf.mxu0
      %v363 = vpop.f32.mrf.mxu0
      %v364 = vadd.f32 %v212, %v363
      %v365 = vpop.f32.mrf.mxu0
      %366 = vmatprep.mubr.bf16.mxu0 0
      %367 = vmatmul.mubr.bf16.gmra.mxu0 %v249
      %v368 = vpop.f32.mrf.mxu0
      %v369 = vadd.f32 %v212, %v368
      %v370 = vpop.f32.mrf.mxu0
      %v371 = vpop.f32.mrf.mxu0
      %v372 = vadd.f32 %v212, %v371
      %v373 = vpop.f32.mrf.mxu0
      %374 = vmatprep.mubr.bf16.mxu0 0
      %375 = vmatmul.mubr.bf16.gmra.mxu0 %v250
      %v376 = vpop.f32.mrf.mxu0
      %v377 = vadd.f32 %v212, %v376
      %v378 = vpop.f32.mrf.mxu0
      %v379 = vpop.f32.mrf.mxu0
      %v380 = vadd.f32 %v212, %v379
      %v381 = vpop.f32.mrf.mxu0
      %382 = vmatprep.mubr.bf16.mxu0 0
      %383 = vmatmul.mubr.bf16.gmra.mxu0 %v251
      %v384 = vpop.f32.mrf.mxu0
      %v385 = vadd.f32 %v212, %v384
      %v386 = vpop.f32.mrf.mxu0
      %v387 = vpop.f32.mrf.mxu0
      %v388 = vadd.f32 %v212, %v387
      %v389 = vpop.f32.mrf.mxu0
      %390 = vmatprep.mubr.bf16.mxu0 0
      %391 = vmatmul.mubr.bf16.gmra.mxu0 %v252
      %v392 = vpop.f32.mrf.mxu0
      %v393 = vadd.f32 %v212, %v392
      %v394 = vpop.f32.mrf.mxu0
      %v395 = vpop.f32.mrf.mxu0
      %v396 = vadd.f32 %v212, %v395
      %v397 = vpop.f32.mrf.mxu0
      %398 = vmatprep.mubr.bf16.mxu0 0
      %399 = vmatmul.mubr.bf16.gmra.mxu0 %v253
      %v400 = vpop.f32.mrf.mxu0
      %v401 = vadd.f32 %v212, %v400
      %v402 = vpop.f32.mrf.mxu0
      %v403 = vpop.f32.mrf.mxu0
      %v404 = vadd.f32 %v212, %v403
      %v405 = vpop.f32.mrf.mxu0
      %406 = vdwg.mxu0
      %407 = vst [vmem:[%s172] sm:$0xff] %v345
      %408 = vst [vmem:[%s172 + $0x8] sm:$0xff] %v348
      %409 = vst [vmem:[%s172 + $0x10] sm:$0xff] %v353
      %410 = vst [vmem:[%s172 + $0x18] sm:$0xff] %v356
      %411 = vst [vmem:[%s172 + $0x20] sm:$0xff] %v361
      %412 = vst [vmem:[%s172 + $0x28] sm:$0xff] %v364
      %413 = vst [vmem:[%s172 + $0x30] sm:$0xff] %v369
      %414 = vst [vmem:[%s172 + $0x38] sm:$0xff] %v372
      %415 = vst [vmem:[%s172 + $0x40] sm:$0xff] %v377
      %416 = vst [vmem:[%s172 + $0x48] sm:$0xff] %v380
      %417 = vst [vmem:[%s172 + $0x50] sm:$0xff] %v385
      %418 = vst [vmem:[%s172 + $0x58] sm:$0xff] %v388
      %419 = vst [vmem:[%s172 + $0x60] sm:$0xff] %v393
      %420 = vst [vmem:[%s172 + $0x68] sm:$0xff] %v396
      %421 = vst [vmem:[%s172 + $0x70] sm:$0xff] %v401
      %422 = vst [vmem:[%s172 + $0x78] sm:$0xff] %v404
      %s423 = smul.u32 16, %s14
      %p424 = scmp.lt.s32.totalorder %s423, 31
      %s425 = scalar_select %p424, %s423, 31
      %s426 = smul.addr %s425, 8
      %s427 = scalar_lea.vmem %s3, %s426
      // Predicated region
      $region33: #{run.271} parent=31 // pred_check
        %p428 = pneg %p100
      $region34: #{run.271} parent=31 // pred_check_branch
        %430 = sbr.rel (%p428) target = $region36
      $region35: #{run.271} parent=31 // pred_region
        %s431 = smul.u32 16, %s14
      $region36: #{run.271} parent=31 // pred_fallthru
        _
    $region32: #{run.271} parent=5 // pred_fallthru
      _
    %p432 = scmp.le.s32.totalorder 2, %s9
    // Predicated region
    $region37: #{run.271} parent=5 // pred_check
      %p433 = pneg %p432
    $region38: #{run.271} parent=5 // pred_check_branch
      %435 = sbr.rel (%p433) target = $region40
    $region39: #{run.271} parent=5 // pred_region
      %s436 = ssub.s32 %s9, 2
      // Predicated region
      $region41: #{run.271} parent=39 // pred_check
        %p437 = pneg %p106
      $region42: #{run.271} parent=39 // pred_check_branch
        %439 = sbr.rel (%p437) target = $region44
      $region43: #{run.271} parent=39 // pred_region
        %s440 = smul.u32 16, %s15
        %p441 = scmp.lt.s32.totalorder %s440, 31
        %s442 = scalar_select %p441, %s440, 31
        %s443 = smul.addr %s442, 8
        %s444 = scalar_lea.vmem %s3, %s443
      $region44: #{run.271} parent=39 // pred_fallthru
        _
    $region40: #{run.271} parent=5 // pred_fallthru
      _
  $region6: #{run.271} parent=0 // loop_footer
    %s13 = sadd.s32 1, %s9
  $region7: #{run.271} parent=0 // loop_footer_branch
    %8 = sbr.rel target = $region3
  $region8: #{run.271} parent=0 // loop_exit
    _

// kernel: run.330
$region0: #{run.330}
  #allocation0 [shape = 'u32[]', space=smem, size = 0x4, offset = 0x4, fixed_abs, tag = 'smem constant byte address 0x4 - core index']
  #allocation1 [shape = 'u32[144,128]{1,0:T(1,128)}', space=vmem, size = 0x12000, scoped, tag = 'internal scratch']
  %s0 = inlined_call_operand.vmem [shape: bf16[1024,128], index: 0, kind: input, shape index: {}]
  %s1 = inlined_call_operand.vmem [shape: bf16[128,128], index: 1, kind: input, shape index: {}]
  %s2 = inlined_call_operand.vmem [shape: f32[1,128], index: 2, kind: input, shape index: {}]
  %s3 = inlined_call_operand.vmem [shape: f32[1024,128], index: 3, kind: output, shape index: {}]
  %s4 = sld [smem:[#allocation0]]
  $region45: #{run.330} parent=0
    _
  %s6 = ssub.s32 1, %s4
  %s7 = scalar_select 0, %s6, %s4
  loop: start=0, step=1, limit=10
  $region2: #{run.330} parent=0 // loop_pre_header
    _
  $region3: #{run.330} parent=0 // loop_header
    %s9 = sphi 0, %s13
    %p10 = scmp.ge.s32.totalorder %s9, 10
    %s19 = sphi 0, %s21
    %s22 = sphi 0, %s19
    %s23 = sphi 0, %s22
    %s39 = sphi 0, %s23
    %s43 = sphi 0, %s43
    %s45 = sphi 0, %s43
    %s46 = sphi 0, %s45
    %s60 = sphi 0, %s46
    %s64 = sphi 0, %s64
    %s66 = sphi 0, %s64
    %s67 = sphi 0, %s66
    %s81 = sphi 0, %s67
    %s87 = sphi 0, %s89
    %s90 = sphi 0, %s87
    %s91 = sphi 0, %s90
    %s107 = sphi 0, %s91
  $region4: #{run.330} parent=0 // loop_header_branch
    %12 = sbr.rel (%p10) target = $region8
  $region5: #{run.330} parent=0 // loop_body
    %s14 = ssub.s32 %s9, 1
    %s15 = ssub.s32 %s9, 2
    %s16 = sadd.s32 %s9, 1
    %s17 = ssub.s32 %s9, %s16
    %p18 = scmp.eq.s32.totalorder %s17, 0
    %s20 = sadd.s32 %s19, 1
    %s21 = scalar_select %p18, %s19, %s20
    %p24 = pneg %p18
    %p25 = scmp.eq.s32.totalorder %s9, 7
    %p26 = por %p24, %p25
    %p27 = scmp.ne.s32.totalorder %s19, %s22
    %p28 = scmp.eq.s32.totalorder %s9, 0
    %p29 = por %p27, %p28
    %p30 = scmp.ne.s32.totalorder %s19, %s22
    %p31 = scmp.eq.s32.totalorder %s14, 7
    %p32 = por %p30, %p31
    %p33 = scmp.ne.s32.totalorder %s22, %s23
    %p34 = scmp.eq.s32.totalorder %s14, 0
    %p35 = por %p33, %p34
    %p36 = scmp.ne.s32.totalorder %s22, %s23
    %p37 = scmp.eq.s32.totalorder %s15, 7
    %p38 = por %p36, %p37
    %p40 = scmp.ne.s32.totalorder %s23, %s39
    %p41 = scmp.eq.s32.totalorder %s15, 0
    %p42 = por %p40, %p41
    %s44 = sadd.s32 %s43, 1
    %p47 = scmp.eq.s32.totalorder %s9, 7
    %p48 = scmp.ne.s32.totalorder %s43, %s45
    %p49 = scmp.eq.s32.totalorder %s9, 0
    %p50 = por %p48, %p49
    %p51 = scmp.ne.s32.totalorder %s43, %s45
    %p52 = scmp.eq.s32.totalorder %s14, 7
    %p53 = por %p51, %p52
    %p54 = scmp.ne.s32.totalorder %s45, %s46
    %p55 = scmp.eq.s32.totalorder %s14, 0
    %p56 = por %p54, %p55
    %p57 = scmp.ne.s32.totalorder %s45, %s46
    %p58 = scmp.eq.s32.totalorder %s15, 7
    %p59 = por %p57, %p58
    %p61 = scmp.ne.s32.totalorder %s46, %s60
    %p62 = scmp.eq.s32.totalorder %s15, 0
    %p63 = por %p61, %p62
    %s65 = sadd.s32 %s64, 1
    %p68 = scmp.eq.s32.totalorder %s9, 7
    %p69 = scmp.ne.s32.totalorder %s64, %s66
    %p70 = scmp.eq.s32.totalorder %s9, 0
    %p71 = por %p69, %p70
    %p72 = scmp.ne.s32.totalorder %s64, %s66
    %p73 = scmp.eq.s32.totalorder %s14, 7
    %p74 = por %p72, %p73
    %p75 = scmp.ne.s32.totalorder %s66, %s67
    %p76 = scmp.eq.s32.totalorder %s14, 0
    %p77 = por %p75, %p76
    %p78 = scmp.ne.s32.totalorder %s66, %s67
    %p79 = scmp.eq.s32.totalorder %s15, 7
    %p80 = por %p78, %p79
    %p82 = scmp.ne.s32.totalorder %s67, %s81
    %p83 = scmp.eq.s32.totalorder %s15, 0
    %p84 = por %p82, %p83
    %s85 = ssub.s32 %s9, %s16
    %p86 = scmp.eq.s32.totalorder %s85, 0
    %s88 = sadd.s32 %s87, 1
    %s89 = scalar_select %p86, %s87, %s88
    %p92 = pneg %p86
    %p93 = scmp.eq.s32.totalorder %s9, 7
    %p94 = por %p92, %p93
    %p95 = scmp.ne.s32.totalorder %s87, %s90
    %p96 = scmp.eq.s32.totalorder %s9, 0
    %p97 = por %p95, %p96
    %p98 = scmp.ne.s32.totalorder %s87, %s90
    %p99 = scmp.eq.s32.totalorder %s14, 7
    %p100 = por %p98, %p99
    %p101 = scmp.ne.s32.totalorder %s90, %s91
    %p102 = scmp.eq.s32.totalorder %s14, 0
    %p103 = por %p101, %p102
    %p104 = scmp.ne.s32.totalorder %s90, %s91
    %p105 = scmp.eq.s32.totalorder %s15, 7
    %p106 = por %p104, %p105
    %p108 = scmp.ne.s32.totalorder %s91, %s107
    %p109 = scmp.eq.s32.totalorder %s15, 0
    %p110 = por %p108, %p109
    %p111 = scmp.le.s32.totalorder 1, %s9
    %p112 = scmp.lt.s32.totalorder %s9, 9
    %p113 = pnand %p111, %p112
    %p114 = pneg %p113
    // Predicated region
    $region9: #{run.330} parent=5 // pred_check
      _
    $region10: #{run.330} parent=5 // pred_check_branch
      %116 = sbr.rel (%p113) target = $region12
    $region11: #{run.330} parent=5 // pred_region
      %s117 = ssub.s32 %s9, 1
      // Predicated region
      $region13: #{run.330} parent=11 // pred_check
        %p118 = pneg %p56
      $region14: #{run.330} parent=11 // pred_check_branch
        %120 = sbr.rel (%p118) target = $region16
      $region15: #{run.330} parent=11 // pred_region
        _
      $region16: #{run.330} parent=11 // pred_fallthru
        _
      // Predicated region
      $region17: #{run.330} parent=11 // pred_check
        %p121 = pneg %p77
      $region18: #{run.330} parent=11 // pred_check_branch
        %123 = sbr.rel (%p121) target = $region20
      $region19: #{run.330} parent=11 // pred_region
        _
      $region20: #{run.330} parent=11 // pred_fallthru
        _
    $region12: #{run.330} parent=5 // pred_fallthru
      _
    %p124 = scmp.lt.s32.totalorder %s9, 8
    // Predicated region
    $region21: #{run.330} parent=5 // pred_check
      %p125 = pneg %p124
    $region22: #{run.330} parent=5 // pred_check_branch
      %127 = sbr.rel (%p125) target = $region24
    $region23: #{run.330} parent=5 // pred_region
      // Predicated region
      $region25: #{run.330} parent=23 // pred_check
        %p128 = pneg %p29
      $region26: #{run.330} parent=23 // pred_check_branch
        %130 = sbr.rel (%p128) target = $region28
      $region27: #{run.330} parent=23 // pred_region
        %s131 = smul.u32 16, %s9
        %p132 = scmp.lt.s32.totalorder %s131, 127
        %s133 = scalar_select %p132, %s131, 127
        %s134 = smul.addr %s133, 4
        %s135 = scalar_lea.vmem %s0, %s134
        %s136 = smul.u32 16, %s9
      $region28: #{run.330} parent=23 // pred_fallthru
        _
    $region24: #{run.330} parent=5 // pred_fallthru
      _
    %p137 = scmp.le.s32.totalorder 1, %s9
    %p138 = scmp.lt.s32.totalorder %s9, 9
    %p139 = pnand %p137, %p138
    %p140 = pneg %p139
    // Predicated region
    $region29: #{run.330} parent=5 // pred_check
      _
    $region30: #{run.330} parent=5 // pred_check_branch
      %142 = sbr.rel (%p139) target = $region32
    $region31: #{run.330} parent=5 // pred_region
      %s143 = ssub.s32 %s9, 1
      %s144 = smul.u32 16, %s14
      %p145 = scmp.lt.s32.totalorder %s144, 127
      %s146 = scalar_select %p145, %s144, 127
      %s147 = smul.addr %s146, 4
      %s148 = scalar_lea.vmem %s0, %s147
      %p149 = pneg %p35
      %p150 = pneg %p32
      %p151 = pneg %p56
      %p152 = pneg %p53
      %p153 = pneg %p77
      %p154 = pneg %p74
      %p155 = pneg %p103
      %p156 = pneg %p100
      %s157 = smul.u32 16, %s14
      %p158 = scmp.lt.s32.totalorder %s157, 127
      %s159 = scalar_select %p158, %s157, 127
      %s160 = smul.addr %s159, 8
      %s161 = scalar_lea.vmem %s3, %s160
      %s162 = smul.u32 16, %s14
      %p163 = scmp.lt.s32.totalorder %s162, 127
      %s164 = scalar_select %p163, %s162, 127
      %s165 = smul.addr %s164, 4
      %s166 = scalar_lea.vmem %s0, %s165
      %s167 = smul.u32 16, %s14
      %s168 = smul.u32 16, %s14
      %p169 = scmp.lt.s32.totalorder %s168, 127
      %s170 = scalar_select %p169, %s168, 127
      %s171 = smul.addr %s170, 8
      %s172 = scalar_lea.vmem %s3, %s171
      %s173 = smul.u32 16, %s14
      %v175 = vld [vmem:[%s166] sm:$0xf]
      %v176 = vld [vmem:[%s166 + $0x4] sm:$0xf]
      %v177 = vld [vmem:[%s166 + $0x8] sm:$0xf]
      %v178 = vld [vmem:[%s166 + $0xc] sm:$0xf]
      %v179 = vld [vmem:[%s166 + $0x10] sm:$0xf]
      %v180 = vld [vmem:[%s166 + $0x14] sm:$0xf]
      %v181 = vld [vmem:[%s166 + $0x18] sm:$0xf]
      %v182 = vld [vmem:[%s166 + $0x1c] sm:$0xf]
      %v183 = vld [vmem:[%s166 + $0x20] sm:$0xf]
      %v184 = vld [vmem:[%s166 + $0x24] sm:$0xf]
      %v185 = vld [vmem:[%s166 + $0x28] sm:$0xf]
      %v186 = vld [vmem:[%s166 + $0x2c] sm:$0xf]
      %v187 = vld [vmem:[%s166 + $0x30] sm:$0xf]
      %v188 = vld [vmem:[%s166 + $0x34] sm:$0xf]
      %v189 = vld [vmem:[%s166 + $0x38] sm:$0xf]
      %v190 = vld [vmem:[%s166 + $0x3c] sm:$0xf]
      %v191 = vld [vmem:[%s1] sm:$0xf]
      %v192 = vld [vmem:[%s1 + $0x4] sm:$0xf]
      %v193 = vld [vmem:[%s1 + $0x8] sm:$0xf]
      %v194 = vld [vmem:[%s1 + $0xc] sm:$0xf]
      %v195 = vld [vmem:[%s1 + $0x10] sm:$0xf]
      %v196 = vld [vmem:[%s1 + $0x14] sm:$0xf]
      %v197 = vld [vmem:[%s1 + $0x18] sm:$0xf]
      %v198 = vld [vmem:[%s1 + $0x1c] sm:$0xf]
      %v199 = vld [vmem:[%s1 + $0x20] sm:$0xf]
      %v200 = vld [vmem:[%s1 + $0x24] sm:$0xf]
      %v201 = vld [vmem:[%s1 + $0x28] sm:$0xf]
      %v202 = vld [vmem:[%s1 + $0x2c] sm:$0xf]
      %v203 = vld [vmem:[%s1 + $0x30] sm:$0xf]
      %v204 = vld [vmem:[%s1 + $0x34] sm:$0xf]
      %v205 = vld [vmem:[%s1 + $0x38] sm:$0xf]
      %v206 = vld [vmem:[%s1 + $0x3c] sm:$0xf]
      %v207 = vld [vmem:[%s2] sm:$0x1]
      %v209 = vlaneseq
      %v210 = vshrl.u32 %v209, 7
      %v211 = vsub.s32 0, %v210
      %v212 = vrot.slane %v207, %v211
      %v230 = vunpack.c.l.b16 %v175
      %v231 = vunpack.c.l.b16 %v176
      %v232 = vunpack.c.l.b16 %v177
      %v233 = vunpack.c.l.b16 %v178
      %v234 = vunpack.c.l.b16 %v179
      %v235 = vunpack.c.l.b16 %v180
      %v236 = vunpack.c.l.b16 %v181
      %v237 = vunpack.c.l.b16 %v182
      %v238 = vunpack.c.l.b16 %v183
      %v239 = vunpack.c.l.b16 %v184
      %v240 = vunpack.c.l.b16 %v185
      %v241 = vunpack.c.l.b16 %v186
      %v242 = vunpack.c.l.b16 %v187
      %v243 = vunpack.c.l.b16 %v188
      %v244 = vunpack.c.l.b16 %v189
      %v245 = vunpack.c.l.b16 %v190
      %v246 = vpack.c.b16 %v231, %v230
      %v247 = vpack.c.b16 %v233, %v232
      %v248 = vpack.c.b16 %v235, %v234
      %v249 = vpack.c.b16 %v237, %v236
      %v250 = vpack.c.b16 %v239, %v238
      %v251 = vpack.c.b16 %v241, %v240
      %v252 = vpack.c.b16 %v243, %v242
      %v253 = vpack.c.b16 %v245, %v244
      %v278 = vunpack.c.l.b16 %v191
      %v279 = vunpack.c.l.b16 %v192
      %v280 = vunpack.c.l.b16 %v193
      %v281 = vunpack.c.l.b16 %v194
      %v282 = vunpack.c.l.b16 %v195
      %v283 = vunpack.c.l.b16 %v196
      %v284 = vunpack.c.l.b16 %v197
      %v285 = vunpack.c.l.b16 %v198
      %v286 = vunpack.c.l.b16 %v199
      %v287 = vunpack.c.l.b16 %v200
      %v288 = vunpack.c.l.b16 %v201
      %v289 = vunpack.c.l.b16 %v202
      %v290 = vunpack.c.l.b16 %v203
      %v291 = vunpack.c.l.b16 %v204
      %v292 = vunpack.c.l.b16 %v205
      %v293 = vunpack.c.l.b16 %v206
      %v294 = vpack.c.b16 %v279, %v278
      %v295 = vpack.c.b16 %v281, %v280
      %v296 = vpack.c.b16 %v283, %v282
      %v297 = vpack.c.b16 %v285, %v284
      %v298 = vpack.c.b16 %v287, %v286
      %v299 = vpack.c.b16 %v289, %v288
      %v300 = vpack.c.b16 %v291, %v290
      %v301 = vpack.c.b16 %v293, %v292
      %310 = vmatprep.subr.bf16.mxu0 0
      %311 = vmatpush1.bf16.msra.mxu0 %v301
      %312 = vmatprep.subr.bf16.mxu0 0
      %313 = vmatpush1.bf16.msra.mxu0 %v300
      %314 = vmatprep.subr.bf16.mxu0 0
      %315 = vmatpush1.bf16.msra.mxu0 %v299
      %316 = vmatprep.subr.bf16.mxu0 0
      %317 = vmatpush1.bf16.msra.mxu0 %v298
      %318 = vmatprep.subr.bf16.mxu0 0
      %319 = vmatpush1.bf16.msra.mxu0 %v297
      %320 = vmatprep.subr.bf16.mxu0 0
      %321 = vmatpush1.bf16.msra.mxu0 %v296
      %322 = vmatprep.subr.bf16.mxu0 0
      %323 = vmatpush1.bf16.msra.mxu0 %v295
      %324 = vmatprep.subr.bf16.mxu0 0
      %325 = vmatpush1.bf16.msra.mxu0 %v294
      %326 = vmatprep.subr.bf16.mxu0 0
      %327 = vmatpush2.bf16.msra.mxu0 0
      %328 = vmatprep.subr.bf16.mxu0 0
      %329 = vmatpush2.bf16.msra.mxu0 0
      %330 = vmatprep.subr.bf16.mxu0 0
      %331 = vmatpush2.bf16.msra.mxu0 0
      %332 = vmatprep.subr.bf16.mxu0 0
      %333 = vmatpush2.bf16.msra.mxu0 0
      %334 = vmatprep.subr.bf16.mxu0 0
      %335 = vmatpush2.bf16.msra.mxu0 0
      %336 = vmatprep.subr.bf16.mxu0 0
      %337 = vmatpush2.bf16.msra.mxu0 0
      %338 = vmatprep.subr.bf16.mxu0 0
      %339 = vmatpush2.bf16.msra.mxu0 0
      %340 = vmatprep.subr.bf16.mxu0 0
      %341 = vmatpush2.bf16.msra.mxu0 0
      %342 = vmatprep.mubr.bf16.mxu0 0
      %343 = vmatmul.mubr.bf16.gmra.mxu0 %v246
      %v344 = vpop.f32.mrf.mxu0
      %v345 = vadd.f32 %v212, %v344
      %v346 = vpop.f32.mrf.mxu0
      %v347 = vpop.f32.mrf.mxu0
      %v348 = vadd.f32 %v212, %v347
      %v349 = vpop.f32.mrf.mxu0
      %350 = vmatprep.mubr.bf16.mxu0 0
      %351 = vmatmul.mubr.bf16.gmra.mxu0 %v247
      %v352 = vpop.f32.mrf.mxu0
      %v353 = vadd.f32 %v212, %v352
      %v354 = vpop.f32.mrf.mxu0
      %v355 = vpop.f32.mrf.mxu0
      %v356 = vadd.f32 %v212, %v355
      %v357 = vpop.f32.mrf.mxu0
      %358 = vmatprep.mubr.bf16.mxu0 0
      %359 = vmatmul.mubr.bf16.gmra.mxu0 %v248
      %v360 = vpop.f32.mrf.mxu0
      %v361 = vadd.f32 %v212, %v360
      %v362 = vpop.f32.mrf.mxu0
      %v363 = vpop.f32.mrf.mxu0
      %v364 = vadd.f32 %v212, %v363
      %v365 = vpop.f32.mrf.mxu0
      %366 = vmatprep.mubr.bf16.mxu0 0
      %367 = vmatmul.mubr.bf16.gmra.mxu0 %v249
      %v368 = vpop.f32.mrf.mxu0
      %v369 = vadd.f32 %v212, %v368
      %v370 = vpop.f32.mrf.mxu0
      %v371 = vpop.f32.mrf.mxu0
      %v372 = vadd.f32 %v212, %v371
      %v373 = vpop.f32.mrf.mxu0
      %374 = vmatprep.mubr.bf16.mxu0 0
      %375 = vmatmul.mubr.bf16.gmra.mxu0 %v250
      %v376 = vpop.f32.mrf.mxu0
      %v377 = vadd.f32 %v212, %v376
      %v378 = vpop.f32.mrf.mxu0
      %v379 = vpop.f32.mrf.mxu0
      %v380 = vadd.f32 %v212, %v379
      %v381 = vpop.f32.mrf.mxu0
      %382 = vmatprep.mubr.bf16.mxu0 0
      %383 = vmatmul.mubr.bf16.gmra.mxu0 %v251
      %v384 = vpop.f32.mrf.mxu0
      %v385 = vadd.f32 %v212, %v384
      %v386 = vpop.f32.mrf.mxu0
      %v387 = vpop.f32.mrf.mxu0
      %v388 = vadd.f32 %v212, %v387
      %v389 = vpop.f32.mrf.mxu0
      %390 = vmatprep.mubr.bf16.mxu0 0
      %391 = vmatmul.mubr.bf16.gmra.mxu0 %v252
      %v392 = vpop.f32.mrf.mxu0
      %v393 = vadd.f32 %v212, %v392
      %v394 = vpop.f32.mrf.mxu0
      %v395 = vpop.f32.mrf.mxu0
      %v396 = vadd.f32 %v212, %v395
      %v397 = vpop.f32.mrf.mxu0
      %398 = vmatprep.mubr.bf16.mxu0 0
      %399 = vmatmul.mubr.bf16.gmra.mxu0 %v253
      %v400 = vpop.f32.mrf.mxu0
      %v401 = vadd.f32 %v212, %v400
      %v402 = vpop.f32.mrf.mxu0
      %v403 = vpop.f32.mrf.mxu0
      %v404 = vadd.f32 %v212, %v403
      %v405 = vpop.f32.mrf.mxu0
      %406 = vdwg.mxu0
      %v407 = vmax.f32 %v345, 0.0
      %v408 = vmax.f32 %v348, 0.0
      %v409 = vmax.f32 %v353, 0.0
      %v410 = vmax.f32 %v356, 0.0
      %v411 = vmax.f32 %v361, 0.0
      %v412 = vmax.f32 %v364, 0.0
      %v413 = vmax.f32 %v369, 0.0
      %v414 = vmax.f32 %v372, 0.0
      %v415 = vmax.f32 %v377, 0.0
      %v416 = vmax.f32 %v380, 0.0
      %v417 = vmax.f32 %v385, 0.0
      %v418 = vmax.f32 %v388, 0.0
      %v419 = vmax.f32 %v393, 0.0
      %v420 = vmax.f32 %v396, 0.0
      %v421 = vmax.f32 %v401, 0.0
      %v422 = vmax.f32 %v404, 0.0
      %423 = vst [vmem:[%s172] sm:$0xff] %v407
      %424 = vst [vmem:[%s172 + $0x8] sm:$0xff] %v408
      %425 = vst [vmem:[%s172 + $0x10] sm:$0xff] %v409
      %426 = vst [vmem:[%s172 + $0x18] sm:$0xff] %v410
      %427 = vst [vmem:[%s172 + $0x20] sm:$0xff] %v411
      %428 = vst [vmem:[%s172 + $0x28] sm:$0xff] %v412
      %429 = vst [vmem:[%s172 + $0x30] sm:$0xff] %v413
      %430 = vst [vmem:[%s172 + $0x38] sm:$0xff] %v414
      %431 = vst [vmem:[%s172 + $0x40] sm:$0xff] %v415
      %432 = vst [vmem:[%s172 + $0x48] sm:$0xff] %v416
      %433 = vst [vmem:[%s172 + $0x50] sm:$0xff] %v417
      %434 = vst [vmem:[%s172 + $0x58] sm:$0xff] %v418
      %435 = vst [vmem:[%s172 + $0x60] sm:$0xff] %v419
      %436 = vst [vmem:[%s172 + $0x68] sm:$0xff] %v420
      %437 = vst [vmem:[%s172 + $0x70] sm:$0xff] %v421
      %438 = vst [vmem:[%s172 + $0x78] sm:$0xff] %v422
      %s439 = smul.u32 16, %s14
      %p440 = scmp.lt.s32.totalorder %s439, 127
      %s441 = scalar_select %p440, %s439, 127
      %s442 = smul.addr %s441, 8
      %s443 = scalar_lea.vmem %s3, %s442
      // Predicated region
      $region33: #{run.330} parent=31 // pred_check
        %p444 = pneg %p100
      $region34: #{run.330} parent=31 // pred_check_branch
        %446 = sbr.rel (%p444) target = $region36
      $region35: #{run.330} parent=31 // pred_region
        %s447 = smul.u32 16, %s14
      $region36: #{run.330} parent=31 // pred_fallthru
        _
    $region32: #{run.330} parent=5 // pred_fallthru
      _
    %p448 = scmp.le.s32.totalorder 2, %s9
    // Predicated region
    $region37: #{run.330} parent=5 // pred_check
      %p449 = pneg %p448
    $region38: #{run.330} parent=5 // pred_check_branch
      %451 = sbr.rel (%p449) target = $region40
    $region39: #{run.330} parent=5 // pred_region
      %s452 = ssub.s32 %s9, 2
      // Predicated region
      $region41: #{run.330} parent=39 // pred_check
        %p453 = pneg %p106
      $region42: #{run.330} parent=39 // pred_check_branch
        %455 = sbr.rel (%p453) target = $region44
      $region43: #{run.330} parent=39 // pred_region
        %s456 = smul.u32 16, %s15
        %p457 = scmp.lt.s32.totalorder %s456, 127
        %s458 = scalar_select %p457, %s456, 127
        %s459 = smul.addr %s458, 8
        %s460 = scalar_lea.vmem %s3, %s459
      $region44: #{run.330} parent=39 // pred_fallthru
        _
    $region40: #{run.330} parent=5 // pred_fallthru
      _
  $region6: #{run.330} parent=0 // loop_footer
    %s13 = sadd.s32 1, %s9
  $region7: #{run.330} parent=0 // loop_footer_branch
    %8 = sbr.rel target = $region3
  $region8: #{run.330} parent=0 // loop_exit
    _

// kernel: run.337
$region0: #{run.337}
  #allocation0 [shape = 'u32[]', space=smem, size = 0x4, offset = 0x4, fixed_abs, tag = 'smem constant byte address 0x4 - core index']
  #allocation1 [shape = 'u32[144,128]{1,0:T(1,128)}', space=vmem, size = 0x12000, scoped, tag = 'internal scratch']
  %s0 = inlined_call_operand.vmem [shape: bf16[1024,128], index: 0, kind: input, shape index: {}]
  %s1 = inlined_call_operand.vmem [shape: bf16[128,128], index: 1, kind: input, shape index: {}]
  %s2 = inlined_call_operand.vmem [shape: f32[1,128], index: 2, kind: input, shape index: {}]
  %s3 = inlined_call_operand.vmem [shape: f32[1024,128], index: 3, kind: output, shape index: {}]
  %s4 = sld [smem:[#allocation0]]
  $region45: #{run.337} parent=0
    _
  %s6 = ssub.s32 1, %s4
  %s7 = scalar_select 0, %s6, %s4
  loop: start=0, step=1, limit=10
  $region2: #{run.337} parent=0 // loop_pre_header
    _
  $region3: #{run.337} parent=0 // loop_header
    %s9 = sphi 0, %s13
    %p10 = scmp.ge.s32.totalorder %s9, 10
    %s19 = sphi 0, %s21
    %s22 = sphi 0, %s19
    %s23 = sphi 0, %s22
    %s39 = sphi 0, %s23
    %s43 = sphi 0, %s43
    %s45 = sphi 0, %s43
    %s46 = sphi 0, %s45
    %s60 = sphi 0, %s46
    %s64 = sphi 0, %s64
    %s66 = sphi 0, %s64
    %s67 = sphi 0, %s66
    %s81 = sphi 0, %s67
    %s87 = sphi 0, %s89
    %s90 = sphi 0, %s87
    %s91 = sphi 0, %s90
    %s107 = sphi 0, %s91
  $region4: #{run.337} parent=0 // loop_header_branch
    %12 = sbr.rel (%p10) target = $region8
  $region5: #{run.337} parent=0 // loop_body
    %s14 = ssub.s32 %s9, 1
    %s15 = ssub.s32 %s9, 2
    %s16 = sadd.s32 %s9, 1
    %s17 = ssub.s32 %s9, %s16
    %p18 = scmp.eq.s32.totalorder %s17, 0
    %s20 = sadd.s32 %s19, 1
    %s21 = scalar_select %p18, %s19, %s20
    %p24 = pneg %p18
    %p25 = scmp.eq.s32.totalorder %s9, 7
    %p26 = por %p24, %p25
    %p27 = scmp.ne.s32.totalorder %s19, %s22
    %p28 = scmp.eq.s32.totalorder %s9, 0
    %p29 = por %p27, %p28
    %p30 = scmp.ne.s32.totalorder %s19, %s22
    %p31 = scmp.eq.s32.totalorder %s14, 7
    %p32 = por %p30, %p31
    %p33 = scmp.ne.s32.totalorder %s22, %s23
    %p34 = scmp.eq.s32.totalorder %s14, 0
    %p35 = por %p33, %p34
    %p36 = scmp.ne.s32.totalorder %s22, %s23
    %p37 = scmp.eq.s32.totalorder %s15, 7
    %p38 = por %p36, %p37
    %p40 = scmp.ne.s32.totalorder %s23, %s39
    %p41 = scmp.eq.s32.totalorder %s15, 0
    %p42 = por %p40, %p41
    %s44 = sadd.s32 %s43, 1
    %p47 = scmp.eq.s32.totalorder %s9, 7
    %p48 = scmp.ne.s32.totalorder %s43, %s45
    %p49 = scmp.eq.s32.totalorder %s9, 0
    %p50 = por %p48, %p49
    %p51 = scmp.ne.s32.totalorder %s43, %s45
    %p52 = scmp.eq.s32.totalorder %s14, 7
    %p53 = por %p51, %p52
    %p54 = scmp.ne.s32.totalorder %s45, %s46
    %p55 = scmp.eq.s32.totalorder %s14, 0
    %p56 = por %p54, %p55
    %p57 = scmp.ne.s32.totalorder %s45, %s46
    %p58 = scmp.eq.s32.totalorder %s15, 7
    %p59 = por %p57, %p58
    %p61 = scmp.ne.s32.totalorder %s46, %s60
    %p62 = scmp.eq.s32.totalorder %s15, 0
    %p63 = por %p61, %p62
    %s65 = sadd.s32 %s64, 1
    %p68 = scmp.eq.s32.totalorder %s9, 7
    %p69 = scmp.ne.s32.totalorder %s64, %s66
    %p70 = scmp.eq.s32.totalorder %s9, 0
    %p71 = por %p69, %p70
    %p72 = scmp.ne.s32.totalorder %s64, %s66
    %p73 = scmp.eq.s32.totalorder %s14, 7
    %p74 = por %p72, %p73
    %p75 = scmp.ne.s32.totalorder %s66, %s67
    %p76 = scmp.eq.s32.totalorder %s14, 0
    %p77 = por %p75, %p76
    %p78 = scmp.ne.s32.totalorder %s66, %s67
    %p79 = scmp.eq.s32.totalorder %s15, 7
    %p80 = por %p78, %p79
    %p82 = scmp.ne.s32.totalorder %s67, %s81
    %p83 = scmp.eq.s32.totalorder %s15, 0
    %p84 = por %p82, %p83
    %s85 = ssub.s32 %s9, %s16
    %p86 = scmp.eq.s32.totalorder %s85, 0
    %s88 = sadd.s32 %s87, 1
    %s89 = scalar_select %p86, %s87, %s88
    %p92 = pneg %p86
    %p93 = scmp.eq.s32.totalorder %s9, 7
    %p94 = por %p92, %p93
    %p95 = scmp.ne.s32.totalorder %s87, %s90
    %p96 = scmp.eq.s32.totalorder %s9, 0
    %p97 = por %p95, %p96
    %p98 = scmp.ne.s32.totalorder %s87, %s90
    %p99 = scmp.eq.s32.totalorder %s14, 7
    %p100 = por %p98, %p99
    %p101 = scmp.ne.s32.totalorder %s90, %s91
    %p102 = scmp.eq.s32.totalorder %s14, 0
    %p103 = por %p101, %p102
    %p104 = scmp.ne.s32.totalorder %s90, %s91
    %p105 = scmp.eq.s32.totalorder %s15, 7
    %p106 = por %p104, %p105
    %p108 = scmp.ne.s32.totalorder %s91, %s107
    %p109 = scmp.eq.s32.totalorder %s15, 0
    %p110 = por %p108, %p109
    %p111 = scmp.le.s32.totalorder 1, %s9
    %p112 = scmp.lt.s32.totalorder %s9, 9
    %p113 = pnand %p111, %p112
    %p114 = pneg %p113
    // Predicated region
    $region9: #{run.337} parent=5 // pred_check
      _
    $region10: #{run.337} parent=5 // pred_check_branch
      %116 = sbr.rel (%p113) target = $region12
    $region11: #{run.337} parent=5 // pred_region
      %s117 = ssub.s32 %s9, 1
      // Predicated region
      $region13: #{run.337} parent=11 // pred_check
        %p118 = pneg %p56
      $region14: #{run.337} parent=11 // pred_check_branch
        %120 = sbr.rel (%p118) target = $region16
      $region15: #{run.337} parent=11 // pred_region
        _
      $region16: #{run.337} parent=11 // pred_fallthru
        _
      // Predicated region
      $region17: #{run.337} parent=11 // pred_check
        %p121 = pneg %p77
      $region18: #{run.337} parent=11 // pred_check_branch
        %123 = sbr.rel (%p121) target = $region20
      $region19: #{run.337} parent=11 // pred_region
        _
      $region20: #{run.337} parent=11 // pred_fallthru
        _
    $region12: #{run.337} parent=5 // pred_fallthru
      _
    %p124 = scmp.lt.s32.totalorder %s9, 8
    // Predicated region
    $region21: #{run.337} parent=5 // pred_check
      %p125 = pneg %p124
    $region22: #{run.337} parent=5 // pred_check_branch
      %127 = sbr.rel (%p125) target = $region24
    $region23: #{run.337} parent=5 // pred_region
      // Predicated region
      $region25: #{run.337} parent=23 // pred_check
        %p128 = pneg %p29
      $region26: #{run.337} parent=23 // pred_check_branch
        %130 = sbr.rel (%p128) target = $region28
      $region27: #{run.337} parent=23 // pred_region
        %s131 = smul.u32 16, %s9
        %p132 = scmp.lt.s32.totalorder %s131, 127
        %s133 = scalar_select %p132, %s131, 127
        %s134 = smul.addr %s133, 4
        %s135 = scalar_lea.vmem %s0, %s134
        %s136 = smul.u32 16, %s9
      $region28: #{run.337} parent=23 // pred_fallthru
        _
    $region24: #{run.337} parent=5 // pred_fallthru
      _
    %p137 = scmp.le.s32.totalorder 1, %s9
    %p138 = scmp.lt.s32.totalorder %s9, 9
    %p139 = pnand %p137, %p138
    %p140 = pneg %p139
    // Predicated region
    $region29: #{run.337} parent=5 // pred_check
      _
    $region30: #{run.337} parent=5 // pred_check_branch
      %142 = sbr.rel (%p139) target = $region32
    $region31: #{run.337} parent=5 // pred_region
      %s143 = ssub.s32 %s9, 1
      %s144 = smul.u32 16, %s14
      %p145 = scmp.lt.s32.totalorder %s144, 127
      %s146 = scalar_select %p145, %s144, 127
      %s147 = smul.addr %s146, 4
      %s148 = scalar_lea.vmem %s0, %s147
      %p149 = pneg %p35
      %p150 = pneg %p32
      %p151 = pneg %p56
      %p152 = pneg %p53
      %p153 = pneg %p77
      %p154 = pneg %p74
      %p155 = pneg %p103
      %p156 = pneg %p100
      %s157 = smul.u32 16, %s14
      %p158 = scmp.lt.s32.totalorder %s157, 127
      %s159 = scalar_select %p158, %s157, 127
      %s160 = smul.addr %s159, 8
      %s161 = scalar_lea.vmem %s3, %s160
      %s162 = smul.u32 16, %s14
      %p163 = scmp.lt.s32.totalorder %s162, 127
      %s164 = scalar_select %p163, %s162, 127
      %s165 = smul.addr %s164, 4
      %s166 = scalar_lea.vmem %s0, %s165
      %s167 = smul.u32 16, %s14
      %s168 = smul.u32 16, %s14
      %p169 = scmp.lt.s32.totalorder %s168, 127
      %s170 = scalar_select %p169, %s168, 127
      %s171 = smul.addr %s170, 8
      %s172 = scalar_lea.vmem %s3, %s171
      %s173 = smul.u32 16, %s14
      %v175 = vld [vmem:[%s166] sm:$0xf]
      %v176 = vld [vmem:[%s166 + $0x4] sm:$0xf]
      %v177 = vld [vmem:[%s166 + $0x8] sm:$0xf]
      %v178 = vld [vmem:[%s166 + $0xc] sm:$0xf]
      %v179 = vld [vmem:[%s166 + $0x10] sm:$0xf]
      %v180 = vld [vmem:[%s166 + $0x14] sm:$0xf]
      %v181 = vld [vmem:[%s166 + $0x18] sm:$0xf]
      %v182 = vld [vmem:[%s166 + $0x1c] sm:$0xf]
      %v183 = vld [vmem:[%s166 + $0x20] sm:$0xf]
      %v184 = vld [vmem:[%s166 + $0x24] sm:$0xf]
      %v185 = vld [vmem:[%s166 + $0x28] sm:$0xf]
      %v186 = vld [vmem:[%s166 + $0x2c] sm:$0xf]
      %v187 = vld [vmem:[%s166 + $0x30] sm:$0xf]
      %v188 = vld [vmem:[%s166 + $0x34] sm:$0xf]
      %v189 = vld [vmem:[%s166 + $0x38] sm:$0xf]
      %v190 = vld [vmem:[%s166 + $0x3c] sm:$0xf]
      %v191 = vld [vmem:[%s1] sm:$0xf]
      %v192 = vld [vmem:[%s1 + $0x4] sm:$0xf]
      %v193 = vld [vmem:[%s1 + $0x8] sm:$0xf]
      %v194 = vld [vmem:[%s1 + $0xc] sm:$0xf]
      %v195 = vld [vmem:[%s1 + $0x10] sm:$0xf]
      %v196 = vld [vmem:[%s1 + $0x14] sm:$0xf]
      %v197 = vld [vmem:[%s1 + $0x18] sm:$0xf]
      %v198 = vld [vmem:[%s1 + $0x1c] sm:$0xf]
      %v199 = vld [vmem:[%s1 + $0x20] sm:$0xf]
      %v200 = vld [vmem:[%s1 + $0x24] sm:$0xf]
      %v201 = vld [vmem:[%s1 + $0x28] sm:$0xf]
      %v202 = vld [vmem:[%s1 + $0x2c] sm:$0xf]
      %v203 = vld [vmem:[%s1 + $0x30] sm:$0xf]
      %v204 = vld [vmem:[%s1 + $0x34] sm:$0xf]
      %v205 = vld [vmem:[%s1 + $0x38] sm:$0xf]
      %v206 = vld [vmem:[%s1 + $0x3c] sm:$0xf]
      %v207 = vld [vmem:[%s2] sm:$0x1]
      %v209 = vlaneseq
      %v210 = vshrl.u32 %v209, 7
      %v211 = vsub.s32 0, %v210
      %v212 = vrot.slane %v207, %v211
      %v230 = vunpack.c.l.b16 %v175
      %v231 = vunpack.c.l.b16 %v176
      %v232 = vunpack.c.l.b16 %v177
      %v233 = vunpack.c.l.b16 %v178
      %v234 = vunpack.c.l.b16 %v179
      %v235 = vunpack.c.l.b16 %v180
      %v236 = vunpack.c.l.b16 %v181
      %v237 = vunpack.c.l.b16 %v182
      %v238 = vunpack.c.l.b16 %v183
      %v239 = vunpack.c.l.b16 %v184
      %v240 = vunpack.c.l.b16 %v185
      %v241 = vunpack.c.l.b16 %v186
      %v242 = vunpack.c.l.b16 %v187
      %v243 = vunpack.c.l.b16 %v188
      %v244 = vunpack.c.l.b16 %v189
      %v245 = vunpack.c.l.b16 %v190
      %v246 = vpack.c.b16 %v231, %v230
      %v247 = vpack.c.b16 %v233, %v232
      %v248 = vpack.c.b16 %v235, %v234
      %v249 = vpack.c.b16 %v237, %v236
      %v250 = vpack.c.b16 %v239, %v238
      %v251 = vpack.c.b16 %v241, %v240
      %v252 = vpack.c.b16 %v243, %v242
      %v253 = vpack.c.b16 %v245, %v244
      %v278 = vunpack.c.l.b16 %v191
      %v279 = vunpack.c.l.b16 %v192
      %v280 = vunpack.c.l.b16 %v193
      %v281 = vunpack.c.l.b16 %v194
      %v282 = vunpack.c.l.b16 %v195
      %v283 = vunpack.c.l.b16 %v196
      %v284 = vunpack.c.l.b16 %v197
      %v285 = vunpack.c.l.b16 %v198
      %v286 = vunpack.c.l.b16 %v199
      %v287 = vunpack.c.l.b16 %v200
      %v288 = vunpack.c.l.b16 %v201
      %v289 = vunpack.c.l.b16 %v202
      %v290 = vunpack.c.l.b16 %v203
      %v291 = vunpack.c.l.b16 %v204
      %v292 = vunpack.c.l.b16 %v205
      %v293 = vunpack.c.l.b16 %v206
      %v294 = vpack.c.b16 %v279, %v278
      %v295 = vpack.c.b16 %v281, %v280
      %v296 = vpack.c.b16 %v283, %v282
      %v297 = vpack.c.b16 %v285, %v284
      %v298 = vpack.c.b16 %v287, %v286
      %v299 = vpack.c.b16 %v289, %v288
      %v300 = vpack.c.b16 %v291, %v290
      %v301 = vpack.c.b16 %v293, %v292
      %310 = vmatprep.subr.bf16.mxu0 0
      %311 = vmatpush1.bf16.msra.mxu0 %v301
      %312 = vmatprep.subr.bf16.mxu0 0
      %313 = vmatpush1.bf16.msra.mxu0 %v300
      %314 = vmatprep.subr.bf16.mxu0 0
      %315 = vmatpush1.bf16.msra.mxu0 %v299
      %316 = vmatprep.subr.bf16.mxu0 0
      %317 = vmatpush1.bf16.msra.mxu0 %v298
      %318 = vmatprep.subr.bf16.mxu0 0
      %319 = vmatpush1.bf16.msra.mxu0 %v297
      %320 = vmatprep.subr.bf16.mxu0 0
      %321 = vmatpush1.bf16.msra.mxu0 %v296
      %322 = vmatprep.subr.bf16.mxu0 0
      %323 = vmatpush1.bf16.msra.mxu0 %v295
      %324 = vmatprep.subr.bf16.mxu0 0
      %325 = vmatpush1.bf16.msra.mxu0 %v294
      %326 = vmatprep.subr.bf16.mxu0 0
      %327 = vmatpush2.bf16.msra.mxu0 0
      %328 = vmatprep.subr.bf16.mxu0 0
      %329 = vmatpush2.bf16.msra.mxu0 0
      %330 = vmatprep.subr.bf16.mxu0 0
      %331 = vmatpush2.bf16.msra.mxu0 0
      %332 = vmatprep.subr.bf16.mxu0 0
      %333 = vmatpush2.bf16.msra.mxu0 0
      %334 = vmatprep.subr.bf16.mxu0 0
      %335 = vmatpush2.bf16.msra.mxu0 0
      %336 = vmatprep.subr.bf16.mxu0 0
      %337 = vmatpush2.bf16.msra.mxu0 0
      %338 = vmatprep.subr.bf16.mxu0 0
      %339 = vmatpush2.bf16.msra.mxu0 0
      %340 = vmatprep.subr.bf16.mxu0 0
      %341 = vmatpush2.bf16.msra.mxu0 0
      %342 = vmatprep.mubr.bf16.mxu0 0
      %343 = vmatmul.mubr.bf16.gmra.mxu0 %v246
      %v344 = vpop.f32.mrf.mxu0
      %v345 = vadd.f32 %v212, %v344
      %v346 = vpop.f32.mrf.mxu0
      %v347 = vpop.f32.mrf.mxu0
      %v348 = vadd.f32 %v212, %v347
      %v349 = vpop.f32.mrf.mxu0
      %350 = vmatprep.mubr.bf16.mxu0 0
      %351 = vmatmul.mubr.bf16.gmra.mxu0 %v247
      %v352 = vpop.f32.mrf.mxu0
      %v353 = vadd.f32 %v212, %v352
      %v354 = vpop.f32.mrf.mxu0
      %v355 = vpop.f32.mrf.mxu0
      %v356 = vadd.f32 %v212, %v355
      %v357 = vpop.f32.mrf.mxu0
      %358 = vmatprep.mubr.bf16.mxu0 0
      %359 = vmatmul.mubr.bf16.gmra.mxu0 %v248
      %v360 = vpop.f32.mrf.mxu0
      %v361 = vadd.f32 %v212, %v360
      %v362 = vpop.f32.mrf.mxu0
      %v363 = vpop.f32.mrf.mxu0
      %v364 = vadd.f32 %v212, %v363
      %v365 = vpop.f32.mrf.mxu0
      %366 = vmatprep.mubr.bf16.mxu0 0
      %367 = vmatmul.mubr.bf16.gmra.mxu0 %v249
      %v368 = vpop.f32.mrf.mxu0
      %v369 = vadd.f32 %v212, %v368
      %v370 = vpop.f32.mrf.mxu0
      %v371 = vpop.f32.mrf.mxu0
      %v372 = vadd.f32 %v212, %v371
      %v373 = vpop.f32.mrf.mxu0
      %374 = vmatprep.mubr.bf16.mxu0 0
      %375 = vmatmul.mubr.bf16.gmra.mxu0 %v250
      %v376 = vpop.f32.mrf.mxu0
      %v377 = vadd.f32 %v212, %v376
      %v378 = vpop.f32.mrf.mxu0
      %v379 = vpop.f32.mrf.mxu0
      %v380 = vadd.f32 %v212, %v379
      %v381 = vpop.f32.mrf.mxu0
      %382 = vmatprep.mubr.bf16.mxu0 0
      %383 = vmatmul.mubr.bf16.gmra.mxu0 %v251
      %v384 = vpop.f32.mrf.mxu0
      %v385 = vadd.f32 %v212, %v384
      %v386 = vpop.f32.mrf.mxu0
      %v387 = vpop.f32.mrf.mxu0
      %v388 = vadd.f32 %v212, %v387
      %v389 = vpop.f32.mrf.mxu0
      %390 = vmatprep.mubr.bf16.mxu0 0
      %391 = vmatmul.mubr.bf16.gmra.mxu0 %v252
      %v392 = vpop.f32.mrf.mxu0
      %v393 = vadd.f32 %v212, %v392
      %v394 = vpop.f32.mrf.mxu0
      %v395 = vpop.f32.mrf.mxu0
      %v396 = vadd.f32 %v212, %v395
      %v397 = vpop.f32.mrf.mxu0
      %398 = vmatprep.mubr.bf16.mxu0 0
      %399 = vmatmul.mubr.bf16.gmra.mxu0 %v253
      %v400 = vpop.f32.mrf.mxu0
      %v401 = vadd.f32 %v212, %v400
      %v402 = vpop.f32.mrf.mxu0
      %v403 = vpop.f32.mrf.mxu0
      %v404 = vadd.f32 %v212, %v403
      %v405 = vpop.f32.mrf.mxu0
      %406 = vdwg.mxu0
      %407 = vst [vmem:[%s172] sm:$0xff] %v345
      %408 = vst [vmem:[%s172 + $0x8] sm:$0xff] %v348
      %409 = vst [vmem:[%s172 + $0x10] sm:$0xff] %v353
      %410 = vst [vmem:[%s172 + $0x18] sm:$0xff] %v356
      %411 = vst [vmem:[%s172 + $0x20] sm:$0xff] %v361
      %412 = vst [vmem:[%s172 + $0x28] sm:$0xff] %v364
      %413 = vst [vmem:[%s172 + $0x30] sm:$0xff] %v369
      %414 = vst [vmem:[%s172 + $0x38] sm:$0xff] %v372
      %415 = vst [vmem:[%s172 + $0x40] sm:$0xff] %v377
      %416 = vst [vmem:[%s172 + $0x48] sm:$0xff] %v380
      %417 = vst [vmem:[%s172 + $0x50] sm:$0xff] %v385
      %418 = vst [vmem:[%s172 + $0x58] sm:$0xff] %v388
      %419 = vst [vmem:[%s172 + $0x60] sm:$0xff] %v393
      %420 = vst [vmem:[%s172 + $0x68] sm:$0xff] %v396
      %421 = vst [vmem:[%s172 + $0x70] sm:$0xff] %v401
      %422 = vst [vmem:[%s172 + $0x78] sm:$0xff] %v404
      %s423 = smul.u32 16, %s14
      %p424 = scmp.lt.s32.totalorder %s423, 127
      %s425 = scalar_select %p424, %s423, 127
      %s426 = smul.addr %s425, 8
      %s427 = scalar_lea.vmem %s3, %s426
      // Predicated region
      $region33: #{run.337} parent=31 // pred_check
        %p428 = pneg %p100
      $region34: #{run.337} parent=31 // pred_check_branch
        %430 = sbr.rel (%p428) target = $region36
      $region35: #{run.337} parent=31 // pred_region
        %s431 = smul.u32 16, %s14
      $region36: #{run.337} parent=31 // pred_fallthru
        _
    $region32: #{run.337} parent=5 // pred_fallthru
      _
    %p432 = scmp.le.s32.totalorder 2, %s9
    // Predicated region
    $region37: #{run.337} parent=5 // pred_check
      %p433 = pneg %p432
    $region38: #{run.337} parent=5 // pred_check_branch
      %435 = sbr.rel (%p433) target = $region40
    $region39: #{run.337} parent=5 // pred_region
      %s436 = ssub.s32 %s9, 2
      // Predicated region
      $region41: #{run.337} parent=39 // pred_check
        %p437 = pneg %p106
      $region42: #{run.337} parent=39 // pred_check_branch
        %439 = sbr.rel (%p437) target = $region44
      $region43: #{run.337} parent=39 // pred_region
        %s440 = smul.u32 16, %s15
        %p441 = scmp.lt.s32.totalorder %s440, 127
        %s442 = scalar_select %p441, %s440, 127
        %s443 = smul.addr %s442, 8
        %s444 = scalar_lea.vmem %s3, %s443
      $region44: #{run.337} parent=39 // pred_fallthru
        _
    $region40: #{run.337} parent=5 // pred_fallthru
      _
  $region6: #{run.337} parent=0 // loop_footer
    %s13 = sadd.s32 1, %s9
  $region7: #{run.337} parent=0 // loop_footer_branch
    %8 = sbr.rel target = $region3
  $region8: #{run.337} parent=0 // loop_exit
    _

</llo_original>
